<compile_context>
chip_gen: v7x
topology: tpu7x:2x2x1
jax: 0.10.0
libtpu: 0.0.40
codegen_flags: <defaults>
</compile_context>

<pallas_src>
import functools

import jax
import jax.numpy as jnp
import numpy as np
from jax.experimental import pallas as pl
from jax.experimental.pallas import tpu as pltpu


def _mhsa_kernel(x_ref, xt_ref, wq_ref, wkt_ref, wvt_ref,
                 bq_ref, bk_ref, bv_ref, rt_ref, poolt_ref, out_ref, *, head):
    f32 = jnp.float32
    x = x_ref[0]            # (dim, HW)  channels-major view
    xt = xt_ref[0]          # (HW, dim)  spatial-major view
    dim = x.shape[0]
    d_h = dim // head

    # ---- batched projections (full-width MXU matmuls, done once) ----------
    # q:     (dim, HW)                         -> per-head row slices
    # k + r: (HW, dim)  (transposed, r folded) -> per-head column slices
    # v:     (HW, dim)  (transposed)           -> per-head column slices
    q_full = jnp.dot(wq_ref[...], x, preferred_element_type=f32) + bq_ref[...]
    krt_full = (jnp.dot(xt, wkt_ref[...], preferred_element_type=f32)
                + bk_ref[...] + rt_ref[...])
    vt_full = jnp.dot(xt, wvt_ref[...], preferred_element_type=f32) + bv_ref[...]
    poolt = poolt_ref[...]                      # (HWp, HW)

    # ---- fused per-head pass: scores -> local stats -> feature -> pool ----
    # Only tiny (HWp, d_h) partials + two scalars survive each iteration; the
    # (HW, HW) score tile dies inside the iteration (no explicit scratch, no
    # exp writeback).
    m_loc, z_loc, pooled_loc = [], [], []
    for h in range(head):
        lo = h * d_h
        q_h = q_full[lo:lo + d_h, :]            # (d_h, HW_q)
        krt_h = krt_full[:, lo:lo + d_h]        # (HW_k, d_h)
        vt_h = vt_full[:, lo:lo + d_h]          # (HW_q, d_h)

        # e^T[k,q] = sum_c (k+r)[c,k] * q[c,q]   -- canonical (M,K)@(K,N)
        et = jnp.dot(krt_h, q_h, preferred_element_type=f32)          # (HW_k, HW_q)
        m_h = jnp.max(et)
        p_t = jnp.exp(et - m_h)                 # unnormalised, head-local max
        z_h = jnp.sum(p_t)
        feat_t = jnp.dot(p_t, vt_h, preferred_element_type=f32)       # (HW_k, d_h)
        pooled_t = jnp.dot(poolt, feat_t, preferred_element_type=f32)  # (HWp, d_h)

        m_loc.append(m_h)
        z_loc.append(z_h)
        pooled_loc.append(pooled_t)

    # ---- exact global (head*HW*HW) softmax fix-up on the tiny pooled tiles --
    m_g = m_loc[0]
    for h in range(1, head):
        m_g = jnp.maximum(m_g, m_loc[h])
    coef = [jnp.exp(m_loc[h] - m_g) for h in range(head)]
    z = coef[0] * z_loc[0]
    for h in range(1, head):
        z = z + coef[h] * z_loc[h]
    inv_z = 1.0 / z                             # single exact scalar divide
    for h in range(head):
        out_ref[0, h] = (pooled_loc[h] * (coef[h] * inv_z)).astype(out_ref.dtype)


def _make_pool_matrix(H, W):
    """2x2 stride-2 average-pool as a (H*W, (H//2)*(W//2)) matrix."""
    HWp = (H // 2) * (W // 2)
    mat = np.zeros((H * W, HWp), dtype=np.float32)
    for i in range(H // 2):
        for j in range(W // 2):
            p = i * (W // 2) + j
            for di in range(2):
                for dj in range(2):
                    mat[(2 * i + di) * W + (2 * j + dj), p] = 0.25
    return jnp.asarray(mat)


def mhsa_forward(x, params, head):
    B, dim, H, W = x.shape
    d_h = dim // head
    HW = H * W
    HWp = (H // 2) * (W // 2)
    f32 = jnp.float32

    x_flat = x.reshape(B, dim, HW).astype(f32)          # (B, dim, HW)
    x_t = jnp.transpose(x_flat, (0, 2, 1))              # (B, HW, dim)

    wq = params["wq"].astype(f32)                       # (dim, dim)   q = Wq @ x
    wk_t = params["wk"].astype(f32).T                   # (dim, dim)   k^T = x^T @ Wk^T
    wv_t = params["wv"].astype(f32).T                   # (dim, dim)   v^T = x^T @ Wv^T
    bq = params["bq"].astype(f32).reshape(dim, 1)       # column bias for q
    bk = params["bk"].astype(f32).reshape(1, dim)       # row bias for k^T
    bv = params["bv"].astype(f32).reshape(1, dim)       # row bias for v^T
    # (1,head,d_h,1,H)+(1,head,d_h,W,1) -> (1,head,d_h,W,H) -> (dim, W*H) -> T
    # (same positional flattening as the PyTorch .view(1, head, d_h, -1))
    r_t = (params["r_h"] + params["r_w"]).astype(f32).reshape(dim, HW).T  # (HW, dim)
    pool_t = _make_pool_matrix(H, W).T                  # (HWp, HW)

    grid_spec = pltpu.PrefetchScalarGridSpec(
        num_scalar_prefetch=0,
        grid=(B,),
        in_specs=[
            pl.BlockSpec((1, dim, HW), lambda b: (b, 0, 0)),   # x   (dim, HW)
            pl.BlockSpec((1, HW, dim), lambda b: (b, 0, 0)),   # x^T (HW, dim)
            pl.BlockSpec((dim, dim), lambda b: (0, 0)),        # Wq
            pl.BlockSpec((dim, dim), lambda b: (0, 0)),        # Wk^T
            pl.BlockSpec((dim, dim), lambda b: (0, 0)),        # Wv^T
            pl.BlockSpec((dim, 1), lambda b: (0, 0)),          # bq (col)
            pl.BlockSpec((1, dim), lambda b: (0, 0)),          # bk (row)
            pl.BlockSpec((1, dim), lambda b: (0, 0)),          # bv (row)
            pl.BlockSpec((HW, dim), lambda b: (0, 0)),         # r^T
            pl.BlockSpec((HWp, HW), lambda b: (0, 0)),         # pool^T
        ],
        out_specs=pl.BlockSpec((1, head, HWp, d_h), lambda b: (b, 0, 0, 0)),
    )

    kernel = functools.partial(_mhsa_kernel, head=head)
    out = pl.pallas_call(
        kernel,
        out_shape=jax.ShapeDtypeStruct((B, head, HWp, d_h), jnp.float32),
        grid_spec=grid_spec,
        compiler_params=pltpu.CompilerParams(
            dimension_semantics=("parallel",),
            vmem_limit_bytes=32 * 1024 * 1024),
    )(x_flat, x_t, wq, wk_t, wv_t, bq, bk, bv, r_t, pool_t)

    # (B, head, HWp, d_h) -> (B, head, d_h, HWp) -> (B, dim, H/2, W/2)
    return out.transpose(0, 1, 3, 2).reshape(B, dim, H // 2, W // 2)


def mhsa_reference(x, params, head):
    """Pure-JAX reference mirroring the PyTorch forward exactly."""
    B, dim, H, W = x.shape
    d_h = dim // head
    HW = H * W

    def conv1x1(x, w, b):
        return jnp.einsum('oc,bchw->bohw', w, x) + b[None, :, None, None]

    q = conv1x1(x, params["wq"], params["bq"]).reshape(B, head, d_h, HW)
    q = q.transpose(0, 1, 3, 2)                                   # (B,head,HW,d_h)
    k = conv1x1(x, params["wk"], params["bk"]).reshape(B, head, d_h, HW)
    v = conv1x1(x, params["wv"], params["bv"]).reshape(B, head, d_h, HW)
    r = (params["r_h"] + params["r_w"]).reshape(1, head, d_h, HW)

    content_position = jnp.matmul(q, r)                           # (B,head,HW,HW)
    content_content = jnp.matmul(q, k)                            # (B,head,HW,HW)
    energy = (content_content + content_position).reshape(B, -1)
    attention = jax.nn.softmax(energy, axis=-1).reshape(B, head, HW, HW)
    feature = jnp.matmul(v, attention).reshape(B, dim, H, W)
    out = feature.reshape(B, dim, H // 2, 2, W // 2, 2).mean(axis=(3, 5))
    return out


if __name__ == "__main__":
    B, dim, H, W, head = 2, 4, 16, 16, 2
    d_h = dim // head

    key = jax.random.PRNGKey(0)
    ks = jax.random.split(key, 10)
    params = {
        "r_h": jax.random.normal(ks[0], (1, head, d_h, 1, H), jnp.float32),
        "r_w": jax.random.normal(ks[1], (1, head, d_h, W, 1), jnp.float32),
        "wq": jax.random.normal(ks[2], (dim, dim), jnp.float32) * 0.5,
        "bq": jax.random.normal(ks[3], (dim,), jnp.float32) * 0.1,
        "wk": jax.random.normal(ks[4], (dim, dim), jnp.float32) * 0.5,
        "bk": jax.random.normal(ks[5], (dim,), jnp.float32) * 0.1,
        "wv": jax.random.normal(ks[6], (dim, dim), jnp.float32) * 0.5,
        "bv": jax.random.normal(ks[7], (dim,), jnp.float32) * 0.1,
    }
    x = jax.random.normal(ks[8], (B, dim, H, W), jnp.float32)

    out = mhsa_forward(x, params, head)
    jax.block_until_ready(out)

    ref = mhsa_reference(x, params, head)
    assert out.shape == (B, dim, H // 2, W // 2)
    np.testing.assert_allclose(np.asarray(out), np.asarray(ref),
                               rtol=2e-4, atol=2e-4)
    print("KERNEL_OK")
</pallas_src>

<mosaic_0001>
module attributes {stable_mosaic.version = 11 : i64} {
  func.func @_mhsa_kernel(%arg0: i32, %arg1: memref<1x4x256xf32, #tpu.memory_space<vmem>>, %arg2: memref<1x256x4xf32, #tpu.memory_space<vmem>>, %arg3: memref<4x4xf32, #tpu.memory_space<vmem>>, %arg4: memref<4x4xf32, #tpu.memory_space<vmem>>, %arg5: memref<4x4xf32, #tpu.memory_space<vmem>>, %arg6: memref<4x1xf32, #tpu.memory_space<vmem>>, %arg7: memref<1x4xf32, #tpu.memory_space<vmem>>, %arg8: memref<1x4xf32, #tpu.memory_space<vmem>>, %arg9: memref<256x4xf32, #tpu.memory_space<vmem>>, %arg10: memref<64x256xf32, #tpu.memory_space<vmem>>, %arg11: memref<1x2x64x2xf32, #tpu.memory_space<vmem>>) attributes {dimension_semantics = [#tpu.dimension_semantics<parallel>], iteration_bounds = array<i64: 2>, scalar_prefetch = 0 : i64, scratch_operands = 0 : i64, tpu.core_type = #tpu.core_type<tc>, window_params = [{transform_indices = @transform_0, window_bounds = array<i64: 1, 4, 256>}, {transform_indices = @transform_1, window_bounds = array<i64: 1, 256, 4>}, {pipeline_mode = #tpu.pipeline_mode<synchronous>, transform_indices = @transform_2, window_bounds = array<i64: 4, 4>}, {pipeline_mode = #tpu.pipeline_mode<synchronous>, transform_indices = @transform_3, window_bounds = array<i64: 4, 4>}, {pipeline_mode = #tpu.pipeline_mode<synchronous>, transform_indices = @transform_4, window_bounds = array<i64: 4, 4>}, {pipeline_mode = #tpu.pipeline_mode<synchronous>, transform_indices = @transform_5, window_bounds = array<i64: 4, 1>}, {pipeline_mode = #tpu.pipeline_mode<synchronous>, transform_indices = @transform_6, window_bounds = array<i64: 1, 4>}, {pipeline_mode = #tpu.pipeline_mode<synchronous>, transform_indices = @transform_7, window_bounds = array<i64: 1, 4>}, {pipeline_mode = #tpu.pipeline_mode<synchronous>, transform_indices = @transform_8, window_bounds = array<i64: 256, 4>}, {pipeline_mode = #tpu.pipeline_mode<synchronous>, transform_indices = @transform_9, window_bounds = array<i64: 64, 256>}, {transform_indices = @transform_10, window_bounds = array<i64: 1, 2, 64, 2>}]} {
    %c0 = arith.constant 0 : index
    %c0_0 = arith.constant 0 : index
    %c0_1 = arith.constant 0 : index
    %0 = vector.load %arg1[%c0, %c0_0, %c0_1] : memref<1x4x256xf32, #tpu.memory_space<vmem>>, vector<1x4x256xf32>
    %1 = vector.shape_cast %0 : vector<1x4x256xf32> to vector<4x256xf32>
    %c0_2 = arith.constant 0 : index
    %c0_3 = arith.constant 0 : index
    %c0_4 = arith.constant 0 : index
    %2 = vector.load %arg2[%c0_2, %c0_3, %c0_4] : memref<1x256x4xf32, #tpu.memory_space<vmem>>, vector<1x256x4xf32>
    %3 = vector.shape_cast %2 : vector<1x256x4xf32> to vector<256x4xf32>
    %c0_5 = arith.constant 0 : index
    %c0_6 = arith.constant 0 : index
    %4 = vector.load %arg3[%c0_5, %c0_6] : memref<4x4xf32, #tpu.memory_space<vmem>>, vector<4x4xf32>
    %cst = arith.constant dense<0.000000e+00> : vector<4x256xf32>
    %5 = tpu.matmul %4, %1, %cst {dimension_numbers = #tpu.dot_dimension_numbers<[1], [0], [0], [1], [0, 0, 1, 1], [], []>} : vector<4x4xf32>, vector<4x256xf32>, vector<4x256xf32> -> vector<4x256xf32>
    %c0_7 = arith.constant 0 : index
    %c0_8 = arith.constant 0 : index
    %6 = vector.load %arg6[%c0_7, %c0_8] : memref<4x1xf32, #tpu.memory_space<vmem>>, vector<4x1xf32>
    %7 = vector.broadcast %6 : vector<4x1xf32> to vector<4x256xf32>
    %8 = arith.addf %5, %7 : vector<4x256xf32>
    %c0_9 = arith.constant 0 : index
    %c0_10 = arith.constant 0 : index
    %9 = vector.load %arg4[%c0_9, %c0_10] : memref<4x4xf32, #tpu.memory_space<vmem>>, vector<4x4xf32>
    %cst_11 = arith.constant dense<0.000000e+00> : vector<256x4xf32>
    %10 = tpu.matmul %3, %9, %cst_11 {dimension_numbers = #tpu.dot_dimension_numbers<[1], [0], [0], [1], [0, 0, 1, 1], [], []>} : vector<256x4xf32>, vector<4x4xf32>, vector<256x4xf32> -> vector<256x4xf32>
    %c0_12 = arith.constant 0 : index
    %c0_13 = arith.constant 0 : index
    %11 = vector.load %arg7[%c0_12, %c0_13] : memref<1x4xf32, #tpu.memory_space<vmem>>, vector<1x4xf32>
    %12 = vector.broadcast %11 : vector<1x4xf32> to vector<256x4xf32>
    %13 = arith.addf %10, %12 : vector<256x4xf32>
    %c0_14 = arith.constant 0 : index
    %c0_15 = arith.constant 0 : index
    %14 = vector.load %arg9[%c0_14, %c0_15] : memref<256x4xf32, #tpu.memory_space<vmem>>, vector<256x4xf32>
    %15 = arith.addf %13, %14 : vector<256x4xf32>
    %c0_16 = arith.constant 0 : index
    %c0_17 = arith.constant 0 : index
    %16 = vector.load %arg5[%c0_16, %c0_17] : memref<4x4xf32, #tpu.memory_space<vmem>>, vector<4x4xf32>
    %cst_18 = arith.constant dense<0.000000e+00> : vector<256x4xf32>
    %17 = tpu.matmul %3, %16, %cst_18 {dimension_numbers = #tpu.dot_dimension_numbers<[1], [0], [0], [1], [0, 0, 1, 1], [], []>} : vector<256x4xf32>, vector<4x4xf32>, vector<256x4xf32> -> vector<256x4xf32>
    %c0_19 = arith.constant 0 : index
    %c0_20 = arith.constant 0 : index
    %18 = vector.load %arg8[%c0_19, %c0_20] : memref<1x4xf32, #tpu.memory_space<vmem>>, vector<1x4xf32>
    %19 = vector.broadcast %18 : vector<1x4xf32> to vector<256x4xf32>
    %20 = arith.addf %17, %19 : vector<256x4xf32>
    %c0_21 = arith.constant 0 : index
    %c0_22 = arith.constant 0 : index
    %21 = vector.load %arg10[%c0_21, %c0_22] : memref<64x256xf32, #tpu.memory_space<vmem>>, vector<64x256xf32>
    %22 = vector.extract_strided_slice %8 {offsets = [0, 0], sizes = [2, 256], strides = [1, 1]} : vector<4x256xf32> to vector<2x256xf32>
    %23 = vector.extract_strided_slice %15 {offsets = [0, 0], sizes = [256, 2], strides = [1, 1]} : vector<256x4xf32> to vector<256x2xf32>
    %24 = vector.extract_strided_slice %20 {offsets = [0, 0], sizes = [256, 2], strides = [1, 1]} : vector<256x4xf32> to vector<256x2xf32>
    %cst_23 = arith.constant dense<0.000000e+00> : vector<256x256xf32>
    %25 = tpu.matmul %23, %22, %cst_23 {dimension_numbers = #tpu.dot_dimension_numbers<[1], [0], [0], [1], [0, 0, 1, 1], [], []>} : vector<256x2xf32>, vector<2x256xf32>, vector<256x256xf32> -> vector<256x256xf32>
    %26 = vector.shape_cast %25 : vector<256x256xf32> to vector<1x256x256xf32>
    %cst_24 = arith.constant dense<0xFF800000> : vector<1xf32>
    %27 = vector.multi_reduction <maximumf>, %26, %cst_24 [1, 2] : vector<1x256x256xf32> to vector<1xf32>
    %28 = vector.shape_cast %27 : vector<1xf32> to vector<1x1x1xf32>
    %29 = vector.extract %28[0, 0, 0] : f32 from vector<1x1x1xf32>
    %30 = vector.broadcast %29 : f32 to vector<256x256xf32>
    %31 = arith.subf %25, %30 : vector<256x256xf32>
    %32 = math.exp %31 : vector<256x256xf32>
    %33 = vector.shape_cast %32 : vector<256x256xf32> to vector<1x256x256xf32>
    %cst_25 = arith.constant dense<0.000000e+00> : vector<1xf32>
    %34 = vector.multi_reduction <add>, %33, %cst_25 [1, 2] : vector<1x256x256xf32> to vector<1xf32>
    %35 = vector.shape_cast %34 : vector<1xf32> to vector<1x1x1xf32>
    %36 = vector.extract %35[0, 0, 0] : f32 from vector<1x1x1xf32>
    %cst_26 = arith.constant dense<0.000000e+00> : vector<256x2xf32>
    %37 = tpu.matmul %32, %24, %cst_26 {dimension_numbers = #tpu.dot_dimension_numbers<[1], [0], [0], [1], [0, 0, 1, 1], [], []>} : vector<256x256xf32>, vector<256x2xf32>, vector<256x2xf32> -> vector<256x2xf32>
    %cst_27 = arith.constant dense<0.000000e+00> : vector<64x2xf32>
    %38 = tpu.matmul %21, %37, %cst_27 {dimension_numbers = #tpu.dot_dimension_numbers<[1], [0], [0], [1], [0, 0, 1, 1], [], []>} : vector<64x256xf32>, vector<256x2xf32>, vector<64x2xf32> -> vector<64x2xf32>
    %39 = vector.extract_strided_slice %8 {offsets = [2, 0], sizes = [2, 256], strides = [1, 1]} : vector<4x256xf32> to vector<2x256xf32>
    %40 = vector.extract_strided_slice %15 {offsets = [0, 2], sizes = [256, 2], strides = [1, 1]} : vector<256x4xf32> to vector<256x2xf32>
    %41 = vector.extract_strided_slice %20 {offsets = [0, 2], sizes = [256, 2], strides = [1, 1]} : vector<256x4xf32> to vector<256x2xf32>
    %cst_28 = arith.constant dense<0.000000e+00> : vector<256x256xf32>
    %42 = tpu.matmul %40, %39, %cst_28 {dimension_numbers = #tpu.dot_dimension_numbers<[1], [0], [0], [1], [0, 0, 1, 1], [], []>} : vector<256x2xf32>, vector<2x256xf32>, vector<256x256xf32> -> vector<256x256xf32>
    %43 = vector.shape_cast %42 : vector<256x256xf32> to vector<1x256x256xf32>
    %cst_29 = arith.constant dense<0xFF800000> : vector<1xf32>
    %44 = vector.multi_reduction <maximumf>, %43, %cst_29 [1, 2] : vector<1x256x256xf32> to vector<1xf32>
    %45 = vector.shape_cast %44 : vector<1xf32> to vector<1x1x1xf32>
    %46 = vector.extract %45[0, 0, 0] : f32 from vector<1x1x1xf32>
    %47 = vector.broadcast %46 : f32 to vector<256x256xf32>
    %48 = arith.subf %42, %47 : vector<256x256xf32>
    %49 = math.exp %48 : vector<256x256xf32>
    %50 = vector.shape_cast %49 : vector<256x256xf32> to vector<1x256x256xf32>
    %cst_30 = arith.constant dense<0.000000e+00> : vector<1xf32>
    %51 = vector.multi_reduction <add>, %50, %cst_30 [1, 2] : vector<1x256x256xf32> to vector<1xf32>
    %52 = vector.shape_cast %51 : vector<1xf32> to vector<1x1x1xf32>
    %53 = vector.extract %52[0, 0, 0] : f32 from vector<1x1x1xf32>
    %cst_31 = arith.constant dense<0.000000e+00> : vector<256x2xf32>
    %54 = tpu.matmul %49, %41, %cst_31 {dimension_numbers = #tpu.dot_dimension_numbers<[1], [0], [0], [1], [0, 0, 1, 1], [], []>} : vector<256x256xf32>, vector<256x2xf32>, vector<256x2xf32> -> vector<256x2xf32>
    %cst_32 = arith.constant dense<0.000000e+00> : vector<64x2xf32>
    %55 = tpu.matmul %21, %54, %cst_32 {dimension_numbers = #tpu.dot_dimension_numbers<[1], [0], [0], [1], [0, 0, 1, 1], [], []>} : vector<64x256xf32>, vector<256x2xf32>, vector<64x2xf32> -> vector<64x2xf32>
    %56 = arith.maximumf %29, %46 : f32
    %57 = arith.subf %29, %56 : f32
    %58 = math.exp %57 : f32
    %59 = arith.subf %46, %56 : f32
    %60 = math.exp %59 : f32
    %61 = arith.mulf %58, %36 : f32
    %62 = arith.mulf %60, %53 : f32
    %63 = arith.addf %61, %62 : f32
    %cst_33 = arith.constant 1.000000e+00 : f32
    %64 = arith.divf %cst_33, %63 : f32
    %65 = arith.mulf %58, %64 : f32
    %66 = vector.broadcast %65 : f32 to vector<64x2xf32>
    %67 = arith.mulf %38, %66 : vector<64x2xf32>
    %c0_34 = arith.constant 0 : index
    %c0_35 = arith.constant 0 : index
    %c0_36 = arith.constant 0 : index
    %c0_37 = arith.constant 0 : index
    %68 = vector.load %arg11[%c0_34, %c0_35, %c0_36, %c0_37] : memref<1x2x64x2xf32, #tpu.memory_space<vmem>>, vector<1x1x64x2xf32>
    %69 = vector.shape_cast %68 : vector<1x1x64x2xf32> to vector<64x2xf32>
    %70 = vector.shape_cast %67 : vector<64x2xf32> to vector<1x1x64x2xf32>
    tpu.vector_store %arg11[%c0_34, %c0_35, %c0_36, %c0_37], %70 {strides = array<i32>} : memref<1x2x64x2xf32, #tpu.memory_space<vmem>>, vector<1x1x64x2xf32>,
    %71 = arith.mulf %60, %64 : f32
    %72 = vector.broadcast %71 : f32 to vector<64x2xf32>
    %73 = arith.mulf %55, %72 : vector<64x2xf32>
    %c0_38 = arith.constant 0 : index
    %c1 = arith.constant 1 : index
    %c0_39 = arith.constant 0 : index
    %c0_40 = arith.constant 0 : index
    %74 = vector.load %arg11[%c0_38, %c1, %c0_39, %c0_40] : memref<1x2x64x2xf32, #tpu.memory_space<vmem>>, vector<1x1x64x2xf32>
    %75 = vector.shape_cast %74 : vector<1x1x64x2xf32> to vector<64x2xf32>
    %76 = vector.shape_cast %73 : vector<64x2xf32> to vector<1x1x64x2xf32>
    tpu.vector_store %arg11[%c0_38, %c1, %c0_39, %c0_40], %76 {strides = array<i32>} : memref<1x2x64x2xf32, #tpu.memory_space<vmem>>, vector<1x1x64x2xf32>,
    return
  }
  func.func @transform_0(%arg0: i32) -> (i32, i32, i32) {
    %c0_i32 = arith.constant 0 : i32
    %c0_i32_0 = arith.constant 0 : i32
    %c0_i32_1 = arith.constant 0 : i32
    return %arg0, %c0_i32, %c0_i32_0 : i32, i32, i32
  }
  func.func @transform_1(%arg0: i32) -> (i32, i32, i32) {
    %c0_i32 = arith.constant 0 : i32
    %c0_i32_0 = arith.constant 0 : i32
    %c0_i32_1 = arith.constant 0 : i32
    return %arg0, %c0_i32, %c0_i32_0 : i32, i32, i32
  }
  func.func @transform_2(%arg0: i32) -> (i32, i32) {
    %c0_i32 = arith.constant 0 : i32
    %c0_i32_0 = arith.constant 0 : i32
    %c0_i32_1 = arith.constant 0 : i32
    return %c0_i32, %c0_i32_0 : i32, i32
  }
  func.func @transform_3(%arg0: i32) -> (i32, i32) {
    %c0_i32 = arith.constant 0 : i32
    %c0_i32_0 = arith.constant 0 : i32
    %c0_i32_1 = arith.constant 0 : i32
    return %c0_i32, %c0_i32_0 : i32, i32
  }
  func.func @transform_4(%arg0: i32) -> (i32, i32) {
    %c0_i32 = arith.constant 0 : i32
    %c0_i32_0 = arith.constant 0 : i32
    %c0_i32_1 = arith.constant 0 : i32
    return %c0_i32, %c0_i32_0 : i32, i32
  }
  func.func @transform_5(%arg0: i32) -> (i32, i32) {
    %c0_i32 = arith.constant 0 : i32
    %c0_i32_0 = arith.constant 0 : i32
    %c0_i32_1 = arith.constant 0 : i32
    return %c0_i32, %c0_i32_0 : i32, i32
  }
  func.func @transform_6(%arg0: i32) -> (i32, i32) {
    %c0_i32 = arith.constant 0 : i32
    %c0_i32_0 = arith.constant 0 : i32
    %c0_i32_1 = arith.constant 0 : i32
    return %c0_i32, %c0_i32_0 : i32, i32
  }
  func.func @transform_7(%arg0: i32) -> (i32, i32) {
    %c0_i32 = arith.constant 0 : i32
    %c0_i32_0 = arith.constant 0 : i32
    %c0_i32_1 = arith.constant 0 : i32
    return %c0_i32, %c0_i32_0 : i32, i32
  }
  func.func @transform_8(%arg0: i32) -> (i32, i32) {
    %c0_i32 = arith.constant 0 : i32
    %c0_i32_0 = arith.constant 0 : i32
    %c0_i32_1 = arith.constant 0 : i32
    return %c0_i32, %c0_i32_0 : i32, i32
  }
  func.func @transform_9(%arg0: i32) -> (i32, i32) {
    %c0_i32 = arith.constant 0 : i32
    %c0_i32_0 = arith.constant 0 : i32
    %c0_i32_1 = arith.constant 0 : i32
    return %c0_i32, %c0_i32_0 : i32, i32
  }
  func.func @transform_10(%arg0: i32) -> (i32, i32, i32, i32) {
    %c0_i32 = arith.constant 0 : i32
    %c0_i32_0 = arith.constant 0 : i32
    %c0_i32_1 = arith.constant 0 : i32
    %c0_i32_2 = arith.constant 0 : i32
    return %arg0, %c0_i32, %c0_i32_0, %c0_i32_1 : i32, i32, i32, i32
  }
}

</mosaic_0001>

<llo_original>
// kernel: tpu_custom_call.1
$region0: #{tpu_custom_call.1}
  #allocation0 [shape = 'u32[]', space=smem, size = 0x4, offset = 0x4, fixed_abs, tag = 'smem constant byte address 0x4 - core index']
  #allocation1 [shape = 'u32[144,128]{1,0:T(1,128)}', space=vmem, size = 0x12000, scoped, tag = 'internal scratch']
  %s0 = inlined_call_operand.vmem [shape: f32[2,4,256], index: 0, kind: input, shape index: {}]
  %s1 = inlined_call_operand.vmem [shape: f32[2,256,4], index: 1, kind: input, shape index: {}]
  %s2 = inlined_call_operand.vmem [shape: f32[4,4], index: 2, kind: input, shape index: {}]
  %s3 = inlined_call_operand.vmem [shape: f32[4,4], index: 3, kind: input, shape index: {}]
  %s4 = inlined_call_operand.vmem [shape: f32[4,4], index: 4, kind: input, shape index: {}]
  %s5 = inlined_call_operand.vmem [shape: f32[4,1], index: 5, kind: input, shape index: {}]
  %s6 = inlined_call_operand.vmem [shape: f32[1,4], index: 6, kind: input, shape index: {}]
  %s7 = inlined_call_operand.vmem [shape: f32[1,4], index: 7, kind: input, shape index: {}]
  %s8 = inlined_call_operand.vmem [shape: f32[256,4], index: 8, kind: input, shape index: {}]
  %s9 = inlined_call_operand.vmem [shape: f32[64,256], index: 9, kind: input, shape index: {}]
  %s10 = inlined_call_operand.vmem [shape: f32[2,2,64,2], index: 10, kind: output, shape index: {}]
  %s11 = sld [smem:[#allocation0]]
  $region73: #{tpu_custom_call.1} parent=0
    _
  %s13 = ssub.s32 1, %s11
  %s14 = scalar_select 0, %s13, %s11
  loop: start=0, step=1, limit=4
  $region2: #{tpu_custom_call.1} parent=0 // loop_pre_header
    _
  $region3: #{tpu_custom_call.1} parent=0 // loop_header
    %s16 = sphi 0, %s20
    %p17 = scmp.ge.s32.totalorder %s16, 4
    %s26 = sphi 0, %s28
    %s29 = sphi 0, %s26
    %s30 = sphi 0, %s29
    %s46 = sphi 0, %s30
    %s52 = sphi 0, %s54
    %s55 = sphi 0, %s52
    %s56 = sphi 0, %s55
    %s72 = sphi 0, %s56
    %s76 = sphi 0, %s76
    %s78 = sphi 0, %s76
    %s79 = sphi 0, %s78
    %s93 = sphi 0, %s79
    %s97 = sphi 0, %s97
    %s99 = sphi 0, %s97
    %s100 = sphi 0, %s99
    %s114 = sphi 0, %s100
    %s118 = sphi 0, %s118
    %s120 = sphi 0, %s118
    %s121 = sphi 0, %s120
    %s135 = sphi 0, %s121
    %s139 = sphi 0, %s139
    %s141 = sphi 0, %s139
    %s142 = sphi 0, %s141
    %s156 = sphi 0, %s142
    %s160 = sphi 0, %s160
    %s162 = sphi 0, %s160
    %s163 = sphi 0, %s162
    %s177 = sphi 0, %s163
    %s181 = sphi 0, %s181
    %s183 = sphi 0, %s181
    %s184 = sphi 0, %s183
    %s198 = sphi 0, %s184
    %s202 = sphi 0, %s202
    %s204 = sphi 0, %s202
    %s205 = sphi 0, %s204
    %s219 = sphi 0, %s205
    %s223 = sphi 0, %s223
    %s225 = sphi 0, %s223
    %s226 = sphi 0, %s225
    %s240 = sphi 0, %s226
    %s246 = sphi 0, %s248
    %s249 = sphi 0, %s246
    %s250 = sphi 0, %s249
    %s266 = sphi 0, %s250
  $region4: #{tpu_custom_call.1} parent=0 // loop_header_branch
    %19 = sbr.rel (%p17) target = $region8
  $region5: #{tpu_custom_call.1} parent=0 // loop_body
    %s21 = ssub.s32 %s16, 1
    %s22 = ssub.s32 %s16, 2
    %s23 = sadd.s32 %s16, 1
    %s24 = ssub.s32 %s16, %s23
    %p25 = scmp.eq.s32.totalorder %s24, 0
    %s27 = sadd.s32 %s26, 1
    %s28 = scalar_select %p25, %s26, %s27
    %p31 = pneg %p25
    %p32 = scmp.eq.s32.totalorder %s16, 1
    %p33 = por %p31, %p32
    %p34 = scmp.ne.s32.totalorder %s26, %s29
    %p35 = scmp.eq.s32.totalorder %s16, 0
    %p36 = por %p34, %p35
    %p37 = scmp.ne.s32.totalorder %s26, %s29
    %p38 = scmp.eq.s32.totalorder %s21, 1
    %p39 = por %p37, %p38
    %p40 = scmp.ne.s32.totalorder %s29, %s30
    %p41 = scmp.eq.s32.totalorder %s21, 0
    %p42 = por %p40, %p41
    %p43 = scmp.ne.s32.totalorder %s29, %s30
    %p44 = scmp.eq.s32.totalorder %s22, 1
    %p45 = por %p43, %p44
    %p47 = scmp.ne.s32.totalorder %s30, %s46
    %p48 = scmp.eq.s32.totalorder %s22, 0
    %p49 = por %p47, %p48
    %s50 = ssub.s32 %s16, %s23
    %p51 = scmp.eq.s32.totalorder %s50, 0
    %s53 = sadd.s32 %s52, 1
    %s54 = scalar_select %p51, %s52, %s53
    %p57 = pneg %p51
    %p58 = scmp.eq.s32.totalorder %s16, 1
    %p59 = por %p57, %p58
    %p60 = scmp.ne.s32.totalorder %s52, %s55
    %p61 = scmp.eq.s32.totalorder %s16, 0
    %p62 = por %p60, %p61
    %p63 = scmp.ne.s32.totalorder %s52, %s55
    %p64 = scmp.eq.s32.totalorder %s21, 1
    %p65 = por %p63, %p64
    %p66 = scmp.ne.s32.totalorder %s55, %s56
    %p67 = scmp.eq.s32.totalorder %s21, 0
    %p68 = por %p66, %p67
    %p69 = scmp.ne.s32.totalorder %s55, %s56
    %p70 = scmp.eq.s32.totalorder %s22, 1
    %p71 = por %p69, %p70
    %p73 = scmp.ne.s32.totalorder %s56, %s72
    %p74 = scmp.eq.s32.totalorder %s22, 0
    %p75 = por %p73, %p74
    %s77 = sadd.s32 %s76, 1
    %p80 = scmp.eq.s32.totalorder %s16, 1
    %p81 = scmp.ne.s32.totalorder %s76, %s78
    %p82 = scmp.eq.s32.totalorder %s16, 0
    %p83 = por %p81, %p82
    %p84 = scmp.ne.s32.totalorder %s76, %s78
    %p85 = scmp.eq.s32.totalorder %s21, 1
    %p86 = por %p84, %p85
    %p87 = scmp.ne.s32.totalorder %s78, %s79
    %p88 = scmp.eq.s32.totalorder %s21, 0
    %p89 = por %p87, %p88
    %p90 = scmp.ne.s32.totalorder %s78, %s79
    %p91 = scmp.eq.s32.totalorder %s22, 1
    %p92 = por %p90, %p91
    %p94 = scmp.ne.s32.totalorder %s79, %s93
    %p95 = scmp.eq.s32.totalorder %s22, 0
    %p96 = por %p94, %p95
    %s98 = sadd.s32 %s97, 1
    %p101 = scmp.eq.s32.totalorder %s16, 1
    %p102 = scmp.ne.s32.totalorder %s97, %s99
    %p103 = scmp.eq.s32.totalorder %s16, 0
    %p104 = por %p102, %p103
    %p105 = scmp.ne.s32.totalorder %s97, %s99
    %p106 = scmp.eq.s32.totalorder %s21, 1
    %p107 = por %p105, %p106
    %p108 = scmp.ne.s32.totalorder %s99, %s100
    %p109 = scmp.eq.s32.totalorder %s21, 0
    %p110 = por %p108, %p109
    %p111 = scmp.ne.s32.totalorder %s99, %s100
    %p112 = scmp.eq.s32.totalorder %s22, 1
    %p113 = por %p111, %p112
    %p115 = scmp.ne.s32.totalorder %s100, %s114
    %p116 = scmp.eq.s32.totalorder %s22, 0
    %p117 = por %p115, %p116
    %s119 = sadd.s32 %s118, 1
    %p122 = scmp.eq.s32.totalorder %s16, 1
    %p123 = scmp.ne.s32.totalorder %s118, %s120
    %p124 = scmp.eq.s32.totalorder %s16, 0
    %p125 = por %p123, %p124
    %p126 = scmp.ne.s32.totalorder %s118, %s120
    %p127 = scmp.eq.s32.totalorder %s21, 1
    %p128 = por %p126, %p127
    %p129 = scmp.ne.s32.totalorder %s120, %s121
    %p130 = scmp.eq.s32.totalorder %s21, 0
    %p131 = por %p129, %p130
    %p132 = scmp.ne.s32.totalorder %s120, %s121
    %p133 = scmp.eq.s32.totalorder %s22, 1
    %p134 = por %p132, %p133
    %p136 = scmp.ne.s32.totalorder %s121, %s135
    %p137 = scmp.eq.s32.totalorder %s22, 0
    %p138 = por %p136, %p137
    %s140 = sadd.s32 %s139, 1
    %p143 = scmp.eq.s32.totalorder %s16, 1
    %p144 = scmp.ne.s32.totalorder %s139, %s141
    %p145 = scmp.eq.s32.totalorder %s16, 0
    %p146 = por %p144, %p145
    %p147 = scmp.ne.s32.totalorder %s139, %s141
    %p148 = scmp.eq.s32.totalorder %s21, 1
    %p149 = por %p147, %p148
    %p150 = scmp.ne.s32.totalorder %s141, %s142
    %p151 = scmp.eq.s32.totalorder %s21, 0
    %p152 = por %p150, %p151
    %p153 = scmp.ne.s32.totalorder %s141, %s142
    %p154 = scmp.eq.s32.totalorder %s22, 1
    %p155 = por %p153, %p154
    %p157 = scmp.ne.s32.totalorder %s142, %s156
    %p158 = scmp.eq.s32.totalorder %s22, 0
    %p159 = por %p157, %p158
    %s161 = sadd.s32 %s160, 1
    %p164 = scmp.eq.s32.totalorder %s16, 1
    %p165 = scmp.ne.s32.totalorder %s160, %s162
    %p166 = scmp.eq.s32.totalorder %s16, 0
    %p167 = por %p165, %p166
    %p168 = scmp.ne.s32.totalorder %s160, %s162
    %p169 = scmp.eq.s32.totalorder %s21, 1
    %p170 = por %p168, %p169
    %p171 = scmp.ne.s32.totalorder %s162, %s163
    %p172 = scmp.eq.s32.totalorder %s21, 0
    %p173 = por %p171, %p172
    %p174 = scmp.ne.s32.totalorder %s162, %s163
    %p175 = scmp.eq.s32.totalorder %s22, 1
    %p176 = por %p174, %p175
    %p178 = scmp.ne.s32.totalorder %s163, %s177
    %p179 = scmp.eq.s32.totalorder %s22, 0
    %p180 = por %p178, %p179
    %s182 = sadd.s32 %s181, 1
    %p185 = scmp.eq.s32.totalorder %s16, 1
    %p186 = scmp.ne.s32.totalorder %s181, %s183
    %p187 = scmp.eq.s32.totalorder %s16, 0
    %p188 = por %p186, %p187
    %p189 = scmp.ne.s32.totalorder %s181, %s183
    %p190 = scmp.eq.s32.totalorder %s21, 1
    %p191 = por %p189, %p190
    %p192 = scmp.ne.s32.totalorder %s183, %s184
    %p193 = scmp.eq.s32.totalorder %s21, 0
    %p194 = por %p192, %p193
    %p195 = scmp.ne.s32.totalorder %s183, %s184
    %p196 = scmp.eq.s32.totalorder %s22, 1
    %p197 = por %p195, %p196
    %p199 = scmp.ne.s32.totalorder %s184, %s198
    %p200 = scmp.eq.s32.totalorder %s22, 0
    %p201 = por %p199, %p200
    %s203 = sadd.s32 %s202, 1
    %p206 = scmp.eq.s32.totalorder %s16, 1
    %p207 = scmp.ne.s32.totalorder %s202, %s204
    %p208 = scmp.eq.s32.totalorder %s16, 0
    %p209 = por %p207, %p208
    %p210 = scmp.ne.s32.totalorder %s202, %s204
    %p211 = scmp.eq.s32.totalorder %s21, 1
    %p212 = por %p210, %p211
    %p213 = scmp.ne.s32.totalorder %s204, %s205
    %p214 = scmp.eq.s32.totalorder %s21, 0
    %p215 = por %p213, %p214
    %p216 = scmp.ne.s32.totalorder %s204, %s205
    %p217 = scmp.eq.s32.totalorder %s22, 1
    %p218 = por %p216, %p217
    %p220 = scmp.ne.s32.totalorder %s205, %s219
    %p221 = scmp.eq.s32.totalorder %s22, 0
    %p222 = por %p220, %p221
    %s224 = sadd.s32 %s223, 1
    %p227 = scmp.eq.s32.totalorder %s16, 1
    %p228 = scmp.ne.s32.totalorder %s223, %s225
    %p229 = scmp.eq.s32.totalorder %s16, 0
    %p230 = por %p228, %p229
    %p231 = scmp.ne.s32.totalorder %s223, %s225
    %p232 = scmp.eq.s32.totalorder %s21, 1
    %p233 = por %p231, %p232
    %p234 = scmp.ne.s32.totalorder %s225, %s226
    %p235 = scmp.eq.s32.totalorder %s21, 0
    %p236 = por %p234, %p235
    %p237 = scmp.ne.s32.totalorder %s225, %s226
    %p238 = scmp.eq.s32.totalorder %s22, 1
    %p239 = por %p237, %p238
    %p241 = scmp.ne.s32.totalorder %s226, %s240
    %p242 = scmp.eq.s32.totalorder %s22, 0
    %p243 = por %p241, %p242
    %s244 = ssub.s32 %s16, %s23
    %p245 = scmp.eq.s32.totalorder %s244, 0
    %s247 = sadd.s32 %s246, 1
    %s248 = scalar_select %p245, %s246, %s247
    %p251 = pneg %p245
    %p252 = scmp.eq.s32.totalorder %s16, 1
    %p253 = por %p251, %p252
    %p254 = scmp.ne.s32.totalorder %s246, %s249
    %p255 = scmp.eq.s32.totalorder %s16, 0
    %p256 = por %p254, %p255
    %p257 = scmp.ne.s32.totalorder %s246, %s249
    %p258 = scmp.eq.s32.totalorder %s21, 1
    %p259 = por %p257, %p258
    %p260 = scmp.ne.s32.totalorder %s249, %s250
    %p261 = scmp.eq.s32.totalorder %s21, 0
    %p262 = por %p260, %p261
    %p263 = scmp.ne.s32.totalorder %s249, %s250
    %p264 = scmp.eq.s32.totalorder %s22, 1
    %p265 = por %p263, %p264
    %p267 = scmp.ne.s32.totalorder %s250, %s266
    %p268 = scmp.eq.s32.totalorder %s22, 0
    %p269 = por %p267, %p268
    %p270 = scmp.le.s32.totalorder 1, %s16
    %p271 = scmp.lt.s32.totalorder %s16, 3
    %p272 = pnand %p270, %p271
    %p273 = pneg %p272
    // Predicated region
    $region9: #{tpu_custom_call.1} parent=5 // pred_check
      _
    $region10: #{tpu_custom_call.1} parent=5 // pred_check_branch
      %275 = sbr.rel (%p272) target = $region12
    $region11: #{tpu_custom_call.1} parent=5 // pred_region
      %s276 = ssub.s32 %s16, 1
      // Predicated region
      $region13: #{tpu_custom_call.1} parent=11 // pred_check
        %p277 = pneg %p89
      $region14: #{tpu_custom_call.1} parent=11 // pred_check_branch
        %279 = sbr.rel (%p277) target = $region16
      $region15: #{tpu_custom_call.1} parent=11 // pred_region
        _
      $region16: #{tpu_custom_call.1} parent=11 // pred_fallthru
        _
      // Predicated region
      $region17: #{tpu_custom_call.1} parent=11 // pred_check
        %p280 = pneg %p110
      $region18: #{tpu_custom_call.1} parent=11 // pred_check_branch
        %282 = sbr.rel (%p280) target = $region20
      $region19: #{tpu_custom_call.1} parent=11 // pred_region
        _
      $region20: #{tpu_custom_call.1} parent=11 // pred_fallthru
        _
      // Predicated region
      $region21: #{tpu_custom_call.1} parent=11 // pred_check
        %p283 = pneg %p131
      $region22: #{tpu_custom_call.1} parent=11 // pred_check_branch
        %285 = sbr.rel (%p283) target = $region24
      $region23: #{tpu_custom_call.1} parent=11 // pred_region
        _
      $region24: #{tpu_custom_call.1} parent=11 // pred_fallthru
        _
      // Predicated region
      $region25: #{tpu_custom_call.1} parent=11 // pred_check
        %p286 = pneg %p152
      $region26: #{tpu_custom_call.1} parent=11 // pred_check_branch
        %288 = sbr.rel (%p286) target = $region28
      $region27: #{tpu_custom_call.1} parent=11 // pred_region
        _
      $region28: #{tpu_custom_call.1} parent=11 // pred_fallthru
        _
      // Predicated region
      $region29: #{tpu_custom_call.1} parent=11 // pred_check
        %p289 = pneg %p173
      $region30: #{tpu_custom_call.1} parent=11 // pred_check_branch
        %291 = sbr.rel (%p289) target = $region32
      $region31: #{tpu_custom_call.1} parent=11 // pred_region
        _
      $region32: #{tpu_custom_call.1} parent=11 // pred_fallthru
        _
      // Predicated region
      $region33: #{tpu_custom_call.1} parent=11 // pred_check
        %p292 = pneg %p194
      $region34: #{tpu_custom_call.1} parent=11 // pred_check_branch
        %294 = sbr.rel (%p292) target = $region36
      $region35: #{tpu_custom_call.1} parent=11 // pred_region
        _
      $region36: #{tpu_custom_call.1} parent=11 // pred_fallthru
        _
      // Predicated region
      $region37: #{tpu_custom_call.1} parent=11 // pred_check
        %p295 = pneg %p215
      $region38: #{tpu_custom_call.1} parent=11 // pred_check_branch
        %297 = sbr.rel (%p295) target = $region40
      $region39: #{tpu_custom_call.1} parent=11 // pred_region
        _
      $region40: #{tpu_custom_call.1} parent=11 // pred_fallthru
        _
      // Predicated region
      $region41: #{tpu_custom_call.1} parent=11 // pred_check
        %p298 = pneg %p236
      $region42: #{tpu_custom_call.1} parent=11 // pred_check_branch
        %300 = sbr.rel (%p298) target = $region44
      $region43: #{tpu_custom_call.1} parent=11 // pred_region
        _
      $region44: #{tpu_custom_call.1} parent=11 // pred_fallthru
        _
    $region12: #{tpu_custom_call.1} parent=5 // pred_fallthru
      _
    %p301 = scmp.lt.s32.totalorder %s16, 2
    // Predicated region
    $region45: #{tpu_custom_call.1} parent=5 // pred_check
      %p302 = pneg %p301
    $region46: #{tpu_custom_call.1} parent=5 // pred_check_branch
      %304 = sbr.rel (%p302) target = $region48
    $region47: #{tpu_custom_call.1} parent=5 // pred_region
      // Predicated region
      $region49: #{tpu_custom_call.1} parent=47 // pred_check
        %p305 = pneg %p36
      $region50: #{tpu_custom_call.1} parent=47 // pred_check_branch
        %307 = sbr.rel (%p305) target = $region52
      $region51: #{tpu_custom_call.1} parent=47 // pred_region
        %p308 = scmp.lt.s32.totalorder %s16, 1
        %s309 = scalar_select %p308, %s16, 1
        %s310 = smul.addr %s309, 2
        %s311 = smul.addr %s310, 4
        %s312 = scalar_lea.vmem %s0, %s311
      $region52: #{tpu_custom_call.1} parent=47 // pred_fallthru
        _
      // Predicated region
      $region53: #{tpu_custom_call.1} parent=47 // pred_check
        %p313 = pneg %p62
      $region54: #{tpu_custom_call.1} parent=47 // pred_check_branch
        %315 = sbr.rel (%p313) target = $region56
      $region55: #{tpu_custom_call.1} parent=47 // pred_region
        %p316 = scmp.lt.s32.totalorder %s16, 1
        %s317 = scalar_select %p316, %s16, 1
        %s318 = smul.addr %s317, 32
        %s319 = smul.addr %s318, 8
        %s320 = scalar_lea.vmem %s1, %s319
      $region56: #{tpu_custom_call.1} parent=47 // pred_fallthru
        _
    $region48: #{tpu_custom_call.1} parent=5 // pred_fallthru
      _
    %p321 = scmp.le.s32.totalorder 1, %s16
    %p322 = scmp.lt.s32.totalorder %s16, 3
    %p323 = pnand %p321, %p322
    %p324 = pneg %p323
    // Predicated region
    $region57: #{tpu_custom_call.1} parent=5 // pred_check
      _
    $region58: #{tpu_custom_call.1} parent=5 // pred_check_branch
      %326 = sbr.rel (%p323) target = $region60
    $region59: #{tpu_custom_call.1} parent=5 // pred_region
      %s327 = ssub.s32 %s16, 1
      %p328 = scmp.lt.s32.totalorder %s21, 1
      %s329 = scalar_select %p328, %s21, 1
      %s330 = smul.addr %s329, 2
      %s331 = smul.addr %s330, 4
      %s332 = scalar_lea.vmem %s0, %s331
      %p333 = pneg %p42
      %p334 = pneg %p39
      %p335 = scmp.lt.s32.totalorder %s21, 1
      %s336 = scalar_select %p335, %s21, 1
      %s337 = smul.addr %s336, 32
      %s338 = smul.addr %s337, 8
      %s339 = scalar_lea.vmem %s1, %s338
      %p340 = pneg %p68
      %p341 = pneg %p65
      %p342 = pneg %p89
      %p343 = pneg %p86
      %p344 = pneg %p110
      %p345 = pneg %p107
      %p346 = pneg %p131
      %p347 = pneg %p128
      %p348 = pneg %p152
      %p349 = pneg %p149
      %p350 = pneg %p173
      %p351 = pneg %p170
      %p352 = pneg %p194
      %p353 = pneg %p191
      %p354 = pneg %p215
      %p355 = pneg %p212
      %p356 = pneg %p236
      %p357 = pneg %p233
      %p358 = pneg %p262
      %p359 = pneg %p259
      %p360 = scmp.lt.s32.totalorder %s21, 1
      %s361 = scalar_select %p360, %s21, 1
      %s362 = smul.addr %s361, 16
      %s363 = smul.addr %s362, 8
      %s364 = scalar_lea.vmem %s10, %s363
      %p365 = scmp.lt.s32.totalorder %s21, 1
      %s366 = scalar_select %p365, %s21, 1
      %s367 = smul.addr %s366, 2
      %s368 = smul.addr %s367, 4
      %s369 = scalar_lea.vmem %s0, %s368
      %p370 = scmp.lt.s32.totalorder %s21, 1
      %s371 = scalar_select %p370, %s21, 1
      %s372 = smul.addr %s371, 32
      %s373 = smul.addr %s372, 8
      %s374 = scalar_lea.vmem %s1, %s373
      %p375 = scmp.lt.s32.totalorder %s21, 1
      %s376 = scalar_select %p375, %s21, 1
      %s377 = smul.addr %s376, 16
      %s378 = smul.addr %s377, 8
      %s379 = scalar_lea.vmem %s10, %s378
      %v380 = vld [vmem:[%s369] sm:$0xff]
      %v381 = vld [vmem:[%s374] sm:$0xff]
      %v382 = vld [vmem:[%s374 + $0x8] sm:$0xff]
      %v383 = vld [vmem:[%s374 + $0x10] sm:$0xff]
      %v384 = vld [vmem:[%s374 + $0x18] sm:$0xff]
      %v385 = vld [vmem:[%s374 + $0x20] sm:$0xff]
      %v386 = vld [vmem:[%s374 + $0x28] sm:$0xff]
      %v387 = vld [vmem:[%s374 + $0x30] sm:$0xff]
      %v388 = vld [vmem:[%s374 + $0x38] sm:$0xff]
      %v389 = vld [vmem:[%s374 + $0x40] sm:$0xff]
      %v390 = vld [vmem:[%s374 + $0x48] sm:$0xff]
      %v391 = vld [vmem:[%s374 + $0x50] sm:$0xff]
      %v392 = vld [vmem:[%s374 + $0x58] sm:$0xff]
      %v393 = vld [vmem:[%s374 + $0x60] sm:$0xff]
      %v394 = vld [vmem:[%s374 + $0x68] sm:$0xff]
      %v395 = vld [vmem:[%s374 + $0x70] sm:$0xff]
      %v396 = vld [vmem:[%s374 + $0x78] sm:$0xff]
      %v397 = vld [vmem:[%s374 + $0x80] sm:$0xff]
      %v398 = vld [vmem:[%s374 + $0x88] sm:$0xff]
      %v399 = vld [vmem:[%s374 + $0x90] sm:$0xff]
      %v400 = vld [vmem:[%s374 + $0x98] sm:$0xff]
      %v401 = vld [vmem:[%s374 + $0xa0] sm:$0xff]
      %v402 = vld [vmem:[%s374 + $0xa8] sm:$0xff]
      %v403 = vld [vmem:[%s374 + $0xb0] sm:$0xff]
      %v404 = vld [vmem:[%s374 + $0xb8] sm:$0xff]
      %v405 = vld [vmem:[%s374 + $0xc0] sm:$0xff]
      %v406 = vld [vmem:[%s374 + $0xc8] sm:$0xff]
      %v407 = vld [vmem:[%s374 + $0xd0] sm:$0xff]
      %v408 = vld [vmem:[%s374 + $0xd8] sm:$0xff]
      %v409 = vld [vmem:[%s374 + $0xe0] sm:$0xff]
      %v410 = vld [vmem:[%s374 + $0xe8] sm:$0xff]
      %v411 = vld [vmem:[%s374 + $0xf0] sm:$0xff]
      %v412 = vld [vmem:[%s374 + $0xf8] sm:$0xff]
      %v413 = vld [vmem:[%s2] sm:$0xf]
      %v414 = vld [vmem:[%s5] sm:$0xf]
      %416 = vset.pattern.permute.xlu0 0
      %417 = vperm.xlu0 %416, %v414
      %v418 = vpop.permute.xlu0 %417
      %v421 = vcombine.high %v380, %v380
      %vm422 = vcmask 31744
      %v424 = vsel %vm422, %v413, 0
      %vm426 = vcmask 1043456
      %v427 = vsel %vm426, %v380, 0
      %v429 = vsel %vm426, %v421, 0
      %431 = vmatprep.subr.mxu0 %v429
      %432 = vmatpush1.msra.mxu0 %v427
      %433 = vmatprep.subr.mxu0 0.0
      %434 = vmatpush1.msra.mxu0 0.0
      %435 = vmatprep.subr.mxu0 0.0
      %436 = vmatpush1.msra.mxu0 0.0
      %437 = vmatprep.subr.mxu0 0.0
      %438 = vmatpush1.msra.mxu0 0.0
      %439 = vmatprep.subr.mxu0 0.0
      %440 = vmatpush1.msra.mxu0 0.0
      %441 = vmatprep.subr.mxu0 0.0
      %442 = vmatpush1.msra.mxu0 0.0
      %443 = vmatprep.subr.mxu0 0.0
      %444 = vmatpush1.msra.mxu0 0.0
      %445 = vmatprep.subr.mxu0 0.0
      %446 = vmatpush1.msra.mxu0 0.0
      %447 = vmatprep.subr.mxu0 0.0
      %448 = vmatpush1.msra.mxu0 0.0
      %449 = vmatprep.subr.mxu0 0.0
      %450 = vmatpush1.msra.mxu0 0.0
      %451 = vmatprep.subr.mxu0 0.0
      %452 = vmatpush1.msra.mxu0 0.0
      %453 = vmatprep.subr.mxu0 0.0
      %454 = vmatpush1.msra.mxu0 0.0
      %455 = vmatprep.subr.mxu0 0.0
      %456 = vmatpush1.msra.mxu0 0.0
      %457 = vmatprep.subr.mxu0 0.0
      %458 = vmatpush1.msra.mxu0 0.0
      %459 = vmatprep.subr.mxu0 0.0
      %460 = vmatpush1.msra.mxu0 0.0
      %461 = vmatprep.subr.mxu0 0.0
      %462 = vmatpush1.msra.mxu0 0.0
      %463 = vmatprep.subr.mxu0 0.0
      %464 = vmatpush1.msra.mxu0 0.0
      %465 = vmatprep.subr.mxu0 0.0
      %466 = vmatpush1.msra.mxu0 0.0
      %467 = vmatprep.subr.mxu0 0.0
      %468 = vmatpush1.msra.mxu0 0.0
      %469 = vmatprep.subr.mxu0 0.0
      %470 = vmatpush1.msra.mxu0 0.0
      %471 = vmatprep.subr.mxu0 0.0
      %472 = vmatpush1.msra.mxu0 0.0
      %473 = vmatprep.subr.mxu0 0.0
      %474 = vmatpush1.msra.mxu0 0.0
      %475 = vmatprep.subr.mxu0 0.0
      %476 = vmatpush1.msra.mxu0 0.0
      %477 = vmatprep.subr.mxu0 0.0
      %478 = vmatpush1.msra.mxu0 0.0
      %479 = vmatprep.subr.mxu0 0.0
      %480 = vmatpush1.msra.mxu0 0.0
      %481 = vmatprep.subr.mxu0 0.0
      %482 = vmatpush1.msra.mxu0 0.0
      %483 = vmatprep.subr.mxu0 0.0
      %484 = vmatpush1.msra.mxu0 0.0
      %485 = vmatprep.subr.mxu0 0.0
      %486 = vmatpush1.msra.mxu0 0.0
      %487 = vmatprep.subr.mxu0 0.0
      %488 = vmatpush1.msra.mxu0 0.0
      %489 = vmatprep.subr.mxu0 0.0
      %490 = vmatpush1.msra.mxu0 0.0
      %491 = vmatprep.subr.mxu0 0.0
      %492 = vmatpush1.msra.mxu0 0.0
      %493 = vmatprep.subr.mxu0 0.0
      %494 = vmatpush1.msra.mxu0 0.0
      %495 = vmatprep.mubr.f32.mxu0 0.0
      %496 = vmatmul.mubr.f32.gmra.mrb[0].mxu0 %v424
      %v497 = vpop.f32.mrb[0].mxu0
      %v498 = vadd.f32 %v418, %v497
      %v499 = vpop.f32.mrb[0].mxu0
      %v500 = vadd.f32 %v418, %v499
      %501 = vdwg.mxu0
      %v502 = vld [vmem:[%s3] sm:$0xf]
      %v503 = vld [vmem:[%s6] sm:$0x1]
      %v505 = vlaneseq
      %v506 = vshrl.u32 %v505, 7
      %v507 = vsub.s32 0, %v506
      %v508 = vrot.slane %v503, %v507
      %v511 = vsel %vm422, %v381, 0
      %v514 = vsel %vm422, %v382, 0
      %v517 = vsel %vm422, %v383, 0
      %v520 = vsel %vm422, %v384, 0
      %v523 = vsel %vm422, %v385, 0
      %v526 = vsel %vm422, %v386, 0
      %v529 = vsel %vm422, %v387, 0
      %v532 = vsel %vm422, %v388, 0
      %v535 = vsel %vm422, %v389, 0
      %v538 = vsel %vm422, %v390, 0
      %v541 = vsel %vm422, %v391, 0
      %v544 = vsel %vm422, %v392, 0
      %v547 = vsel %vm422, %v393, 0
      %v550 = vsel %vm422, %v394, 0
      %v553 = vsel %vm422, %v395, 0
      %v556 = vsel %vm422, %v396, 0
      %v559 = vsel %vm422, %v397, 0
      %v562 = vsel %vm422, %v398, 0
      %v565 = vsel %vm422, %v399, 0
      %v568 = vsel %vm422, %v400, 0
      %v571 = vsel %vm422, %v401, 0
      %v574 = vsel %vm422, %v402, 0
      %v577 = vsel %vm422, %v403, 0
      %v580 = vsel %vm422, %v404, 0
      %v583 = vsel %vm422, %v405, 0
      %v586 = vsel %vm422, %v406, 0
      %v589 = vsel %vm422, %v407, 0
      %v592 = vsel %vm422, %v408, 0
      %v595 = vsel %vm422, %v409, 0
      %v598 = vsel %vm422, %v410, 0
      %v601 = vsel %vm422, %v411, 0
      %v604 = vsel %vm422, %v412, 0
      %v607 = vsel %vm426, %v502, 0
      %609 = vmatprep.subr.mxu0 0.0
      %610 = vmatpush1.msra.mxu0 %v607
      %611 = vmatprep.subr.mxu0 0.0
      %612 = vmatpush1.msra.mxu0 0.0
      %613 = vmatprep.subr.mxu0 0.0
      %614 = vmatpush1.msra.mxu0 0.0
      %615 = vmatprep.subr.mxu0 0.0
      %616 = vmatpush1.msra.mxu0 0.0
      %617 = vmatprep.subr.mxu0 0.0
      %618 = vmatpush1.msra.mxu0 0.0
      %619 = vmatprep.subr.mxu0 0.0
      %620 = vmatpush1.msra.mxu0 0.0
      %621 = vmatprep.subr.mxu0 0.0
      %622 = vmatpush1.msra.mxu0 0.0
      %623 = vmatprep.subr.mxu0 0.0
      %624 = vmatpush1.msra.mxu0 0.0
      %625 = vmatprep.subr.mxu0 0.0
      %626 = vmatpush1.msra.mxu0 0.0
      %627 = vmatprep.subr.mxu0 0.0
      %628 = vmatpush1.msra.mxu0 0.0
      %629 = vmatprep.subr.mxu0 0.0
      %630 = vmatpush1.msra.mxu0 0.0
      %631 = vmatprep.subr.mxu0 0.0
      %632 = vmatpush1.msra.mxu0 0.0
      %633 = vmatprep.subr.mxu0 0.0
      %634 = vmatpush1.msra.mxu0 0.0
      %635 = vmatprep.subr.mxu0 0.0
      %636 = vmatpush1.msra.mxu0 0.0
      %637 = vmatprep.subr.mxu0 0.0
      %638 = vmatpush1.msra.mxu0 0.0
      %639 = vmatprep.subr.mxu0 0.0
      %640 = vmatpush1.msra.mxu0 0.0
      %641 = vmatprep.subr.mxu0 0.0
      %642 = vmatpush1.msra.mxu0 0.0
      %643 = vmatprep.subr.mxu0 0.0
      %644 = vmatpush1.msra.mxu0 0.0
      %645 = vmatprep.subr.mxu0 0.0
      %646 = vmatpush1.msra.mxu0 0.0
      %647 = vmatprep.subr.mxu0 0.0
      %648 = vmatpush1.msra.mxu0 0.0
      %649 = vmatprep.subr.mxu0 0.0
      %650 = vmatpush1.msra.mxu0 0.0
      %651 = vmatprep.subr.mxu0 0.0
      %652 = vmatpush1.msra.mxu0 0.0
      %653 = vmatprep.subr.mxu0 0.0
      %654 = vmatpush1.msra.mxu0 0.0
      %655 = vmatprep.subr.mxu0 0.0
      %656 = vmatpush1.msra.mxu0 0.0
      %657 = vmatprep.subr.mxu0 0.0
      %658 = vmatpush1.msra.mxu0 0.0
      %659 = vmatprep.subr.mxu0 0.0
      %660 = vmatpush1.msra.mxu0 0.0
      %661 = vmatprep.subr.mxu0 0.0
      %662 = vmatpush1.msra.mxu0 0.0
      %663 = vmatprep.subr.mxu0 0.0
      %664 = vmatpush1.msra.mxu0 0.0
      %665 = vmatprep.subr.mxu0 0.0
      %666 = vmatpush1.msra.mxu0 0.0
      %667 = vmatprep.subr.mxu0 0.0
      %668 = vmatpush1.msra.mxu0 0.0
      %669 = vmatprep.subr.mxu0 0.0
      %670 = vmatpush1.msra.mxu0 0.0
      %671 = vmatprep.subr.mxu0 0.0
      %672 = vmatpush1.msra.mxu0 0.0
      %673 = vmatprep.mubr.f32.mxu0 0.0
      %674 = vmatmul.mubr.f32.gmra.mrb[0].mxu0 %v511
      %v675 = vpop.f32.mrb[0].mxu0
      %v676 = vadd.f32 %v508, %v675
      %v677 = vpop.f32.mrb[0].mxu0
      %678 = vmatprep.mubr.f32.mxu0 0.0
      %679 = vmatmul.mubr.f32.gmra.mrb[0].mxu0 %v514
      %v680 = vpop.f32.mrb[0].mxu0
      %v681 = vadd.f32 %v508, %v680
      %v682 = vpop.f32.mrb[0].mxu0
      %683 = vmatprep.mubr.f32.mxu0 0.0
      %684 = vmatmul.mubr.f32.gmra.mrb[0].mxu0 %v517
      %v685 = vpop.f32.mrb[0].mxu0
      %v686 = vadd.f32 %v508, %v685
      %v687 = vpop.f32.mrb[0].mxu0
      %688 = vmatprep.mubr.f32.mxu0 0.0
      %689 = vmatmul.mubr.f32.gmra.mrb[0].mxu0 %v520
      %v690 = vpop.f32.mrb[0].mxu0
      %v691 = vadd.f32 %v508, %v690
      %v692 = vpop.f32.mrb[0].mxu0
      %693 = vmatprep.mubr.f32.mxu0 0.0
      %694 = vmatmul.mubr.f32.gmra.mrb[0].mxu0 %v523
      %v695 = vpop.f32.mrb[0].mxu0
      %v696 = vadd.f32 %v508, %v695
      %v697 = vpop.f32.mrb[0].mxu0
      %698 = vmatprep.mubr.f32.mxu0 0.0
      %699 = vmatmul.mubr.f32.gmra.mrb[0].mxu0 %v526
      %v700 = vpop.f32.mrb[0].mxu0
      %v701 = vadd.f32 %v508, %v700
      %v702 = vpop.f32.mrb[0].mxu0
      %703 = vmatprep.mubr.f32.mxu0 0.0
      %704 = vmatmul.mubr.f32.gmra.mrb[0].mxu0 %v529
      %v705 = vpop.f32.mrb[0].mxu0
      %v706 = vadd.f32 %v508, %v705
      %v707 = vpop.f32.mrb[0].mxu0
      %708 = vmatprep.mubr.f32.mxu0 0.0
      %709 = vmatmul.mubr.f32.gmra.mrb[0].mxu0 %v532
      %v710 = vpop.f32.mrb[0].mxu0
      %v711 = vadd.f32 %v508, %v710
      %v712 = vpop.f32.mrb[0].mxu0
      %713 = vmatprep.mubr.f32.mxu0 0.0
      %714 = vmatmul.mubr.f32.gmra.mrb[0].mxu0 %v535
      %v715 = vpop.f32.mrb[0].mxu0
      %v716 = vadd.f32 %v508, %v715
      %v717 = vpop.f32.mrb[0].mxu0
      %718 = vmatprep.mubr.f32.mxu0 0.0
      %719 = vmatmul.mubr.f32.gmra.mrb[0].mxu0 %v538
      %v720 = vpop.f32.mrb[0].mxu0
      %v721 = vadd.f32 %v508, %v720
      %v722 = vpop.f32.mrb[0].mxu0
      %723 = vmatprep.mubr.f32.mxu0 0.0
      %724 = vmatmul.mubr.f32.gmra.mrb[0].mxu0 %v541
      %v725 = vpop.f32.mrb[0].mxu0
      %v726 = vadd.f32 %v508, %v725
      %v727 = vpop.f32.mrb[0].mxu0
      %728 = vmatprep.mubr.f32.mxu0 0.0
      %729 = vmatmul.mubr.f32.gmra.mrb[0].mxu0 %v544
      %v730 = vpop.f32.mrb[0].mxu0
      %v731 = vadd.f32 %v508, %v730
      %v732 = vpop.f32.mrb[0].mxu0
      %733 = vmatprep.mubr.f32.mxu0 0.0
      %734 = vmatmul.mubr.f32.gmra.mrb[0].mxu0 %v547
      %v735 = vpop.f32.mrb[0].mxu0
      %v736 = vadd.f32 %v508, %v735
      %v737 = vpop.f32.mrb[0].mxu0
      %738 = vmatprep.mubr.f32.mxu0 0.0
      %739 = vmatmul.mubr.f32.gmra.mrb[0].mxu0 %v550
      %v740 = vpop.f32.mrb[0].mxu0
      %v741 = vadd.f32 %v508, %v740
      %v742 = vpop.f32.mrb[0].mxu0
      %743 = vmatprep.mubr.f32.mxu0 0.0
      %744 = vmatmul.mubr.f32.gmra.mrb[0].mxu0 %v553
      %v745 = vpop.f32.mrb[0].mxu0
      %v746 = vadd.f32 %v508, %v745
      %v747 = vpop.f32.mrb[0].mxu0
      %748 = vmatprep.mubr.f32.mxu0 0.0
      %749 = vmatmul.mubr.f32.gmra.mrb[0].mxu0 %v556
      %v750 = vpop.f32.mrb[0].mxu0
      %v751 = vadd.f32 %v508, %v750
      %v752 = vpop.f32.mrb[0].mxu0
      %753 = vmatprep.mubr.f32.mxu0 0.0
      %754 = vmatmul.mubr.f32.gmra.mrb[0].mxu0 %v559
      %v755 = vpop.f32.mrb[0].mxu0
      %v756 = vadd.f32 %v508, %v755
      %v757 = vpop.f32.mrb[0].mxu0
      %758 = vmatprep.mubr.f32.mxu0 0.0
      %759 = vmatmul.mubr.f32.gmra.mrb[0].mxu0 %v562
      %v760 = vpop.f32.mrb[0].mxu0
      %v761 = vadd.f32 %v508, %v760
      %v762 = vpop.f32.mrb[0].mxu0
      %763 = vmatprep.mubr.f32.mxu0 0.0
      %764 = vmatmul.mubr.f32.gmra.mrb[0].mxu0 %v565
      %v765 = vpop.f32.mrb[0].mxu0
      %v766 = vadd.f32 %v508, %v765
      %v767 = vpop.f32.mrb[0].mxu0
      %768 = vmatprep.mubr.f32.mxu0 0.0
      %769 = vmatmul.mubr.f32.gmra.mrb[0].mxu0 %v568
      %v770 = vpop.f32.mrb[0].mxu0
      %v771 = vadd.f32 %v508, %v770
      %v772 = vpop.f32.mrb[0].mxu0
      %773 = vmatprep.mubr.f32.mxu0 0.0
      %774 = vmatmul.mubr.f32.gmra.mrb[0].mxu0 %v571
      %v775 = vpop.f32.mrb[0].mxu0
      %v776 = vadd.f32 %v508, %v775
      %v777 = vpop.f32.mrb[0].mxu0
      %778 = vmatprep.mubr.f32.mxu0 0.0
      %779 = vmatmul.mubr.f32.gmra.mrb[0].mxu0 %v574
      %v780 = vpop.f32.mrb[0].mxu0
      %v781 = vadd.f32 %v508, %v780
      %v782 = vpop.f32.mrb[0].mxu0
      %783 = vmatprep.mubr.f32.mxu0 0.0
      %784 = vmatmul.mubr.f32.gmra.mrb[0].mxu0 %v577
      %v785 = vpop.f32.mrb[0].mxu0
      %v786 = vadd.f32 %v508, %v785
      %v787 = vpop.f32.mrb[0].mxu0
      %788 = vmatprep.mubr.f32.mxu0 0.0
      %789 = vmatmul.mubr.f32.gmra.mrb[0].mxu0 %v580
      %v790 = vpop.f32.mrb[0].mxu0
      %v791 = vadd.f32 %v508, %v790
      %v792 = vpop.f32.mrb[0].mxu0
      %793 = vmatprep.mubr.f32.mxu0 0.0
      %794 = vmatmul.mubr.f32.gmra.mrb[0].mxu0 %v583
      %v795 = vpop.f32.mrb[0].mxu0
      %v796 = vadd.f32 %v508, %v795
      %v797 = vpop.f32.mrb[0].mxu0
      %798 = vmatprep.mubr.f32.mxu0 0.0
      %799 = vmatmul.mubr.f32.gmra.mrb[0].mxu0 %v586
      %v800 = vpop.f32.mrb[0].mxu0
      %v801 = vadd.f32 %v508, %v800
      %v802 = vpop.f32.mrb[0].mxu0
      %803 = vmatprep.mubr.f32.mxu0 0.0
      %804 = vmatmul.mubr.f32.gmra.mrb[0].mxu0 %v589
      %v805 = vpop.f32.mrb[0].mxu0
      %v806 = vadd.f32 %v508, %v805
      %v807 = vpop.f32.mrb[0].mxu0
      %808 = vmatprep.mubr.f32.mxu0 0.0
      %809 = vmatmul.mubr.f32.gmra.mrb[0].mxu0 %v592
      %v810 = vpop.f32.mrb[0].mxu0
      %v811 = vadd.f32 %v508, %v810
      %v812 = vpop.f32.mrb[0].mxu0
      %813 = vmatprep.mubr.f32.mxu0 0.0
      %814 = vmatmul.mubr.f32.gmra.mrb[0].mxu0 %v595
      %v815 = vpop.f32.mrb[0].mxu0
      %v816 = vadd.f32 %v508, %v815
      %v817 = vpop.f32.mrb[0].mxu0
      %818 = vmatprep.mubr.f32.mxu0 0.0
      %819 = vmatmul.mubr.f32.gmra.mrb[0].mxu0 %v598
      %v820 = vpop.f32.mrb[0].mxu0
      %v821 = vadd.f32 %v508, %v820
      %v822 = vpop.f32.mrb[0].mxu0
      %823 = vmatprep.mubr.f32.mxu0 0.0
      %824 = vmatmul.mubr.f32.gmra.mrb[0].mxu0 %v601
      %v825 = vpop.f32.mrb[0].mxu0
      %v826 = vadd.f32 %v508, %v825
      %v827 = vpop.f32.mrb[0].mxu0
      %828 = vmatprep.mubr.f32.mxu0 0.0
      %829 = vmatmul.mubr.f32.gmra.mrb[0].mxu0 %v604
      %v830 = vpop.f32.mrb[0].mxu0
      %v831 = vadd.f32 %v508, %v830
      %v832 = vpop.f32.mrb[0].mxu0
      %833 = vdwg.mxu0
      %v834 = vld [vmem:[%s8] sm:$0xff]
      %v835 = vld [vmem:[%s8 + $0x8] sm:$0xff]
      %v836 = vld [vmem:[%s8 + $0x10] sm:$0xff]
      %v837 = vld [vmem:[%s8 + $0x18] sm:$0xff]
      %v838 = vld [vmem:[%s8 + $0x20] sm:$0xff]
      %v839 = vld [vmem:[%s8 + $0x28] sm:$0xff]
      %v840 = vld [vmem:[%s8 + $0x30] sm:$0xff]
      %v841 = vld [vmem:[%s8 + $0x38] sm:$0xff]
      %v842 = vld [vmem:[%s8 + $0x40] sm:$0xff]
      %v843 = vld [vmem:[%s8 + $0x48] sm:$0xff]
      %v844 = vld [vmem:[%s8 + $0x50] sm:$0xff]
      %v845 = vld [vmem:[%s8 + $0x58] sm:$0xff]
      %v846 = vld [vmem:[%s8 + $0x60] sm:$0xff]
      %v847 = vld [vmem:[%s8 + $0x68] sm:$0xff]
      %v848 = vld [vmem:[%s8 + $0x70] sm:$0xff]
      %v849 = vld [vmem:[%s8 + $0x78] sm:$0xff]
      %v850 = vld [vmem:[%s8 + $0x80] sm:$0xff]
      %v851 = vld [vmem:[%s8 + $0x88] sm:$0xff]
      %v852 = vld [vmem:[%s8 + $0x90] sm:$0xff]
      %v853 = vld [vmem:[%s8 + $0x98] sm:$0xff]
      %v854 = vld [vmem:[%s8 + $0xa0] sm:$0xff]
      %v855 = vld [vmem:[%s8 + $0xa8] sm:$0xff]
      %v856 = vld [vmem:[%s8 + $0xb0] sm:$0xff]
      %v857 = vld [vmem:[%s8 + $0xb8] sm:$0xff]
      %v858 = vld [vmem:[%s8 + $0xc0] sm:$0xff]
      %v859 = vld [vmem:[%s8 + $0xc8] sm:$0xff]
      %v860 = vld [vmem:[%s8 + $0xd0] sm:$0xff]
      %v861 = vld [vmem:[%s8 + $0xd8] sm:$0xff]
      %v862 = vld [vmem:[%s8 + $0xe0] sm:$0xff]
      %v863 = vld [vmem:[%s8 + $0xe8] sm:$0xff]
      %v864 = vld [vmem:[%s8 + $0xf0] sm:$0xff]
      %v865 = vld [vmem:[%s8 + $0xf8] sm:$0xff]
      %v866 = vadd.f32 %v676, %v834
      %v867 = vadd.f32 %v681, %v835
      %v868 = vadd.f32 %v686, %v836
      %v869 = vadd.f32 %v691, %v837
      %v870 = vadd.f32 %v696, %v838
      %v871 = vadd.f32 %v701, %v839
      %v872 = vadd.f32 %v706, %v840
      %v873 = vadd.f32 %v711, %v841
      %v874 = vadd.f32 %v716, %v842
      %v875 = vadd.f32 %v721, %v843
      %v876 = vadd.f32 %v726, %v844
      %v877 = vadd.f32 %v731, %v845
      %v878 = vadd.f32 %v736, %v846
      %v879 = vadd.f32 %v741, %v847
      %v880 = vadd.f32 %v746, %v848
      %v881 = vadd.f32 %v751, %v849
      %v882 = vadd.f32 %v756, %v850
      %v883 = vadd.f32 %v761, %v851
      %v884 = vadd.f32 %v766, %v852
      %v885 = vadd.f32 %v771, %v853
      %v886 = vadd.f32 %v776, %v854
      %v887 = vadd.f32 %v781, %v855
      %v888 = vadd.f32 %v786, %v856
      %v889 = vadd.f32 %v791, %v857
      %v890 = vadd.f32 %v796, %v858
      %v891 = vadd.f32 %v801, %v859
      %v892 = vadd.f32 %v806, %v860
      %v893 = vadd.f32 %v811, %v861
      %v894 = vadd.f32 %v816, %v862
      %v895 = vadd.f32 %v821, %v863
      %v896 = vadd.f32 %v826, %v864
      %v897 = vadd.f32 %v831, %v865
      %v898 = vld [vmem:[%s4] sm:$0xf]
      %v899 = vld [vmem:[%s7] sm:$0x1]
      %v901 = vlaneseq
      %v902 = vshrl.u32 %v901, 7
      %v903 = vsub.s32 0, %v902
      %v904 = vrot.slane %v899, %v903
      %v907 = vsel %vm426, %v898, 0
      %909 = vmatprep.subr.mxu0 0.0
      %910 = vmatpush1.msra.mxu0 %v907
      %911 = vmatprep.subr.mxu0 0.0
      %912 = vmatpush1.msra.mxu0 0.0
      %913 = vmatprep.subr.mxu0 0.0
      %914 = vmatpush1.msra.mxu0 0.0
      %915 = vmatprep.subr.mxu0 0.0
      %916 = vmatpush1.msra.mxu0 0.0
      %917 = vmatprep.subr.mxu0 0.0
      %918 = vmatpush1.msra.mxu0 0.0
      %919 = vmatprep.subr.mxu0 0.0
      %920 = vmatpush1.msra.mxu0 0.0
      %921 = vmatprep.subr.mxu0 0.0
      %922 = vmatpush1.msra.mxu0 0.0
      %923 = vmatprep.subr.mxu0 0.0
      %924 = vmatpush1.msra.mxu0 0.0
      %925 = vmatprep.subr.mxu0 0.0
      %926 = vmatpush1.msra.mxu0 0.0
      %927 = vmatprep.subr.mxu0 0.0
      %928 = vmatpush1.msra.mxu0 0.0
      %929 = vmatprep.subr.mxu0 0.0
      %930 = vmatpush1.msra.mxu0 0.0
      %931 = vmatprep.subr.mxu0 0.0
      %932 = vmatpush1.msra.mxu0 0.0
      %933 = vmatprep.subr.mxu0 0.0
      %934 = vmatpush1.msra.mxu0 0.0
      %935 = vmatprep.subr.mxu0 0.0
      %936 = vmatpush1.msra.mxu0 0.0
      %937 = vmatprep.subr.mxu0 0.0
      %938 = vmatpush1.msra.mxu0 0.0
      %939 = vmatprep.subr.mxu0 0.0
      %940 = vmatpush1.msra.mxu0 0.0
      %941 = vmatprep.subr.mxu0 0.0
      %942 = vmatpush1.msra.mxu0 0.0
      %943 = vmatprep.subr.mxu0 0.0
      %944 = vmatpush1.msra.mxu0 0.0
      %945 = vmatprep.subr.mxu0 0.0
      %946 = vmatpush1.msra.mxu0 0.0
      %947 = vmatprep.subr.mxu0 0.0
      %948 = vmatpush1.msra.mxu0 0.0
      %949 = vmatprep.subr.mxu0 0.0
      %950 = vmatpush1.msra.mxu0 0.0
      %951 = vmatprep.subr.mxu0 0.0
      %952 = vmatpush1.msra.mxu0 0.0
      %953 = vmatprep.subr.mxu0 0.0
      %954 = vmatpush1.msra.mxu0 0.0
      %955 = vmatprep.subr.mxu0 0.0
      %956 = vmatpush1.msra.mxu0 0.0
      %957 = vmatprep.subr.mxu0 0.0
      %958 = vmatpush1.msra.mxu0 0.0
      %959 = vmatprep.subr.mxu0 0.0
      %960 = vmatpush1.msra.mxu0 0.0
      %961 = vmatprep.subr.mxu0 0.0
      %962 = vmatpush1.msra.mxu0 0.0
      %963 = vmatprep.subr.mxu0 0.0
      %964 = vmatpush1.msra.mxu0 0.0
      %965 = vmatprep.subr.mxu0 0.0
      %966 = vmatpush1.msra.mxu0 0.0
      %967 = vmatprep.subr.mxu0 0.0
      %968 = vmatpush1.msra.mxu0 0.0
      %969 = vmatprep.subr.mxu0 0.0
      %970 = vmatpush1.msra.mxu0 0.0
      %971 = vmatprep.subr.mxu0 0.0
      %972 = vmatpush1.msra.mxu0 0.0
      %973 = vmatprep.mubr.f32.mxu0 0.0
      %974 = vmatmul.mubr.f32.gmra.mrb[0].mxu0 %v511
      %v975 = vpop.f32.mrb[0].mxu0
      %v976 = vadd.f32 %v904, %v975
      %v977 = vpop.f32.mrb[0].mxu0
      %978 = vmatprep.mubr.f32.mxu0 0.0
      %979 = vmatmul.mubr.f32.gmra.mrb[0].mxu0 %v514
      %v980 = vpop.f32.mrb[0].mxu0
      %v981 = vadd.f32 %v904, %v980
      %v982 = vpop.f32.mrb[0].mxu0
      %983 = vmatprep.mubr.f32.mxu0 0.0
      %984 = vmatmul.mubr.f32.gmra.mrb[0].mxu0 %v517
      %v985 = vpop.f32.mrb[0].mxu0
      %v986 = vadd.f32 %v904, %v985
      %v987 = vpop.f32.mrb[0].mxu0
      %988 = vmatprep.mubr.f32.mxu0 0.0
      %989 = vmatmul.mubr.f32.gmra.mrb[0].mxu0 %v520
      %v990 = vpop.f32.mrb[0].mxu0
      %v991 = vadd.f32 %v904, %v990
      %v992 = vpop.f32.mrb[0].mxu0
      %993 = vmatprep.mubr.f32.mxu0 0.0
      %994 = vmatmul.mubr.f32.gmra.mrb[0].mxu0 %v523
      %v995 = vpop.f32.mrb[0].mxu0
      %v996 = vadd.f32 %v904, %v995
      %v997 = vpop.f32.mrb[0].mxu0
      %998 = vmatprep.mubr.f32.mxu0 0.0
      %999 = vmatmul.mubr.f32.gmra.mrb[0].mxu0 %v526
      %v1000 = vpop.f32.mrb[0].mxu0
      %v1001 = vadd.f32 %v904, %v1000
      %v1002 = vpop.f32.mrb[0].mxu0
      %1003 = vmatprep.mubr.f32.mxu0 0.0
      %1004 = vmatmul.mubr.f32.gmra.mrb[0].mxu0 %v529
      %v1005 = vpop.f32.mrb[0].mxu0
      %v1006 = vadd.f32 %v904, %v1005
      %v1007 = vpop.f32.mrb[0].mxu0
      %1008 = vmatprep.mubr.f32.mxu0 0.0
      %1009 = vmatmul.mubr.f32.gmra.mrb[0].mxu0 %v532
      %v1010 = vpop.f32.mrb[0].mxu0
      %v1011 = vadd.f32 %v904, %v1010
      %v1012 = vpop.f32.mrb[0].mxu0
      %1013 = vmatprep.mubr.f32.mxu0 0.0
      %1014 = vmatmul.mubr.f32.gmra.mrb[0].mxu0 %v535
      %v1015 = vpop.f32.mrb[0].mxu0
      %v1016 = vadd.f32 %v904, %v1015
      %v1017 = vpop.f32.mrb[0].mxu0
      %1018 = vmatprep.mubr.f32.mxu0 0.0
      %1019 = vmatmul.mubr.f32.gmra.mrb[0].mxu0 %v538
      %v1020 = vpop.f32.mrb[0].mxu0
      %v1021 = vadd.f32 %v904, %v1020
      %v1022 = vpop.f32.mrb[0].mxu0
      %1023 = vmatprep.mubr.f32.mxu0 0.0
      %1024 = vmatmul.mubr.f32.gmra.mrb[0].mxu0 %v541
      %v1025 = vpop.f32.mrb[0].mxu0
      %v1026 = vadd.f32 %v904, %v1025
      %v1027 = vpop.f32.mrb[0].mxu0
      %1028 = vmatprep.mubr.f32.mxu0 0.0
      %1029 = vmatmul.mubr.f32.gmra.mrb[0].mxu0 %v544
      %v1030 = vpop.f32.mrb[0].mxu0
      %v1031 = vadd.f32 %v904, %v1030
      %v1032 = vpop.f32.mrb[0].mxu0
      %1033 = vmatprep.mubr.f32.mxu0 0.0
      %1034 = vmatmul.mubr.f32.gmra.mrb[0].mxu0 %v547
      %v1035 = vpop.f32.mrb[0].mxu0
      %v1036 = vadd.f32 %v904, %v1035
      %v1037 = vpop.f32.mrb[0].mxu0
      %1038 = vmatprep.mubr.f32.mxu0 0.0
      %1039 = vmatmul.mubr.f32.gmra.mrb[0].mxu0 %v550
      %v1040 = vpop.f32.mrb[0].mxu0
      %v1041 = vadd.f32 %v904, %v1040
      %v1042 = vpop.f32.mrb[0].mxu0
      %1043 = vmatprep.mubr.f32.mxu0 0.0
      %1044 = vmatmul.mubr.f32.gmra.mrb[0].mxu0 %v553
      %v1045 = vpop.f32.mrb[0].mxu0
      %v1046 = vadd.f32 %v904, %v1045
      %v1047 = vpop.f32.mrb[0].mxu0
      %1048 = vmatprep.mubr.f32.mxu0 0.0
      %1049 = vmatmul.mubr.f32.gmra.mrb[0].mxu0 %v556
      %v1050 = vpop.f32.mrb[0].mxu0
      %v1051 = vadd.f32 %v904, %v1050
      %v1052 = vpop.f32.mrb[0].mxu0
      %1053 = vmatprep.mubr.f32.mxu0 0.0
      %1054 = vmatmul.mubr.f32.gmra.mrb[0].mxu0 %v559
      %v1055 = vpop.f32.mrb[0].mxu0
      %v1056 = vadd.f32 %v904, %v1055
      %v1057 = vpop.f32.mrb[0].mxu0
      %1058 = vmatprep.mubr.f32.mxu0 0.0
      %1059 = vmatmul.mubr.f32.gmra.mrb[0].mxu0 %v562
      %v1060 = vpop.f32.mrb[0].mxu0
      %v1061 = vadd.f32 %v904, %v1060
      %v1062 = vpop.f32.mrb[0].mxu0
      %1063 = vmatprep.mubr.f32.mxu0 0.0
      %1064 = vmatmul.mubr.f32.gmra.mrb[0].mxu0 %v565
      %v1065 = vpop.f32.mrb[0].mxu0
      %v1066 = vadd.f32 %v904, %v1065
      %v1067 = vpop.f32.mrb[0].mxu0
      %1068 = vmatprep.mubr.f32.mxu0 0.0
      %1069 = vmatmul.mubr.f32.gmra.mrb[0].mxu0 %v568
      %v1070 = vpop.f32.mrb[0].mxu0
      %v1071 = vadd.f32 %v904, %v1070
      %v1072 = vpop.f32.mrb[0].mxu0
      %1073 = vmatprep.mubr.f32.mxu0 0.0
      %1074 = vmatmul.mubr.f32.gmra.mrb[0].mxu0 %v571
      %v1075 = vpop.f32.mrb[0].mxu0
      %v1076 = vadd.f32 %v904, %v1075
      %v1077 = vpop.f32.mrb[0].mxu0
      %1078 = vmatprep.mubr.f32.mxu0 0.0
      %1079 = vmatmul.mubr.f32.gmra.mrb[0].mxu0 %v574
      %v1080 = vpop.f32.mrb[0].mxu0
      %v1081 = vadd.f32 %v904, %v1080
      %v1082 = vpop.f32.mrb[0].mxu0
      %1083 = vmatprep.mubr.f32.mxu0 0.0
      %1084 = vmatmul.mubr.f32.gmra.mrb[0].mxu0 %v577
      %v1085 = vpop.f32.mrb[0].mxu0
      %v1086 = vadd.f32 %v904, %v1085
      %v1087 = vpop.f32.mrb[0].mxu0
      %1088 = vmatprep.mubr.f32.mxu0 0.0
      %1089 = vmatmul.mubr.f32.gmra.mrb[0].mxu0 %v580
      %v1090 = vpop.f32.mrb[0].mxu0
      %v1091 = vadd.f32 %v904, %v1090
      %v1092 = vpop.f32.mrb[0].mxu0
      %1093 = vmatprep.mubr.f32.mxu0 0.0
      %1094 = vmatmul.mubr.f32.gmra.mrb[0].mxu0 %v583
      %v1095 = vpop.f32.mrb[0].mxu0
      %v1096 = vadd.f32 %v904, %v1095
      %v1097 = vpop.f32.mrb[0].mxu0
      %1098 = vmatprep.mubr.f32.mxu0 0.0
      %1099 = vmatmul.mubr.f32.gmra.mrb[0].mxu0 %v586
      %v1100 = vpop.f32.mrb[0].mxu0
      %v1101 = vadd.f32 %v904, %v1100
      %v1102 = vpop.f32.mrb[0].mxu0
      %1103 = vmatprep.mubr.f32.mxu0 0.0
      %1104 = vmatmul.mubr.f32.gmra.mrb[0].mxu0 %v589
      %v1105 = vpop.f32.mrb[0].mxu0
      %v1106 = vadd.f32 %v904, %v1105
      %v1107 = vpop.f32.mrb[0].mxu0
      %1108 = vmatprep.mubr.f32.mxu0 0.0
      %1109 = vmatmul.mubr.f32.gmra.mrb[0].mxu0 %v592
      %v1110 = vpop.f32.mrb[0].mxu0
      %v1111 = vadd.f32 %v904, %v1110
      %v1112 = vpop.f32.mrb[0].mxu0
      %1113 = vmatprep.mubr.f32.mxu0 0.0
      %1114 = vmatmul.mubr.f32.gmra.mrb[0].mxu0 %v595
      %v1115 = vpop.f32.mrb[0].mxu0
      %v1116 = vadd.f32 %v904, %v1115
      %v1117 = vpop.f32.mrb[0].mxu0
      %1118 = vmatprep.mubr.f32.mxu0 0.0
      %1119 = vmatmul.mubr.f32.gmra.mrb[0].mxu0 %v598
      %v1120 = vpop.f32.mrb[0].mxu0
      %v1121 = vadd.f32 %v904, %v1120
      %v1122 = vpop.f32.mrb[0].mxu0
      %1123 = vmatprep.mubr.f32.mxu0 0.0
      %1124 = vmatmul.mubr.f32.gmra.mrb[0].mxu0 %v601
      %v1125 = vpop.f32.mrb[0].mxu0
      %v1126 = vadd.f32 %v904, %v1125
      %v1127 = vpop.f32.mrb[0].mxu0
      %1128 = vmatprep.mubr.f32.mxu0 0.0
      %1129 = vmatmul.mubr.f32.gmra.mrb[0].mxu0 %v604
      %v1130 = vpop.f32.mrb[0].mxu0
      %v1131 = vadd.f32 %v904, %v1130
      %v1132 = vpop.f32.mrb[0].mxu0
      %1133 = vdwg.mxu0
      %v1134 = vld [vmem:[%s9] sm:$0xff]
      %v1135 = vld [vmem:[%s9 + $0x8] sm:$0xff]
      %v1136 = vld [vmem:[%s9 + $0x10] sm:$0xff]
      %v1137 = vld [vmem:[%s9 + $0x18] sm:$0xff]
      %v1138 = vld [vmem:[%s9 + $0x20] sm:$0xff]
      %v1139 = vld [vmem:[%s9 + $0x28] sm:$0xff]
      %v1140 = vld [vmem:[%s9 + $0x30] sm:$0xff]
      %v1141 = vld [vmem:[%s9 + $0x38] sm:$0xff]
      %v1142 = vld [vmem:[%s9 + $0x40] sm:$0xff]
      %v1143 = vld [vmem:[%s9 + $0x48] sm:$0xff]
      %v1144 = vld [vmem:[%s9 + $0x50] sm:$0xff]
      %v1145 = vld [vmem:[%s9 + $0x58] sm:$0xff]
      %v1146 = vld [vmem:[%s9 + $0x60] sm:$0xff]
      %v1147 = vld [vmem:[%s9 + $0x68] sm:$0xff]
      %v1148 = vld [vmem:[%s9 + $0x70] sm:$0xff]
      %v1149 = vld [vmem:[%s9 + $0x78] sm:$0xff]
      %vm1150 = vcmask 15360
      %v1152 = vsel %vm1150, %v866, 0
      %v1155 = vsel %vm1150, %v867, 0
      %v1158 = vsel %vm1150, %v868, 0
      %v1161 = vsel %vm1150, %v869, 0
      %v1164 = vsel %vm1150, %v870, 0
      %v1167 = vsel %vm1150, %v871, 0
      %v1170 = vsel %vm1150, %v872, 0
      %v1173 = vsel %vm1150, %v873, 0
      %v1176 = vsel %vm1150, %v874, 0
      %v1179 = vsel %vm1150, %v875, 0
      %v1182 = vsel %vm1150, %v876, 0
      %v1185 = vsel %vm1150, %v877, 0
      %v1188 = vsel %vm1150, %v878, 0
      %v1191 = vsel %vm1150, %v879, 0
      %v1194 = vsel %vm1150, %v880, 0
      %v1197 = vsel %vm1150, %v881, 0
      %v1200 = vsel %vm1150, %v882, 0
      %v1203 = vsel %vm1150, %v883, 0
      %v1206 = vsel %vm1150, %v884, 0
      %v1209 = vsel %vm1150, %v885, 0
      %v1212 = vsel %vm1150, %v886, 0
      %v1215 = vsel %vm1150, %v887, 0
      %v1218 = vsel %vm1150, %v888, 0
      %v1221 = vsel %vm1150, %v889, 0
      %v1224 = vsel %vm1150, %v890, 0
      %v1227 = vsel %vm1150, %v891, 0
      %v1230 = vsel %vm1150, %v892, 0
      %v1233 = vsel %vm1150, %v893, 0
      %v1236 = vsel %vm1150, %v894, 0
      %v1239 = vsel %vm1150, %v895, 0
      %v1242 = vsel %vm1150, %v896, 0
      %v1245 = vsel %vm1150, %v897, 0
      %vm1247 = vcmask 1041408
      %v1249 = vsel %vm1247, %v498, 0
      %v1252 = vsel %vm1247, %v500, 0
      %1254 = vmatprep.subr.mxu0 %v1252
      %1255 = vmatpush1.msra.mxu0 %v1249
      %1256 = vmatprep.subr.mxu0 0.0
      %1257 = vmatpush1.msra.mxu0 0.0
      %1258 = vmatprep.subr.mxu0 0.0
      %1259 = vmatpush1.msra.mxu0 0.0
      %1260 = vmatprep.subr.mxu0 0.0
      %1261 = vmatpush1.msra.mxu0 0.0
      %1262 = vmatprep.subr.mxu0 0.0
      %1263 = vmatpush1.msra.mxu0 0.0
      %1264 = vmatprep.subr.mxu0 0.0
      %1265 = vmatpush1.msra.mxu0 0.0
      %1266 = vmatprep.subr.mxu0 0.0
      %1267 = vmatpush1.msra.mxu0 0.0
      %1268 = vmatprep.subr.mxu0 0.0
      %1269 = vmatpush1.msra.mxu0 0.0
      %1270 = vmatprep.subr.mxu0 0.0
      %1271 = vmatpush1.msra.mxu0 0.0
      %1272 = vmatprep.subr.mxu0 0.0
      %1273 = vmatpush1.msra.mxu0 0.0
      %1274 = vmatprep.subr.mxu0 0.0
      %1275 = vmatpush1.msra.mxu0 0.0
      %1276 = vmatprep.subr.mxu0 0.0
      %1277 = vmatpush1.msra.mxu0 0.0
      %1278 = vmatprep.subr.mxu0 0.0
      %1279 = vmatpush1.msra.mxu0 0.0
      %1280 = vmatprep.subr.mxu0 0.0
      %1281 = vmatpush1.msra.mxu0 0.0
      %1282 = vmatprep.subr.mxu0 0.0
      %1283 = vmatpush1.msra.mxu0 0.0
      %1284 = vmatprep.subr.mxu0 0.0
      %1285 = vmatpush1.msra.mxu0 0.0
      %1286 = vmatprep.subr.mxu0 0.0
      %1287 = vmatpush1.msra.mxu0 0.0
      %1288 = vmatprep.subr.mxu0 0.0
      %1289 = vmatpush1.msra.mxu0 0.0
      %1290 = vmatprep.subr.mxu0 0.0
      %1291 = vmatpush1.msra.mxu0 0.0
      %1292 = vmatprep.subr.mxu0 0.0
      %1293 = vmatpush1.msra.mxu0 0.0
      %1294 = vmatprep.subr.mxu0 0.0
      %1295 = vmatpush1.msra.mxu0 0.0
      %1296 = vmatprep.subr.mxu0 0.0
      %1297 = vmatpush1.msra.mxu0 0.0
      %1298 = vmatprep.subr.mxu0 0.0
      %1299 = vmatpush1.msra.mxu0 0.0
      %1300 = vmatprep.subr.mxu0 0.0
      %1301 = vmatpush1.msra.mxu0 0.0
      %1302 = vmatprep.subr.mxu0 0.0
      %1303 = vmatpush1.msra.mxu0 0.0
      %1304 = vmatprep.subr.mxu0 0.0
      %1305 = vmatpush1.msra.mxu0 0.0
      %1306 = vmatprep.subr.mxu0 0.0
      %1307 = vmatpush1.msra.mxu0 0.0
      %1308 = vmatprep.subr.mxu0 0.0
      %1309 = vmatpush1.msra.mxu0 0.0
      %1310 = vmatprep.subr.mxu0 0.0
      %1311 = vmatpush1.msra.mxu0 0.0
      %1312 = vmatprep.subr.mxu0 0.0
      %1313 = vmatpush1.msra.mxu0 0.0
      %1314 = vmatprep.subr.mxu0 0.0
      %1315 = vmatpush1.msra.mxu0 0.0
      %1316 = vmatprep.subr.mxu0 0.0
      %1317 = vmatpush1.msra.mxu0 0.0
      %1318 = vmatprep.mubr.f32.mxu0 0.0
      %1319 = vmatmul.mubr.f32.gmra.mrb[0].mxu0 %v1152
      %v1320 = vpop.f32.mrb[0].mxu0
      %v1321 = vadd.f32 0.0, %v1320
      %v1322 = vpop.f32.mrb[0].mxu0
      %v1323 = vadd.f32 0.0, %v1322
      %1324 = vmatprep.mubr.f32.mxu0 0.0
      %1325 = vmatmul.mubr.f32.gmra.mrb[0].mxu0 %v1155
      %v1326 = vpop.f32.mrb[0].mxu0
      %v1327 = vadd.f32 0.0, %v1326
      %v1328 = vpop.f32.mrb[0].mxu0
      %v1329 = vadd.f32 0.0, %v1328
      %1330 = vmatprep.mubr.f32.mxu0 0.0
      %1331 = vmatmul.mubr.f32.gmra.mrb[0].mxu0 %v1158
      %v1332 = vpop.f32.mrb[0].mxu0
      %v1333 = vadd.f32 0.0, %v1332
      %v1334 = vpop.f32.mrb[0].mxu0
      %v1335 = vadd.f32 0.0, %v1334
      %1336 = vmatprep.mubr.f32.mxu0 0.0
      %1337 = vmatmul.mubr.f32.gmra.mrb[0].mxu0 %v1161
      %v1338 = vpop.f32.mrb[0].mxu0
      %v1339 = vadd.f32 0.0, %v1338
      %v1340 = vpop.f32.mrb[0].mxu0
      %v1341 = vadd.f32 0.0, %v1340
      %1342 = vmatprep.mubr.f32.mxu0 0.0
      %1343 = vmatmul.mubr.f32.gmra.mrb[0].mxu0 %v1164
      %v1344 = vpop.f32.mrb[0].mxu0
      %v1345 = vadd.f32 0.0, %v1344
      %v1346 = vpop.f32.mrb[0].mxu0
      %v1347 = vadd.f32 0.0, %v1346
      %1348 = vmatprep.mubr.f32.mxu0 0.0
      %1349 = vmatmul.mubr.f32.gmra.mrb[0].mxu0 %v1167
      %v1350 = vpop.f32.mrb[0].mxu0
      %v1351 = vadd.f32 0.0, %v1350
      %v1352 = vpop.f32.mrb[0].mxu0
      %v1353 = vadd.f32 0.0, %v1352
      %1354 = vmatprep.mubr.f32.mxu0 0.0
      %1355 = vmatmul.mubr.f32.gmra.mrb[0].mxu0 %v1170
      %v1356 = vpop.f32.mrb[0].mxu0
      %v1357 = vadd.f32 0.0, %v1356
      %v1358 = vpop.f32.mrb[0].mxu0
      %v1359 = vadd.f32 0.0, %v1358
      %1360 = vmatprep.mubr.f32.mxu0 0.0
      %1361 = vmatmul.mubr.f32.gmra.mrb[0].mxu0 %v1173
      %v1362 = vpop.f32.mrb[0].mxu0
      %v1363 = vadd.f32 0.0, %v1362
      %v1364 = vpop.f32.mrb[0].mxu0
      %v1365 = vadd.f32 0.0, %v1364
      %1366 = vmatprep.mubr.f32.mxu0 0.0
      %1367 = vmatmul.mubr.f32.gmra.mrb[0].mxu0 %v1176
      %v1368 = vpop.f32.mrb[0].mxu0
      %v1369 = vadd.f32 0.0, %v1368
      %v1370 = vpop.f32.mrb[0].mxu0
      %v1371 = vadd.f32 0.0, %v1370
      %1372 = vmatprep.mubr.f32.mxu0 0.0
      %1373 = vmatmul.mubr.f32.gmra.mrb[0].mxu0 %v1179
      %v1374 = vpop.f32.mrb[0].mxu0
      %v1375 = vadd.f32 0.0, %v1374
      %v1376 = vpop.f32.mrb[0].mxu0
      %v1377 = vadd.f32 0.0, %v1376
      %1378 = vmatprep.mubr.f32.mxu0 0.0
      %1379 = vmatmul.mubr.f32.gmra.mrb[0].mxu0 %v1182
      %v1380 = vpop.f32.mrb[0].mxu0
      %v1381 = vadd.f32 0.0, %v1380
      %v1382 = vpop.f32.mrb[0].mxu0
      %v1383 = vadd.f32 0.0, %v1382
      %1384 = vmatprep.mubr.f32.mxu0 0.0
      %1385 = vmatmul.mubr.f32.gmra.mrb[0].mxu0 %v1185
      %v1386 = vpop.f32.mrb[0].mxu0
      %v1387 = vadd.f32 0.0, %v1386
      %v1388 = vpop.f32.mrb[0].mxu0
      %v1389 = vadd.f32 0.0, %v1388
      %1390 = vmatprep.mubr.f32.mxu0 0.0
      %1391 = vmatmul.mubr.f32.gmra.mrb[0].mxu0 %v1188
      %v1392 = vpop.f32.mrb[0].mxu0
      %v1393 = vadd.f32 0.0, %v1392
      %v1394 = vpop.f32.mrb[0].mxu0
      %v1395 = vadd.f32 0.0, %v1394
      %1396 = vmatprep.mubr.f32.mxu0 0.0
      %1397 = vmatmul.mubr.f32.gmra.mrb[0].mxu0 %v1191
      %v1398 = vpop.f32.mrb[0].mxu0
      %v1399 = vadd.f32 0.0, %v1398
      %v1400 = vpop.f32.mrb[0].mxu0
      %v1401 = vadd.f32 0.0, %v1400
      %1402 = vmatprep.mubr.f32.mxu0 0.0
      %1403 = vmatmul.mubr.f32.gmra.mrb[0].mxu0 %v1194
      %v1404 = vpop.f32.mrb[0].mxu0
      %v1405 = vadd.f32 0.0, %v1404
      %v1406 = vpop.f32.mrb[0].mxu0
      %v1407 = vadd.f32 0.0, %v1406
      %1408 = vmatprep.mubr.f32.mxu0 0.0
      %1409 = vmatmul.mubr.f32.gmra.mrb[0].mxu0 %v1197
      %v1410 = vpop.f32.mrb[0].mxu0
      %v1411 = vadd.f32 0.0, %v1410
      %v1412 = vpop.f32.mrb[0].mxu0
      %v1413 = vadd.f32 0.0, %v1412
      %1414 = vmatprep.mubr.f32.mxu0 0.0
      %1415 = vmatmul.mubr.f32.gmra.mrb[0].mxu0 %v1200
      %v1416 = vpop.f32.mrb[0].mxu0
      %v1417 = vadd.f32 0.0, %v1416
      %v1418 = vpop.f32.mrb[0].mxu0
      %v1419 = vadd.f32 0.0, %v1418
      %1420 = vmatprep.mubr.f32.mxu0 0.0
      %1421 = vmatmul.mubr.f32.gmra.mrb[0].mxu0 %v1203
      %v1422 = vpop.f32.mrb[0].mxu0
      %v1423 = vadd.f32 0.0, %v1422
      %v1424 = vpop.f32.mrb[0].mxu0
      %v1425 = vadd.f32 0.0, %v1424
      %1426 = vmatprep.mubr.f32.mxu0 0.0
      %1427 = vmatmul.mubr.f32.gmra.mrb[0].mxu0 %v1206
      %v1428 = vpop.f32.mrb[0].mxu0
      %v1429 = vadd.f32 0.0, %v1428
      %v1430 = vpop.f32.mrb[0].mxu0
      %v1431 = vadd.f32 0.0, %v1430
      %1432 = vmatprep.mubr.f32.mxu0 0.0
      %1433 = vmatmul.mubr.f32.gmra.mrb[0].mxu0 %v1209
      %v1434 = vpop.f32.mrb[0].mxu0
      %v1435 = vadd.f32 0.0, %v1434
      %v1436 = vpop.f32.mrb[0].mxu0
      %v1437 = vadd.f32 0.0, %v1436
      %1438 = vmatprep.mubr.f32.mxu0 0.0
      %1439 = vmatmul.mubr.f32.gmra.mrb[0].mxu0 %v1212
      %v1440 = vpop.f32.mrb[0].mxu0
      %v1441 = vadd.f32 0.0, %v1440
      %v1442 = vpop.f32.mrb[0].mxu0
      %v1443 = vadd.f32 0.0, %v1442
      %1444 = vmatprep.mubr.f32.mxu0 0.0
      %1445 = vmatmul.mubr.f32.gmra.mrb[0].mxu0 %v1215
      %v1446 = vpop.f32.mrb[0].mxu0
      %v1447 = vadd.f32 0.0, %v1446
      %v1448 = vpop.f32.mrb[0].mxu0
      %v1449 = vadd.f32 0.0, %v1448
      %1450 = vmatprep.mubr.f32.mxu0 0.0
      %1451 = vmatmul.mubr.f32.gmra.mrb[0].mxu0 %v1218
      %v1452 = vpop.f32.mrb[0].mxu0
      %v1453 = vadd.f32 0.0, %v1452
      %v1454 = vpop.f32.mrb[0].mxu0
      %v1455 = vadd.f32 0.0, %v1454
      %1456 = vmatprep.mubr.f32.mxu0 0.0
      %1457 = vmatmul.mubr.f32.gmra.mrb[0].mxu0 %v1221
      %v1458 = vpop.f32.mrb[0].mxu0
      %v1459 = vadd.f32 0.0, %v1458
      %v1460 = vpop.f32.mrb[0].mxu0
      %v1461 = vadd.f32 0.0, %v1460
      %1462 = vmatprep.mubr.f32.mxu0 0.0
      %1463 = vmatmul.mubr.f32.gmra.mrb[0].mxu0 %v1224
      %v1464 = vpop.f32.mrb[0].mxu0
      %v1465 = vadd.f32 0.0, %v1464
      %v1466 = vpop.f32.mrb[0].mxu0
      %v1467 = vadd.f32 0.0, %v1466
      %1468 = vmatprep.mubr.f32.mxu0 0.0
      %1469 = vmatmul.mubr.f32.gmra.mrb[0].mxu0 %v1227
      %v1470 = vpop.f32.mrb[0].mxu0
      %v1471 = vadd.f32 0.0, %v1470
      %v1472 = vpop.f32.mrb[0].mxu0
      %v1473 = vadd.f32 0.0, %v1472
      %1474 = vmatprep.mubr.f32.mxu0 0.0
      %1475 = vmatmul.mubr.f32.gmra.mrb[0].mxu0 %v1230
      %v1476 = vpop.f32.mrb[0].mxu0
      %v1477 = vadd.f32 0.0, %v1476
      %v1478 = vpop.f32.mrb[0].mxu0
      %v1479 = vadd.f32 0.0, %v1478
      %1480 = vmatprep.mubr.f32.mxu0 0.0
      %1481 = vmatmul.mubr.f32.gmra.mrb[0].mxu0 %v1233
      %v1482 = vpop.f32.mrb[0].mxu0
      %v1483 = vadd.f32 0.0, %v1482
      %v1484 = vpop.f32.mrb[0].mxu0
      %v1485 = vadd.f32 0.0, %v1484
      %1486 = vmatprep.mubr.f32.mxu0 0.0
      %1487 = vmatmul.mubr.f32.gmra.mrb[0].mxu0 %v1236
      %v1488 = vpop.f32.mrb[0].mxu0
      %v1489 = vadd.f32 0.0, %v1488
      %v1490 = vpop.f32.mrb[0].mxu0
      %v1491 = vadd.f32 0.0, %v1490
      %1492 = vmatprep.mubr.f32.mxu0 0.0
      %1493 = vmatmul.mubr.f32.gmra.mrb[0].mxu0 %v1239
      %v1494 = vpop.f32.mrb[0].mxu0
      %v1495 = vadd.f32 0.0, %v1494
      %v1496 = vpop.f32.mrb[0].mxu0
      %v1497 = vadd.f32 0.0, %v1496
      %1498 = vmatprep.mubr.f32.mxu0 0.0
      %1499 = vmatmul.mubr.f32.gmra.mrb[0].mxu0 %v1242
      %v1500 = vpop.f32.mrb[0].mxu0
      %v1501 = vadd.f32 0.0, %v1500
      %v1502 = vpop.f32.mrb[0].mxu0
      %v1503 = vadd.f32 0.0, %v1502
      %1504 = vmatprep.mubr.f32.mxu0 0.0
      %1505 = vmatmul.mubr.f32.gmra.mrb[0].mxu0 %v1245
      %v1506 = vpop.f32.mrb[0].mxu0
      %v1507 = vadd.f32 0.0, %v1506
      %v1508 = vpop.f32.mrb[0].mxu0
      %v1509 = vadd.f32 0.0, %v1508
      %1510 = vdwg.mxu0
      %v1511 = vmax.f32 %v1321, %v1333
      %v1512 = vmax.f32 %v1323, %v1335
      %v1513 = vmax.f32 %v1327, %v1339
      %v1514 = vmax.f32 %v1329, %v1341
      %v1515 = vmax.f32 %v1511, %v1345
      %v1516 = vmax.f32 %v1512, %v1347
      %v1517 = vmax.f32 %v1513, %v1351
      %v1518 = vmax.f32 %v1514, %v1353
      %v1519 = vmax.f32 %v1515, %v1357
      %v1520 = vmax.f32 %v1516, %v1359
      %v1521 = vmax.f32 %v1517, %v1363
      %v1522 = vmax.f32 %v1518, %v1365
      %v1523 = vmax.f32 %v1519, %v1369
      %v1524 = vmax.f32 %v1520, %v1371
      %v1525 = vmax.f32 %v1521, %v1375
      %v1526 = vmax.f32 %v1522, %v1377
      %v1527 = vmax.f32 %v1523, %v1381
      %v1528 = vmax.f32 %v1524, %v1383
      %v1529 = vmax.f32 %v1525, %v1387
      %v1530 = vmax.f32 %v1526, %v1389
      %v1531 = vmax.f32 %v1527, %v1393
      %v1532 = vmax.f32 %v1528, %v1395
      %v1533 = vmax.f32 %v1529, %v1399
      %v1534 = vmax.f32 %v1530, %v1401
      %v1535 = vmax.f32 %v1531, %v1405
      %v1536 = vmax.f32 %v1532, %v1407
      %v1537 = vmax.f32 %v1533, %v1411
      %v1538 = vmax.f32 %v1534, %v1413
      %v1539 = vmax.f32 %v1535, %v1417
      %v1540 = vmax.f32 %v1536, %v1419
      %v1541 = vmax.f32 %v1537, %v1423
      %v1542 = vmax.f32 %v1538, %v1425
      %v1543 = vmax.f32 %v1539, %v1429
      %v1544 = vmax.f32 %v1540, %v1431
      %v1545 = vmax.f32 %v1541, %v1435
      %v1546 = vmax.f32 %v1542, %v1437
      %v1547 = vmax.f32 %v1543, %v1441
      %v1548 = vmax.f32 %v1544, %v1443
      %v1549 = vmax.f32 %v1545, %v1447
      %v1550 = vmax.f32 %v1546, %v1449
      %v1551 = vmax.f32 %v1547, %v1453
      %v1552 = vmax.f32 %v1548, %v1455
      %v1553 = vmax.f32 %v1549, %v1459
      %v1554 = vmax.f32 %v1550, %v1461
      %v1555 = vmax.f32 %v1551, %v1465
      %v1556 = vmax.f32 %v1552, %v1467
      %v1557 = vmax.f32 %v1553, %v1471
      %v1558 = vmax.f32 %v1554, %v1473
      %v1559 = vmax.f32 %v1555, %v1477
      %v1560 = vmax.f32 %v1556, %v1479
      %v1561 = vmax.f32 %v1557, %v1483
      %v1562 = vmax.f32 %v1558, %v1485
      %v1563 = vmax.f32 %v1559, %v1489
      %v1564 = vmax.f32 %v1560, %v1491
      %v1565 = vmax.f32 %v1561, %v1495
      %v1566 = vmax.f32 %v1562, %v1497
      %v1567 = vmax.f32 %v1563, %v1501
      %v1568 = vmax.f32 %v1564, %v1503
      %v1569 = vmax.f32 %v1565, %v1507
      %v1570 = vmax.f32 %v1566, %v1509
      %v1571 = vmax.f32 %v1567, %v1568
      %v1572 = vmax.f32 %v1569, %v1570
      %v1573 = vmax.f32 %v1571, %v1572
      %1574 = vmax.xlane.f32.xlu0 %v1573
      %v1575 = vpop.xlane.xlu0 %1574
      %v1576 = vrot.slane %v1575, 4
      %v1577 = vmax.f32 %v1575, %v1576
      %v1578 = vrot.slane %v1577, 2
      %v1579 = vmax.f32 %v1577, %v1578
      %v1580 = vrot.slane %v1579, 1
      %v1581 = vmax.f32 %v1579, %v1580
      %s1582 = vtos %v1581
      %v1583 = vstv %s1582
      %v1584 = vsub.f32 %v1321, %v1583
      %v1585 = vsub.f32 %v1323, %v1583
      %v1586 = vsub.f32 %v1327, %v1583
      %v1587 = vsub.f32 %v1329, %v1583
      %v1588 = vsub.f32 %v1333, %v1583
      %v1589 = vsub.f32 %v1335, %v1583
      %v1590 = vsub.f32 %v1339, %v1583
      %v1591 = vsub.f32 %v1341, %v1583
      %v1592 = vsub.f32 %v1345, %v1583
      %v1593 = vsub.f32 %v1347, %v1583
      %v1594 = vsub.f32 %v1351, %v1583
      %v1595 = vsub.f32 %v1353, %v1583
      %v1596 = vsub.f32 %v1357, %v1583
      %v1597 = vsub.f32 %v1359, %v1583
      %v1598 = vsub.f32 %v1363, %v1583
      %v1599 = vsub.f32 %v1365, %v1583
      %v1600 = vsub.f32 %v1369, %v1583
      %v1601 = vsub.f32 %v1371, %v1583
      %v1602 = vsub.f32 %v1375, %v1583
      %v1603 = vsub.f32 %v1377, %v1583
      %v1604 = vsub.f32 %v1381, %v1583
      %v1605 = vsub.f32 %v1383, %v1583
      %v1606 = vsub.f32 %v1387, %v1583
      %v1607 = vsub.f32 %v1389, %v1583
      %v1608 = vsub.f32 %v1393, %v1583
      %v1609 = vsub.f32 %v1395, %v1583
      %v1610 = vsub.f32 %v1399, %v1583
      %v1611 = vsub.f32 %v1401, %v1583
      %v1612 = vsub.f32 %v1405, %v1583
      %v1613 = vsub.f32 %v1407, %v1583
      %v1614 = vsub.f32 %v1411, %v1583
      %v1615 = vsub.f32 %v1413, %v1583
      %v1616 = vsub.f32 %v1417, %v1583
      %v1617 = vsub.f32 %v1419, %v1583
      %v1618 = vsub.f32 %v1423, %v1583
      %v1619 = vsub.f32 %v1425, %v1583
      %v1620 = vsub.f32 %v1429, %v1583
      %v1621 = vsub.f32 %v1431, %v1583
      %v1622 = vsub.f32 %v1435, %v1583
      %v1623 = vsub.f32 %v1437, %v1583
      %v1624 = vsub.f32 %v1441, %v1583
      %v1625 = vsub.f32 %v1443, %v1583
      %v1626 = vsub.f32 %v1447, %v1583
      %v1627 = vsub.f32 %v1449, %v1583
      %v1628 = vsub.f32 %v1453, %v1583
      %v1629 = vsub.f32 %v1455, %v1583
      %v1630 = vsub.f32 %v1459, %v1583
      %v1631 = vsub.f32 %v1461, %v1583
      %v1632 = vsub.f32 %v1465, %v1583
      %v1633 = vsub.f32 %v1467, %v1583
      %v1634 = vsub.f32 %v1471, %v1583
      %v1635 = vsub.f32 %v1473, %v1583
      %v1636 = vsub.f32 %v1477, %v1583
      %v1637 = vsub.f32 %v1479, %v1583
      %v1638 = vsub.f32 %v1483, %v1583
      %v1639 = vsub.f32 %v1485, %v1583
      %v1640 = vsub.f32 %v1489, %v1583
      %v1641 = vsub.f32 %v1491, %v1583
      %v1642 = vsub.f32 %v1495, %v1583
      %v1643 = vsub.f32 %v1497, %v1583
      %v1644 = vsub.f32 %v1501, %v1583
      %v1645 = vsub.f32 %v1503, %v1583
      %v1646 = vsub.f32 %v1507, %v1583
      %v1647 = vsub.f32 %v1509, %v1583
      %v1648 = vmul.f32 %v1584, 1.442695
      %v1649 = vpow.pop %v1648
      %v1650 = vmul.f32 %v1585, 1.442695
      %v1651 = vpow.pop %v1650
      %v1652 = vmul.f32 %v1586, 1.442695
      %v1653 = vpow.pop %v1652
      %v1654 = vmul.f32 %v1587, 1.442695
      %v1655 = vpow.pop %v1654
      %v1656 = vmul.f32 %v1588, 1.442695
      %v1657 = vpow.pop %v1656
      %v1658 = vmul.f32 %v1589, 1.442695
      %v1659 = vpow.pop %v1658
      %v1660 = vmul.f32 %v1590, 1.442695
      %v1661 = vpow.pop %v1660
      %v1662 = vmul.f32 %v1591, 1.442695
      %v1663 = vpow.pop %v1662
      %v1664 = vmul.f32 %v1592, 1.442695
      %v1665 = vpow.pop %v1664
      %v1666 = vmul.f32 %v1593, 1.442695
      %v1667 = vpow.pop %v1666
      %v1668 = vmul.f32 %v1594, 1.442695
      %v1669 = vpow.pop %v1668
      %v1670 = vmul.f32 %v1595, 1.442695
      %v1671 = vpow.pop %v1670
      %v1672 = vmul.f32 %v1596, 1.442695
      %v1673 = vpow.pop %v1672
      %v1674 = vmul.f32 %v1597, 1.442695
      %v1675 = vpow.pop %v1674
      %v1676 = vmul.f32 %v1598, 1.442695
      %v1677 = vpow.pop %v1676
      %v1678 = vmul.f32 %v1599, 1.442695
      %v1679 = vpow.pop %v1678
      %v1680 = vmul.f32 %v1600, 1.442695
      %v1681 = vpow.pop %v1680
      %v1682 = vmul.f32 %v1601, 1.442695
      %v1683 = vpow.pop %v1682
      %v1684 = vmul.f32 %v1602, 1.442695
      %v1685 = vpow.pop %v1684
      %v1686 = vmul.f32 %v1603, 1.442695
      %v1687 = vpow.pop %v1686
      %v1688 = vmul.f32 %v1604, 1.442695
      %v1689 = vpow.pop %v1688
      %v1690 = vmul.f32 %v1605, 1.442695
      %v1691 = vpow.pop %v1690
      %v1692 = vmul.f32 %v1606, 1.442695
      %v1693 = vpow.pop %v1692
      %v1694 = vmul.f32 %v1607, 1.442695
      %v1695 = vpow.pop %v1694
      %v1696 = vmul.f32 %v1608, 1.442695
      %v1697 = vpow.pop %v1696
      %v1698 = vmul.f32 %v1609, 1.442695
      %v1699 = vpow.pop %v1698
      %v1700 = vmul.f32 %v1610, 1.442695
      %v1701 = vpow.pop %v1700
      %v1702 = vmul.f32 %v1611, 1.442695
      %v1703 = vpow.pop %v1702
      %v1704 = vmul.f32 %v1612, 1.442695
      %v1705 = vpow.pop %v1704
      %v1706 = vmul.f32 %v1613, 1.442695
      %v1707 = vpow.pop %v1706
      %v1708 = vmul.f32 %v1614, 1.442695
      %v1709 = vpow.pop %v1708
      %v1710 = vmul.f32 %v1615, 1.442695
      %v1711 = vpow.pop %v1710
      %v1712 = vmul.f32 %v1616, 1.442695
      %v1713 = vpow.pop %v1712
      %v1714 = vmul.f32 %v1617, 1.442695
      %v1715 = vpow.pop %v1714
      %v1716 = vmul.f32 %v1618, 1.442695
      %v1717 = vpow.pop %v1716
      %v1718 = vmul.f32 %v1619, 1.442695
      %v1719 = vpow.pop %v1718
      %v1720 = vmul.f32 %v1620, 1.442695
      %v1721 = vpow.pop %v1720
      %v1722 = vmul.f32 %v1621, 1.442695
      %v1723 = vpow.pop %v1722
      %v1724 = vmul.f32 %v1622, 1.442695
      %v1725 = vpow.pop %v1724
      %v1726 = vmul.f32 %v1623, 1.442695
      %v1727 = vpow.pop %v1726
      %v1728 = vmul.f32 %v1624, 1.442695
      %v1729 = vpow.pop %v1728
      %v1730 = vmul.f32 %v1625, 1.442695
      %v1731 = vpow.pop %v1730
      %v1732 = vmul.f32 %v1626, 1.442695
      %v1733 = vpow.pop %v1732
      %v1734 = vmul.f32 %v1627, 1.442695
      %v1735 = vpow.pop %v1734
      %v1736 = vmul.f32 %v1628, 1.442695
      %v1737 = vpow.pop %v1736
      %v1738 = vmul.f32 %v1629, 1.442695
      %v1739 = vpow.pop %v1738
      %v1740 = vmul.f32 %v1630, 1.442695
      %v1741 = vpow.pop %v1740
      %v1742 = vmul.f32 %v1631, 1.442695
      %v1743 = vpow.pop %v1742
      %v1744 = vmul.f32 %v1632, 1.442695
      %v1745 = vpow.pop %v1744
      %v1746 = vmul.f32 %v1633, 1.442695
      %v1747 = vpow.pop %v1746
      %v1748 = vmul.f32 %v1634, 1.442695
      %v1749 = vpow.pop %v1748
      %v1750 = vmul.f32 %v1635, 1.442695
      %v1751 = vpow.pop %v1750
      %v1752 = vmul.f32 %v1636, 1.442695
      %v1753 = vpow.pop %v1752
      %v1754 = vmul.f32 %v1637, 1.442695
      %v1755 = vpow.pop %v1754
      %v1756 = vmul.f32 %v1638, 1.442695
      %v1757 = vpow.pop %v1756
      %v1758 = vmul.f32 %v1639, 1.442695
      %v1759 = vpow.pop %v1758
      %v1760 = vmul.f32 %v1640, 1.442695
      %v1761 = vpow.pop %v1760
      %v1762 = vmul.f32 %v1641, 1.442695
      %v1763 = vpow.pop %v1762
      %v1764 = vmul.f32 %v1642, 1.442695
      %v1765 = vpow.pop %v1764
      %v1766 = vmul.f32 %v1643, 1.442695
      %v1767 = vpow.pop %v1766
      %v1768 = vmul.f32 %v1644, 1.442695
      %v1769 = vpow.pop %v1768
      %v1770 = vmul.f32 %v1645, 1.442695
      %v1771 = vpow.pop %v1770
      %v1772 = vmul.f32 %v1646, 1.442695
      %v1773 = vpow.pop %v1772
      %v1774 = vmul.f32 %v1647, 1.442695
      %v1775 = vpow.pop %v1774
      %v1776 = vadd.f32 %v1649, %v1651
      %v1777 = vadd.f32 %v1776, %v1653
      %v1778 = vadd.f32 %v1777, %v1655
      %v1779 = vadd.f32 %v1778, %v1657
      %v1780 = vadd.f32 %v1779, %v1659
      %v1781 = vadd.f32 %v1780, %v1661
      %v1782 = vadd.f32 %v1781, %v1663
      %v1783 = vadd.f32 %v1782, %v1665
      %v1784 = vadd.f32 %v1783, %v1667
      %v1785 = vadd.f32 %v1784, %v1669
      %v1786 = vadd.f32 %v1785, %v1671
      %v1787 = vadd.f32 %v1786, %v1673
      %v1788 = vadd.f32 %v1787, %v1675
      %v1789 = vadd.f32 %v1788, %v1677
      %v1790 = vadd.f32 %v1789, %v1679
      %v1791 = vadd.f32 %v1790, %v1681
      %v1792 = vadd.f32 %v1791, %v1683
      %v1793 = vadd.f32 %v1792, %v1685
      %v1794 = vadd.f32 %v1793, %v1687
      %v1795 = vadd.f32 %v1794, %v1689
      %v1796 = vadd.f32 %v1795, %v1691
      %v1797 = vadd.f32 %v1796, %v1693
      %v1798 = vadd.f32 %v1797, %v1695
      %v1799 = vadd.f32 %v1798, %v1697
      %v1800 = vadd.f32 %v1799, %v1699
      %v1801 = vadd.f32 %v1800, %v1701
      %v1802 = vadd.f32 %v1801, %v1703
      %v1803 = vadd.f32 %v1802, %v1705
      %v1804 = vadd.f32 %v1803, %v1707
      %v1805 = vadd.f32 %v1804, %v1709
      %v1806 = vadd.f32 %v1805, %v1711
      %v1807 = vadd.f32 %v1806, %v1713
      %v1808 = vadd.f32 %v1807, %v1715
      %v1809 = vadd.f32 %v1808, %v1717
      %v1810 = vadd.f32 %v1809, %v1719
      %v1811 = vadd.f32 %v1810, %v1721
      %v1812 = vadd.f32 %v1811, %v1723
      %v1813 = vadd.f32 %v1812, %v1725
      %v1814 = vadd.f32 %v1813, %v1727
      %v1815 = vadd.f32 %v1814, %v1729
      %v1816 = vadd.f32 %v1815, %v1731
      %v1817 = vadd.f32 %v1816, %v1733
      %v1818 = vadd.f32 %v1817, %v1735
      %v1819 = vadd.f32 %v1818, %v1737
      %v1820 = vadd.f32 %v1819, %v1739
      %v1821 = vadd.f32 %v1820, %v1741
      %v1822 = vadd.f32 %v1821, %v1743
      %v1823 = vadd.f32 %v1822, %v1745
      %v1824 = vadd.f32 %v1823, %v1747
      %v1825 = vadd.f32 %v1824, %v1749
      %v1826 = vadd.f32 %v1825, %v1751
      %v1827 = vadd.f32 %v1826, %v1753
      %v1828 = vadd.f32 %v1827, %v1755
      %v1829 = vadd.f32 %v1828, %v1757
      %v1830 = vadd.f32 %v1829, %v1759
      %v1831 = vadd.f32 %v1830, %v1761
      %v1832 = vadd.f32 %v1831, %v1763
      %v1833 = vadd.f32 %v1832, %v1765
      %v1834 = vadd.f32 %v1833, %v1767
      %v1835 = vadd.f32 %v1834, %v1769
      %v1836 = vadd.f32 %v1835, %v1771
      %v1837 = vadd.f32 %v1836, %v1773
      %v1838 = vadd.f32 %v1837, %v1775
      %1839 = vadd.xlane.f32.xlu0 %v1838
      %v1840 = vpop.xlane.xlu0 %1839
      %v1841 = vrot.slane %v1840, 4
      %v1842 = vadd.f32 %v1840, %v1841
      %v1843 = vrot.slane %v1842, 2
      %v1844 = vadd.f32 %v1842, %v1843
      %v1845 = vrot.slane %v1844, 1
      %v1846 = vadd.f32 %v1844, %v1845
      %s1847 = vtos %v1846
      %1848 = vmatprep.subr.mxu0 0.0
      %1849 = vmatpush1.msra.mxu0 %v976
      %1850 = vmatprep.subr.mxu0 0.0
      %1851 = vmatpush1.msra.mxu0 %v981
      %1852 = vmatprep.subr.mxu0 0.0
      %1853 = vmatpush1.msra.mxu0 %v986
      %1854 = vmatprep.subr.mxu0 0.0
      %1855 = vmatpush1.msra.mxu0 %v991
      %1856 = vmatprep.subr.mxu0 0.0
      %1857 = vmatpush1.msra.mxu0 %v996
      %1858 = vmatprep.subr.mxu0 0.0
      %1859 = vmatpush1.msra.mxu0 %v1001
      %1860 = vmatprep.subr.mxu0 0.0
      %1861 = vmatpush1.msra.mxu0 %v1006
      %1862 = vmatprep.subr.mxu0 0.0
      %1863 = vmatpush1.msra.mxu0 %v1011
      %1864 = vmatprep.subr.mxu0 0.0
      %1865 = vmatpush1.msra.mxu0 %v1016
      %1866 = vmatprep.subr.mxu0 0.0
      %1867 = vmatpush1.msra.mxu0 %v1021
      %1868 = vmatprep.subr.mxu0 0.0
      %1869 = vmatpush1.msra.mxu0 %v1026
      %1870 = vmatprep.subr.mxu0 0.0
      %1871 = vmatpush1.msra.mxu0 %v1031
      %1872 = vmatprep.subr.mxu0 0.0
      %1873 = vmatpush1.msra.mxu0 %v1036
      %1874 = vmatprep.subr.mxu0 0.0
      %1875 = vmatpush1.msra.mxu0 %v1041
      %1876 = vmatprep.subr.mxu0 0.0
      %1877 = vmatpush1.msra.mxu0 %v1046
      %1878 = vmatprep.subr.mxu0 0.0
      %1879 = vmatpush1.msra.mxu0 %v1051
      %1880 = vmatprep.subr.mxu0 0.0
      %1881 = vmatpush1.msra.mxu0 %v1056
      %1882 = vmatprep.subr.mxu0 0.0
      %1883 = vmatpush1.msra.mxu0 %v1061
      %1884 = vmatprep.subr.mxu0 0.0
      %1885 = vmatpush1.msra.mxu0 %v1066
      %1886 = vmatprep.subr.mxu0 0.0
      %1887 = vmatpush1.msra.mxu0 %v1071
      %1888 = vmatprep.subr.mxu0 0.0
      %1889 = vmatpush1.msra.mxu0 %v1076
      %1890 = vmatprep.subr.mxu0 0.0
      %1891 = vmatpush1.msra.mxu0 %v1081
      %1892 = vmatprep.subr.mxu0 0.0
      %1893 = vmatpush1.msra.mxu0 %v1086
      %1894 = vmatprep.subr.mxu0 0.0
      %1895 = vmatpush1.msra.mxu0 %v1091
      %1896 = vmatprep.subr.mxu0 0.0
      %1897 = vmatpush1.msra.mxu0 %v1096
      %1898 = vmatprep.subr.mxu0 0.0
      %1899 = vmatpush1.msra.mxu0 %v1101
      %1900 = vmatprep.subr.mxu0 0.0
      %1901 = vmatpush1.msra.mxu0 %v1106
      %1902 = vmatprep.subr.mxu0 0.0
      %1903 = vmatpush1.msra.mxu0 %v1111
      %1904 = vmatprep.subr.mxu0 0.0
      %1905 = vmatpush1.msra.mxu0 %v1116
      %1906 = vmatprep.subr.mxu0 0.0
      %1907 = vmatpush1.msra.mxu0 %v1121
      %1908 = vmatprep.subr.mxu0 0.0
      %1909 = vmatpush1.msra.mxu0 %v1126
      %1910 = vmatprep.subr.mxu0 0.0
      %1911 = vmatpush1.msra.mxu0 %v1131
      %1912 = vmatprep.mubr.f32.mxu0 %v1651
      %1913 = vmatmul.mubr.f32.gmra.mrb[0].mxu0 %v1649
      %v1914 = vpop.f32.mrb[0].mxu0
      %v1915 = vadd.f32 0.0, %v1914
      %v1916 = vpop.f32.mrb[0].mxu0
      %1917 = vmatprep.mubr.f32.mxu0 %v1655
      %1918 = vmatmul.mubr.f32.gmra.mrb[0].mxu0 %v1653
      %v1919 = vpop.f32.mrb[0].mxu0
      %v1920 = vadd.f32 0.0, %v1919
      %v1921 = vpop.f32.mrb[0].mxu0
      %1922 = vmatprep.mubr.f32.mxu0 %v1659
      %1923 = vmatmul.mubr.f32.gmra.mrb[0].mxu0 %v1657
      %v1924 = vpop.f32.mrb[0].mxu0
      %v1925 = vadd.f32 0.0, %v1924
      %v1926 = vpop.f32.mrb[0].mxu0
      %1927 = vmatprep.mubr.f32.mxu0 %v1663
      %1928 = vmatmul.mubr.f32.gmra.mrb[0].mxu0 %v1661
      %v1929 = vpop.f32.mrb[0].mxu0
      %v1930 = vadd.f32 0.0, %v1929
      %v1931 = vpop.f32.mrb[0].mxu0
      %1932 = vmatprep.mubr.f32.mxu0 %v1667
      %1933 = vmatmul.mubr.f32.gmra.mrb[0].mxu0 %v1665
      %v1934 = vpop.f32.mrb[0].mxu0
      %v1935 = vadd.f32 0.0, %v1934
      %v1936 = vpop.f32.mrb[0].mxu0
      %1937 = vmatprep.mubr.f32.mxu0 %v1671
      %1938 = vmatmul.mubr.f32.gmra.mrb[0].mxu0 %v1669
      %v1939 = vpop.f32.mrb[0].mxu0
      %v1940 = vadd.f32 0.0, %v1939
      %v1941 = vpop.f32.mrb[0].mxu0
      %1942 = vmatprep.mubr.f32.mxu0 %v1675
      %1943 = vmatmul.mubr.f32.gmra.mrb[0].mxu0 %v1673
      %v1944 = vpop.f32.mrb[0].mxu0
      %v1945 = vadd.f32 0.0, %v1944
      %v1946 = vpop.f32.mrb[0].mxu0
      %1947 = vmatprep.mubr.f32.mxu0 %v1679
      %1948 = vmatmul.mubr.f32.gmra.mrb[0].mxu0 %v1677
      %v1949 = vpop.f32.mrb[0].mxu0
      %v1950 = vadd.f32 0.0, %v1949
      %v1951 = vpop.f32.mrb[0].mxu0
      %1952 = vmatprep.mubr.f32.mxu0 %v1683
      %1953 = vmatmul.mubr.f32.gmra.mrb[0].mxu0 %v1681
      %v1954 = vpop.f32.mrb[0].mxu0
      %v1955 = vadd.f32 0.0, %v1954
      %v1956 = vpop.f32.mrb[0].mxu0
      %1957 = vmatprep.mubr.f32.mxu0 %v1687
      %1958 = vmatmul.mubr.f32.gmra.mrb[0].mxu0 %v1685
      %v1959 = vpop.f32.mrb[0].mxu0
      %v1960 = vadd.f32 0.0, %v1959
      %v1961 = vpop.f32.mrb[0].mxu0
      %1962 = vmatprep.mubr.f32.mxu0 %v1691
      %1963 = vmatmul.mubr.f32.gmra.mrb[0].mxu0 %v1689
      %v1964 = vpop.f32.mrb[0].mxu0
      %v1965 = vadd.f32 0.0, %v1964
      %v1966 = vpop.f32.mrb[0].mxu0
      %1967 = vmatprep.mubr.f32.mxu0 %v1695
      %1968 = vmatmul.mubr.f32.gmra.mrb[0].mxu0 %v1693
      %v1969 = vpop.f32.mrb[0].mxu0
      %v1970 = vadd.f32 0.0, %v1969
      %v1971 = vpop.f32.mrb[0].mxu0
      %1972 = vmatprep.mubr.f32.mxu0 %v1699
      %1973 = vmatmul.mubr.f32.gmra.mrb[0].mxu0 %v1697
      %v1974 = vpop.f32.mrb[0].mxu0
      %v1975 = vadd.f32 0.0, %v1974
      %v1976 = vpop.f32.mrb[0].mxu0
      %1977 = vmatprep.mubr.f32.mxu0 %v1703
      %1978 = vmatmul.mubr.f32.gmra.mrb[0].mxu0 %v1701
      %v1979 = vpop.f32.mrb[0].mxu0
      %v1980 = vadd.f32 0.0, %v1979
      %v1981 = vpop.f32.mrb[0].mxu0
      %1982 = vmatprep.mubr.f32.mxu0 %v1707
      %1983 = vmatmul.mubr.f32.gmra.mrb[0].mxu0 %v1705
      %v1984 = vpop.f32.mrb[0].mxu0
      %v1985 = vadd.f32 0.0, %v1984
      %v1986 = vpop.f32.mrb[0].mxu0
      %1987 = vmatprep.mubr.f32.mxu0 %v1711
      %1988 = vmatmul.mubr.f32.gmra.mrb[0].mxu0 %v1709
      %v1989 = vpop.f32.mrb[0].mxu0
      %v1990 = vadd.f32 0.0, %v1989
      %v1991 = vpop.f32.mrb[0].mxu0
      %1992 = vmatprep.mubr.f32.mxu0 %v1715
      %1993 = vmatmul.mubr.f32.gmra.mrb[0].mxu0 %v1713
      %v1994 = vpop.f32.mrb[0].mxu0
      %v1995 = vadd.f32 0.0, %v1994
      %v1996 = vpop.f32.mrb[0].mxu0
      %1997 = vmatprep.mubr.f32.mxu0 %v1719
      %1998 = vmatmul.mubr.f32.gmra.mrb[0].mxu0 %v1717
      %v1999 = vpop.f32.mrb[0].mxu0
      %v2000 = vadd.f32 0.0, %v1999
      %v2001 = vpop.f32.mrb[0].mxu0
      %2002 = vmatprep.mubr.f32.mxu0 %v1723
      %2003 = vmatmul.mubr.f32.gmra.mrb[0].mxu0 %v1721
      %v2004 = vpop.f32.mrb[0].mxu0
      %v2005 = vadd.f32 0.0, %v2004
      %v2006 = vpop.f32.mrb[0].mxu0
      %2007 = vmatprep.mubr.f32.mxu0 %v1727
      %2008 = vmatmul.mubr.f32.gmra.mrb[0].mxu0 %v1725
      %v2009 = vpop.f32.mrb[0].mxu0
      %v2010 = vadd.f32 0.0, %v2009
      %v2011 = vpop.f32.mrb[0].mxu0
      %2012 = vmatprep.mubr.f32.mxu0 %v1731
      %2013 = vmatmul.mubr.f32.gmra.mrb[0].mxu0 %v1729
      %v2014 = vpop.f32.mrb[0].mxu0
      %v2015 = vadd.f32 0.0, %v2014
      %v2016 = vpop.f32.mrb[0].mxu0
      %2017 = vmatprep.mubr.f32.mxu0 %v1735
      %2018 = vmatmul.mubr.f32.gmra.mrb[0].mxu0 %v1733
      %v2019 = vpop.f32.mrb[0].mxu0
      %v2020 = vadd.f32 0.0, %v2019
      %v2021 = vpop.f32.mrb[0].mxu0
      %2022 = vmatprep.mubr.f32.mxu0 %v1739
      %2023 = vmatmul.mubr.f32.gmra.mrb[0].mxu0 %v1737
      %v2024 = vpop.f32.mrb[0].mxu0
      %v2025 = vadd.f32 0.0, %v2024
      %v2026 = vpop.f32.mrb[0].mxu0
      %2027 = vmatprep.mubr.f32.mxu0 %v1743
      %2028 = vmatmul.mubr.f32.gmra.mrb[0].mxu0 %v1741
      %v2029 = vpop.f32.mrb[0].mxu0
      %v2030 = vadd.f32 0.0, %v2029
      %v2031 = vpop.f32.mrb[0].mxu0
      %2032 = vmatprep.mubr.f32.mxu0 %v1747
      %2033 = vmatmul.mubr.f32.gmra.mrb[0].mxu0 %v1745
      %v2034 = vpop.f32.mrb[0].mxu0
      %v2035 = vadd.f32 0.0, %v2034
      %v2036 = vpop.f32.mrb[0].mxu0
      %2037 = vmatprep.mubr.f32.mxu0 %v1751
      %2038 = vmatmul.mubr.f32.gmra.mrb[0].mxu0 %v1749
      %v2039 = vpop.f32.mrb[0].mxu0
      %v2040 = vadd.f32 0.0, %v2039
      %v2041 = vpop.f32.mrb[0].mxu0
      %2042 = vmatprep.mubr.f32.mxu0 %v1755
      %2043 = vmatmul.mubr.f32.gmra.mrb[0].mxu0 %v1753
      %v2044 = vpop.f32.mrb[0].mxu0
      %v2045 = vadd.f32 0.0, %v2044
      %v2046 = vpop.f32.mrb[0].mxu0
      %2047 = vmatprep.mubr.f32.mxu0 %v1759
      %2048 = vmatmul.mubr.f32.gmra.mrb[0].mxu0 %v1757
      %v2049 = vpop.f32.mrb[0].mxu0
      %v2050 = vadd.f32 0.0, %v2049
      %v2051 = vpop.f32.mrb[0].mxu0
      %2052 = vmatprep.mubr.f32.mxu0 %v1763
      %2053 = vmatmul.mubr.f32.gmra.mrb[0].mxu0 %v1761
      %v2054 = vpop.f32.mrb[0].mxu0
      %v2055 = vadd.f32 0.0, %v2054
      %v2056 = vpop.f32.mrb[0].mxu0
      %2057 = vmatprep.mubr.f32.mxu0 %v1767
      %2058 = vmatmul.mubr.f32.gmra.mrb[0].mxu0 %v1765
      %v2059 = vpop.f32.mrb[0].mxu0
      %v2060 = vadd.f32 0.0, %v2059
      %v2061 = vpop.f32.mrb[0].mxu0
      %2062 = vmatprep.mubr.f32.mxu0 %v1771
      %2063 = vmatmul.mubr.f32.gmra.mrb[0].mxu0 %v1769
      %v2064 = vpop.f32.mrb[0].mxu0
      %v2065 = vadd.f32 0.0, %v2064
      %v2066 = vpop.f32.mrb[0].mxu0
      %2067 = vmatprep.mubr.f32.mxu0 %v1775
      %2068 = vmatmul.mubr.f32.gmra.mrb[0].mxu0 %v1773
      %v2069 = vpop.f32.mrb[0].mxu0
      %v2070 = vadd.f32 0.0, %v2069
      %v2071 = vpop.f32.mrb[0].mxu0
      %2072 = vdwg.mxu0
      %2073 = vmatprep.subr.mxu0 0.0
      %2074 = vmatpush1.msra.mxu0 %v1915
      %2075 = vmatprep.subr.mxu0 0.0
      %2076 = vmatpush1.msra.mxu0 %v1920
      %2077 = vmatprep.subr.mxu0 0.0
      %2078 = vmatpush1.msra.mxu0 %v1925
      %2079 = vmatprep.subr.mxu0 0.0
      %2080 = vmatpush1.msra.mxu0 %v1930
      %2081 = vmatprep.subr.mxu0 0.0
      %2082 = vmatpush1.msra.mxu0 %v1935
      %2083 = vmatprep.subr.mxu0 0.0
      %2084 = vmatpush1.msra.mxu0 %v1940
      %2085 = vmatprep.subr.mxu0 0.0
      %2086 = vmatpush1.msra.mxu0 %v1945
      %2087 = vmatprep.subr.mxu0 0.0
      %2088 = vmatpush1.msra.mxu0 %v1950
      %2089 = vmatprep.subr.mxu0 0.0
      %2090 = vmatpush1.msra.mxu0 %v1955
      %2091 = vmatprep.subr.mxu0 0.0
      %2092 = vmatpush1.msra.mxu0 %v1960
      %2093 = vmatprep.subr.mxu0 0.0
      %2094 = vmatpush1.msra.mxu0 %v1965
      %2095 = vmatprep.subr.mxu0 0.0
      %2096 = vmatpush1.msra.mxu0 %v1970
      %2097 = vmatprep.subr.mxu0 0.0
      %2098 = vmatpush1.msra.mxu0 %v1975
      %2099 = vmatprep.subr.mxu0 0.0
      %2100 = vmatpush1.msra.mxu0 %v1980
      %2101 = vmatprep.subr.mxu0 0.0
      %2102 = vmatpush1.msra.mxu0 %v1985
      %2103 = vmatprep.subr.mxu0 0.0
      %2104 = vmatpush1.msra.mxu0 %v1990
      %2105 = vmatprep.subr.mxu0 0.0
      %2106 = vmatpush1.msra.mxu0 %v1995
      %2107 = vmatprep.subr.mxu0 0.0
      %2108 = vmatpush1.msra.mxu0 %v2000
      %2109 = vmatprep.subr.mxu0 0.0
      %2110 = vmatpush1.msra.mxu0 %v2005
      %2111 = vmatprep.subr.mxu0 0.0
      %2112 = vmatpush1.msra.mxu0 %v2010
      %2113 = vmatprep.subr.mxu0 0.0
      %2114 = vmatpush1.msra.mxu0 %v2015
      %2115 = vmatprep.subr.mxu0 0.0
      %2116 = vmatpush1.msra.mxu0 %v2020
      %2117 = vmatprep.subr.mxu0 0.0
      %2118 = vmatpush1.msra.mxu0 %v2025
      %2119 = vmatprep.subr.mxu0 0.0
      %2120 = vmatpush1.msra.mxu0 %v2030
      %2121 = vmatprep.subr.mxu0 0.0
      %2122 = vmatpush1.msra.mxu0 %v2035
      %2123 = vmatprep.subr.mxu0 0.0
      %2124 = vmatpush1.msra.mxu0 %v2040
      %2125 = vmatprep.subr.mxu0 0.0
      %2126 = vmatpush1.msra.mxu0 %v2045
      %2127 = vmatprep.subr.mxu0 0.0
      %2128 = vmatpush1.msra.mxu0 %v2050
      %2129 = vmatprep.subr.mxu0 0.0
      %2130 = vmatpush1.msra.mxu0 %v2055
      %2131 = vmatprep.subr.mxu0 0.0
      %2132 = vmatpush1.msra.mxu0 %v2060
      %2133 = vmatprep.subr.mxu0 0.0
      %2134 = vmatpush1.msra.mxu0 %v2065
      %2135 = vmatprep.subr.mxu0 0.0
      %2136 = vmatpush1.msra.mxu0 %v2070
      %2137 = vmatprep.mubr.f32.mxu0 %v1135
      %2138 = vmatmul.mubr.f32.gmra.mrb[0].mxu0 %v1134
      %v2139 = vpop.f32.mrb[0].mxu0
      %v2140 = vadd.f32 0.0, %v2139
      %v2141 = vpop.f32.mrb[0].mxu0
      %2142 = vmatprep.mubr.f32.mxu0 %v1137
      %2143 = vmatmul.mubr.f32.gmra.mrb[0].mxu0 %v1136
      %v2144 = vpop.f32.mrb[0].mxu0
      %v2145 = vadd.f32 0.0, %v2144
      %v2146 = vpop.f32.mrb[0].mxu0
      %2147 = vmatprep.mubr.f32.mxu0 %v1139
      %2148 = vmatmul.mubr.f32.gmra.mrb[0].mxu0 %v1138
      %v2149 = vpop.f32.mrb[0].mxu0
      %v2150 = vadd.f32 0.0, %v2149
      %v2151 = vpop.f32.mrb[0].mxu0
      %2152 = vmatprep.mubr.f32.mxu0 %v1141
      %2153 = vmatmul.mubr.f32.gmra.mrb[0].mxu0 %v1140
      %v2154 = vpop.f32.mrb[0].mxu0
      %v2155 = vadd.f32 0.0, %v2154
      %v2156 = vpop.f32.mrb[0].mxu0
      %2157 = vmatprep.mubr.f32.mxu0 %v1143
      %2158 = vmatmul.mubr.f32.gmra.mrb[0].mxu0 %v1142
      %v2159 = vpop.f32.mrb[0].mxu0
      %v2160 = vadd.f32 0.0, %v2159
      %v2161 = vpop.f32.mrb[0].mxu0
      %2162 = vmatprep.mubr.f32.mxu0 %v1145
      %2163 = vmatmul.mubr.f32.gmra.mrb[0].mxu0 %v1144
      %v2164 = vpop.f32.mrb[0].mxu0
      %v2165 = vadd.f32 0.0, %v2164
      %v2166 = vpop.f32.mrb[0].mxu0
      %2167 = vmatprep.mubr.f32.mxu0 %v1147
      %2168 = vmatmul.mubr.f32.gmra.mrb[0].mxu0 %v1146
      %v2169 = vpop.f32.mrb[0].mxu0
      %v2170 = vadd.f32 0.0, %v2169
      %v2171 = vpop.f32.mrb[0].mxu0
      %2172 = vmatprep.mubr.f32.mxu0 %v1149
      %2173 = vmatmul.mubr.f32.gmra.mrb[0].mxu0 %v1148
      %v2174 = vpop.f32.mrb[0].mxu0
      %v2175 = vadd.f32 0.0, %v2174
      %v2176 = vpop.f32.mrb[0].mxu0
      %2177 = vdwg.mxu0
      %2178 = vrot.lane.b32.xlu0 %v866, 126
      %v2179 = vpop.permute.xlu0 %2178
      %2180 = vrot.lane.b32.xlu0 %v867, 126
      %v2181 = vpop.permute.xlu0 %2180
      %2182 = vrot.lane.b32.xlu0 %v868, 126
      %v2183 = vpop.permute.xlu0 %2182
      %2184 = vrot.lane.b32.xlu0 %v869, 126
      %v2185 = vpop.permute.xlu0 %2184
      %2186 = vrot.lane.b32.xlu0 %v870, 126
      %v2187 = vpop.permute.xlu0 %2186
      %2188 = vrot.lane.b32.xlu0 %v871, 126
      %v2189 = vpop.permute.xlu0 %2188
      %2190 = vrot.lane.b32.xlu0 %v872, 126
      %v2191 = vpop.permute.xlu0 %2190
      %2192 = vrot.lane.b32.xlu0 %v873, 126
      %v2193 = vpop.permute.xlu0 %2192
      %2194 = vrot.lane.b32.xlu0 %v874, 126
      %v2195 = vpop.permute.xlu0 %2194
      %2196 = vrot.lane.b32.xlu0 %v875, 126
      %v2197 = vpop.permute.xlu0 %2196
      %2198 = vrot.lane.b32.xlu0 %v876, 126
      %v2199 = vpop.permute.xlu0 %2198
      %2200 = vrot.lane.b32.xlu0 %v877, 126
      %v2201 = vpop.permute.xlu0 %2200
      %2202 = vrot.lane.b32.xlu0 %v878, 126
      %v2203 = vpop.permute.xlu0 %2202
      %2204 = vrot.lane.b32.xlu0 %v879, 126
      %v2205 = vpop.permute.xlu0 %2204
      %2206 = vrot.lane.b32.xlu0 %v880, 126
      %v2207 = vpop.permute.xlu0 %2206
      %2208 = vrot.lane.b32.xlu0 %v881, 126
      %v2209 = vpop.permute.xlu0 %2208
      %2210 = vrot.lane.b32.xlu0 %v882, 126
      %v2211 = vpop.permute.xlu0 %2210
      %2212 = vrot.lane.b32.xlu0 %v883, 126
      %v2213 = vpop.permute.xlu0 %2212
      %2214 = vrot.lane.b32.xlu0 %v884, 126
      %v2215 = vpop.permute.xlu0 %2214
      %2216 = vrot.lane.b32.xlu0 %v885, 126
      %v2217 = vpop.permute.xlu0 %2216
      %2218 = vrot.lane.b32.xlu0 %v886, 126
      %v2219 = vpop.permute.xlu0 %2218
      %2220 = vrot.lane.b32.xlu0 %v887, 126
      %v2221 = vpop.permute.xlu0 %2220
      %2222 = vrot.lane.b32.xlu0 %v888, 126
      %v2223 = vpop.permute.xlu0 %2222
      %2224 = vrot.lane.b32.xlu0 %v889, 126
      %v2225 = vpop.permute.xlu0 %2224
      %2226 = vrot.lane.b32.xlu0 %v890, 126
      %v2227 = vpop.permute.xlu0 %2226
      %2228 = vrot.lane.b32.xlu0 %v891, 126
      %v2229 = vpop.permute.xlu0 %2228
      %2230 = vrot.lane.b32.xlu0 %v892, 126
      %v2231 = vpop.permute.xlu0 %2230
      %2232 = vrot.lane.b32.xlu0 %v893, 126
      %v2233 = vpop.permute.xlu0 %2232
      %2234 = vrot.lane.b32.xlu0 %v894, 126
      %v2235 = vpop.permute.xlu0 %2234
      %2236 = vrot.lane.b32.xlu0 %v895, 126
      %v2237 = vpop.permute.xlu0 %2236
      %2238 = vrot.lane.b32.xlu0 %v896, 126
      %v2239 = vpop.permute.xlu0 %2238
      %2240 = vrot.lane.b32.xlu0 %v897, 126
      %v2241 = vpop.permute.xlu0 %2240
      %v2242 = vrot.slane %v498, 2
      %v2243 = vrot.slane %v500, 2
      %v2244 = vsel %vm1150, %v2179, 0
      %v2246 = vsel %vm1150, %v2181, 0
      %v2248 = vsel %vm1150, %v2183, 0
      %v2250 = vsel %vm1150, %v2185, 0
      %v2252 = vsel %vm1150, %v2187, 0
      %v2254 = vsel %vm1150, %v2189, 0
      %v2256 = vsel %vm1150, %v2191, 0
      %v2258 = vsel %vm1150, %v2193, 0
      %v2260 = vsel %vm1150, %v2195, 0
      %v2262 = vsel %vm1150, %v2197, 0
      %v2264 = vsel %vm1150, %v2199, 0
      %v2266 = vsel %vm1150, %v2201, 0
      %v2268 = vsel %vm1150, %v2203, 0
      %v2270 = vsel %vm1150, %v2205, 0
      %v2272 = vsel %vm1150, %v2207, 0
      %v2274 = vsel %vm1150, %v2209, 0
      %v2276 = vsel %vm1150, %v2211, 0
      %v2278 = vsel %vm1150, %v2213, 0
      %v2280 = vsel %vm1150, %v2215, 0
      %v2282 = vsel %vm1150, %v2217, 0
      %v2284 = vsel %vm1150, %v2219, 0
      %v2286 = vsel %vm1150, %v2221, 0
      %v2288 = vsel %vm1150, %v2223, 0
      %v2290 = vsel %vm1150, %v2225, 0
      %v2292 = vsel %vm1150, %v2227, 0
      %v2294 = vsel %vm1150, %v2229, 0
      %v2296 = vsel %vm1150, %v2231, 0
      %v2298 = vsel %vm1150, %v2233, 0
      %v2300 = vsel %vm1150, %v2235, 0
      %v2302 = vsel %vm1150, %v2237, 0
      %v2304 = vsel %vm1150, %v2239, 0
      %v2306 = vsel %vm1150, %v2241, 0
      %v2308 = vsel %vm1247, %v2242, 0
      %v2310 = vsel %vm1247, %v2243, 0
      %2312 = vmatprep.subr.mxu0 %v2310
      %2313 = vmatpush1.msra.mxu0 %v2308
      %2314 = vmatprep.subr.mxu0 0.0
      %2315 = vmatpush1.msra.mxu0 0.0
      %2316 = vmatprep.subr.mxu0 0.0
      %2317 = vmatpush1.msra.mxu0 0.0
      %2318 = vmatprep.subr.mxu0 0.0
      %2319 = vmatpush1.msra.mxu0 0.0
      %2320 = vmatprep.subr.mxu0 0.0
      %2321 = vmatpush1.msra.mxu0 0.0
      %2322 = vmatprep.subr.mxu0 0.0
      %2323 = vmatpush1.msra.mxu0 0.0
      %2324 = vmatprep.subr.mxu0 0.0
      %2325 = vmatpush1.msra.mxu0 0.0
      %2326 = vmatprep.subr.mxu0 0.0
      %2327 = vmatpush1.msra.mxu0 0.0
      %2328 = vmatprep.subr.mxu0 0.0
      %2329 = vmatpush1.msra.mxu0 0.0
      %2330 = vmatprep.subr.mxu0 0.0
      %2331 = vmatpush1.msra.mxu0 0.0
      %2332 = vmatprep.subr.mxu0 0.0
      %2333 = vmatpush1.msra.mxu0 0.0
      %2334 = vmatprep.subr.mxu0 0.0
      %2335 = vmatpush1.msra.mxu0 0.0
      %2336 = vmatprep.subr.mxu0 0.0
      %2337 = vmatpush1.msra.mxu0 0.0
      %2338 = vmatprep.subr.mxu0 0.0
      %2339 = vmatpush1.msra.mxu0 0.0
      %2340 = vmatprep.subr.mxu0 0.0
      %2341 = vmatpush1.msra.mxu0 0.0
      %2342 = vmatprep.subr.mxu0 0.0
      %2343 = vmatpush1.msra.mxu0 0.0
      %2344 = vmatprep.subr.mxu0 0.0
      %2345 = vmatpush1.msra.mxu0 0.0
      %2346 = vmatprep.subr.mxu0 0.0
      %2347 = vmatpush1.msra.mxu0 0.0
      %2348 = vmatprep.subr.mxu0 0.0
      %2349 = vmatpush1.msra.mxu0 0.0
      %2350 = vmatprep.subr.mxu0 0.0
      %2351 = vmatpush1.msra.mxu0 0.0
      %2352 = vmatprep.subr.mxu0 0.0
      %2353 = vmatpush1.msra.mxu0 0.0
      %2354 = vmatprep.subr.mxu0 0.0
      %2355 = vmatpush1.msra.mxu0 0.0
      %2356 = vmatprep.subr.mxu0 0.0
      %2357 = vmatpush1.msra.mxu0 0.0
      %2358 = vmatprep.subr.mxu0 0.0
      %2359 = vmatpush1.msra.mxu0 0.0
      %2360 = vmatprep.subr.mxu0 0.0
      %2361 = vmatpush1.msra.mxu0 0.0
      %2362 = vmatprep.subr.mxu0 0.0
      %2363 = vmatpush1.msra.mxu0 0.0
      %2364 = vmatprep.subr.mxu0 0.0
      %2365 = vmatpush1.msra.mxu0 0.0
      %2366 = vmatprep.subr.mxu0 0.0
      %2367 = vmatpush1.msra.mxu0 0.0
      %2368 = vmatprep.subr.mxu0 0.0
      %2369 = vmatpush1.msra.mxu0 0.0
      %2370 = vmatprep.subr.mxu0 0.0
      %2371 = vmatpush1.msra.mxu0 0.0
      %2372 = vmatprep.subr.mxu0 0.0
      %2373 = vmatpush1.msra.mxu0 0.0
      %2374 = vmatprep.subr.mxu0 0.0
      %2375 = vmatpush1.msra.mxu0 0.0
      %2376 = vmatprep.mubr.f32.mxu0 0.0
      %2377 = vmatmul.mubr.f32.gmra.mrb[0].mxu0 %v2244
      %v2378 = vpop.f32.mrb[0].mxu0
      %v2379 = vadd.f32 0.0, %v2378
      %v2380 = vpop.f32.mrb[0].mxu0
      %v2381 = vadd.f32 0.0, %v2380
      %2382 = vmatprep.mubr.f32.mxu0 0.0
      %2383 = vmatmul.mubr.f32.gmra.mrb[0].mxu0 %v2246
      %v2384 = vpop.f32.mrb[0].mxu0
      %v2385 = vadd.f32 0.0, %v2384
      %v2386 = vpop.f32.mrb[0].mxu0
      %v2387 = vadd.f32 0.0, %v2386
      %2388 = vmatprep.mubr.f32.mxu0 0.0
      %2389 = vmatmul.mubr.f32.gmra.mrb[0].mxu0 %v2248
      %v2390 = vpop.f32.mrb[0].mxu0
      %v2391 = vadd.f32 0.0, %v2390
      %v2392 = vpop.f32.mrb[0].mxu0
      %v2393 = vadd.f32 0.0, %v2392
      %2394 = vmatprep.mubr.f32.mxu0 0.0
      %2395 = vmatmul.mubr.f32.gmra.mrb[0].mxu0 %v2250
      %v2396 = vpop.f32.mrb[0].mxu0
      %v2397 = vadd.f32 0.0, %v2396
      %v2398 = vpop.f32.mrb[0].mxu0
      %v2399 = vadd.f32 0.0, %v2398
      %2400 = vmatprep.mubr.f32.mxu0 0.0
      %2401 = vmatmul.mubr.f32.gmra.mrb[0].mxu0 %v2252
      %v2402 = vpop.f32.mrb[0].mxu0
      %v2403 = vadd.f32 0.0, %v2402
      %v2404 = vpop.f32.mrb[0].mxu0
      %v2405 = vadd.f32 0.0, %v2404
      %2406 = vmatprep.mubr.f32.mxu0 0.0
      %2407 = vmatmul.mubr.f32.gmra.mrb[0].mxu0 %v2254
      %v2408 = vpop.f32.mrb[0].mxu0
      %v2409 = vadd.f32 0.0, %v2408
      %v2410 = vpop.f32.mrb[0].mxu0
      %v2411 = vadd.f32 0.0, %v2410
      %2412 = vmatprep.mubr.f32.mxu0 0.0
      %2413 = vmatmul.mubr.f32.gmra.mrb[0].mxu0 %v2256
      %v2414 = vpop.f32.mrb[0].mxu0
      %v2415 = vadd.f32 0.0, %v2414
      %v2416 = vpop.f32.mrb[0].mxu0
      %v2417 = vadd.f32 0.0, %v2416
      %2418 = vmatprep.mubr.f32.mxu0 0.0
      %2419 = vmatmul.mubr.f32.gmra.mrb[0].mxu0 %v2258
      %v2420 = vpop.f32.mrb[0].mxu0
      %v2421 = vadd.f32 0.0, %v2420
      %v2422 = vpop.f32.mrb[0].mxu0
      %v2423 = vadd.f32 0.0, %v2422
      %2424 = vmatprep.mubr.f32.mxu0 0.0
      %2425 = vmatmul.mubr.f32.gmra.mrb[0].mxu0 %v2260
      %v2426 = vpop.f32.mrb[0].mxu0
      %v2427 = vadd.f32 0.0, %v2426
      %v2428 = vpop.f32.mrb[0].mxu0
      %v2429 = vadd.f32 0.0, %v2428
      %2430 = vmatprep.mubr.f32.mxu0 0.0
      %2431 = vmatmul.mubr.f32.gmra.mrb[0].mxu0 %v2262
      %v2432 = vpop.f32.mrb[0].mxu0
      %v2433 = vadd.f32 0.0, %v2432
      %v2434 = vpop.f32.mrb[0].mxu0
      %v2435 = vadd.f32 0.0, %v2434
      %2436 = vmatprep.mubr.f32.mxu0 0.0
      %2437 = vmatmul.mubr.f32.gmra.mrb[0].mxu0 %v2264
      %v2438 = vpop.f32.mrb[0].mxu0
      %v2439 = vadd.f32 0.0, %v2438
      %v2440 = vpop.f32.mrb[0].mxu0
      %v2441 = vadd.f32 0.0, %v2440
      %2442 = vmatprep.mubr.f32.mxu0 0.0
      %2443 = vmatmul.mubr.f32.gmra.mrb[0].mxu0 %v2266
      %v2444 = vpop.f32.mrb[0].mxu0
      %v2445 = vadd.f32 0.0, %v2444
      %v2446 = vpop.f32.mrb[0].mxu0
      %v2447 = vadd.f32 0.0, %v2446
      %2448 = vmatprep.mubr.f32.mxu0 0.0
      %2449 = vmatmul.mubr.f32.gmra.mrb[0].mxu0 %v2268
      %v2450 = vpop.f32.mrb[0].mxu0
      %v2451 = vadd.f32 0.0, %v2450
      %v2452 = vpop.f32.mrb[0].mxu0
      %v2453 = vadd.f32 0.0, %v2452
      %2454 = vmatprep.mubr.f32.mxu0 0.0
      %2455 = vmatmul.mubr.f32.gmra.mrb[0].mxu0 %v2270
      %v2456 = vpop.f32.mrb[0].mxu0
      %v2457 = vadd.f32 0.0, %v2456
      %v2458 = vpop.f32.mrb[0].mxu0
      %v2459 = vadd.f32 0.0, %v2458
      %2460 = vmatprep.mubr.f32.mxu0 0.0
      %2461 = vmatmul.mubr.f32.gmra.mrb[0].mxu0 %v2272
      %v2462 = vpop.f32.mrb[0].mxu0
      %v2463 = vadd.f32 0.0, %v2462
      %v2464 = vpop.f32.mrb[0].mxu0
      %v2465 = vadd.f32 0.0, %v2464
      %2466 = vmatprep.mubr.f32.mxu0 0.0
      %2467 = vmatmul.mubr.f32.gmra.mrb[0].mxu0 %v2274
      %v2468 = vpop.f32.mrb[0].mxu0
      %v2469 = vadd.f32 0.0, %v2468
      %v2470 = vpop.f32.mrb[0].mxu0
      %v2471 = vadd.f32 0.0, %v2470
      %2472 = vmatprep.mubr.f32.mxu0 0.0
      %2473 = vmatmul.mubr.f32.gmra.mrb[0].mxu0 %v2276
      %v2474 = vpop.f32.mrb[0].mxu0
      %v2475 = vadd.f32 0.0, %v2474
      %v2476 = vpop.f32.mrb[0].mxu0
      %v2477 = vadd.f32 0.0, %v2476
      %2478 = vmatprep.mubr.f32.mxu0 0.0
      %2479 = vmatmul.mubr.f32.gmra.mrb[0].mxu0 %v2278
      %v2480 = vpop.f32.mrb[0].mxu0
      %v2481 = vadd.f32 0.0, %v2480
      %v2482 = vpop.f32.mrb[0].mxu0
      %v2483 = vadd.f32 0.0, %v2482
      %2484 = vmatprep.mubr.f32.mxu0 0.0
      %2485 = vmatmul.mubr.f32.gmra.mrb[0].mxu0 %v2280
      %v2486 = vpop.f32.mrb[0].mxu0
      %v2487 = vadd.f32 0.0, %v2486
      %v2488 = vpop.f32.mrb[0].mxu0
      %v2489 = vadd.f32 0.0, %v2488
      %2490 = vmatprep.mubr.f32.mxu0 0.0
      %2491 = vmatmul.mubr.f32.gmra.mrb[0].mxu0 %v2282
      %v2492 = vpop.f32.mrb[0].mxu0
      %v2493 = vadd.f32 0.0, %v2492
      %v2494 = vpop.f32.mrb[0].mxu0
      %v2495 = vadd.f32 0.0, %v2494
      %2496 = vmatprep.mubr.f32.mxu0 0.0
      %2497 = vmatmul.mubr.f32.gmra.mrb[0].mxu0 %v2284
      %v2498 = vpop.f32.mrb[0].mxu0
      %v2499 = vadd.f32 0.0, %v2498
      %v2500 = vpop.f32.mrb[0].mxu0
      %v2501 = vadd.f32 0.0, %v2500
      %2502 = vmatprep.mubr.f32.mxu0 0.0
      %2503 = vmatmul.mubr.f32.gmra.mrb[0].mxu0 %v2286
      %v2504 = vpop.f32.mrb[0].mxu0
      %v2505 = vadd.f32 0.0, %v2504
      %v2506 = vpop.f32.mrb[0].mxu0
      %v2507 = vadd.f32 0.0, %v2506
      %2508 = vmatprep.mubr.f32.mxu0 0.0
      %2509 = vmatmul.mubr.f32.gmra.mrb[0].mxu0 %v2288
      %v2510 = vpop.f32.mrb[0].mxu0
      %v2511 = vadd.f32 0.0, %v2510
      %v2512 = vpop.f32.mrb[0].mxu0
      %v2513 = vadd.f32 0.0, %v2512
      %2514 = vmatprep.mubr.f32.mxu0 0.0
      %2515 = vmatmul.mubr.f32.gmra.mrb[0].mxu0 %v2290
      %v2516 = vpop.f32.mrb[0].mxu0
      %v2517 = vadd.f32 0.0, %v2516
      %v2518 = vpop.f32.mrb[0].mxu0
      %v2519 = vadd.f32 0.0, %v2518
      %2520 = vmatprep.mubr.f32.mxu0 0.0
      %2521 = vmatmul.mubr.f32.gmra.mrb[0].mxu0 %v2292
      %v2522 = vpop.f32.mrb[0].mxu0
      %v2523 = vadd.f32 0.0, %v2522
      %v2524 = vpop.f32.mrb[0].mxu0
      %v2525 = vadd.f32 0.0, %v2524
      %2526 = vmatprep.mubr.f32.mxu0 0.0
      %2527 = vmatmul.mubr.f32.gmra.mrb[0].mxu0 %v2294
      %v2528 = vpop.f32.mrb[0].mxu0
      %v2529 = vadd.f32 0.0, %v2528
      %v2530 = vpop.f32.mrb[0].mxu0
      %v2531 = vadd.f32 0.0, %v2530
      %2532 = vmatprep.mubr.f32.mxu0 0.0
      %2533 = vmatmul.mubr.f32.gmra.mrb[0].mxu0 %v2296
      %v2534 = vpop.f32.mrb[0].mxu0
      %v2535 = vadd.f32 0.0, %v2534
      %v2536 = vpop.f32.mrb[0].mxu0
      %v2537 = vadd.f32 0.0, %v2536
      %2538 = vmatprep.mubr.f32.mxu0 0.0
      %2539 = vmatmul.mubr.f32.gmra.mrb[0].mxu0 %v2298
      %v2540 = vpop.f32.mrb[0].mxu0
      %v2541 = vadd.f32 0.0, %v2540
      %v2542 = vpop.f32.mrb[0].mxu0
      %v2543 = vadd.f32 0.0, %v2542
      %2544 = vmatprep.mubr.f32.mxu0 0.0
      %2545 = vmatmul.mubr.f32.gmra.mrb[0].mxu0 %v2300
      %v2546 = vpop.f32.mrb[0].mxu0
      %v2547 = vadd.f32 0.0, %v2546
      %v2548 = vpop.f32.mrb[0].mxu0
      %v2549 = vadd.f32 0.0, %v2548
      %2550 = vmatprep.mubr.f32.mxu0 0.0
      %2551 = vmatmul.mubr.f32.gmra.mrb[0].mxu0 %v2302
      %v2552 = vpop.f32.mrb[0].mxu0
      %v2553 = vadd.f32 0.0, %v2552
      %v2554 = vpop.f32.mrb[0].mxu0
      %v2555 = vadd.f32 0.0, %v2554
      %2556 = vmatprep.mubr.f32.mxu0 0.0
      %2557 = vmatmul.mubr.f32.gmra.mrb[0].mxu0 %v2304
      %v2558 = vpop.f32.mrb[0].mxu0
      %v2559 = vadd.f32 0.0, %v2558
      %v2560 = vpop.f32.mrb[0].mxu0
      %v2561 = vadd.f32 0.0, %v2560
      %2562 = vmatprep.mubr.f32.mxu0 0.0
      %2563 = vmatmul.mubr.f32.gmra.mrb[0].mxu0 %v2306
      %v2564 = vpop.f32.mrb[0].mxu0
      %v2565 = vadd.f32 0.0, %v2564
      %v2566 = vpop.f32.mrb[0].mxu0
      %v2567 = vadd.f32 0.0, %v2566
      %2568 = vdwg.mxu0
      %v2569 = vmax.f32 %v2379, %v2391
      %v2570 = vmax.f32 %v2381, %v2393
      %v2571 = vmax.f32 %v2385, %v2397
      %v2572 = vmax.f32 %v2387, %v2399
      %v2573 = vmax.f32 %v2569, %v2403
      %v2574 = vmax.f32 %v2570, %v2405
      %v2575 = vmax.f32 %v2571, %v2409
      %v2576 = vmax.f32 %v2572, %v2411
      %v2577 = vmax.f32 %v2573, %v2415
      %v2578 = vmax.f32 %v2574, %v2417
      %v2579 = vmax.f32 %v2575, %v2421
      %v2580 = vmax.f32 %v2576, %v2423
      %v2581 = vmax.f32 %v2577, %v2427
      %v2582 = vmax.f32 %v2578, %v2429
      %v2583 = vmax.f32 %v2579, %v2433
      %v2584 = vmax.f32 %v2580, %v2435
      %v2585 = vmax.f32 %v2581, %v2439
      %v2586 = vmax.f32 %v2582, %v2441
      %v2587 = vmax.f32 %v2583, %v2445
      %v2588 = vmax.f32 %v2584, %v2447
      %v2589 = vmax.f32 %v2585, %v2451
      %v2590 = vmax.f32 %v2586, %v2453
      %v2591 = vmax.f32 %v2587, %v2457
      %v2592 = vmax.f32 %v2588, %v2459
      %v2593 = vmax.f32 %v2589, %v2463
      %v2594 = vmax.f32 %v2590, %v2465
      %v2595 = vmax.f32 %v2591, %v2469
      %v2596 = vmax.f32 %v2592, %v2471
      %v2597 = vmax.f32 %v2593, %v2475
      %v2598 = vmax.f32 %v2594, %v2477
      %v2599 = vmax.f32 %v2595, %v2481
      %v2600 = vmax.f32 %v2596, %v2483
      %v2601 = vmax.f32 %v2597, %v2487
      %v2602 = vmax.f32 %v2598, %v2489
      %v2603 = vmax.f32 %v2599, %v2493
      %v2604 = vmax.f32 %v2600, %v2495
      %v2605 = vmax.f32 %v2601, %v2499
      %v2606 = vmax.f32 %v2602, %v2501
      %v2607 = vmax.f32 %v2603, %v2505
      %v2608 = vmax.f32 %v2604, %v2507
      %v2609 = vmax.f32 %v2605, %v2511
      %v2610 = vmax.f32 %v2606, %v2513
      %v2611 = vmax.f32 %v2607, %v2517
      %v2612 = vmax.f32 %v2608, %v2519
      %v2613 = vmax.f32 %v2609, %v2523
      %v2614 = vmax.f32 %v2610, %v2525
      %v2615 = vmax.f32 %v2611, %v2529
      %v2616 = vmax.f32 %v2612, %v2531
      %v2617 = vmax.f32 %v2613, %v2535
      %v2618 = vmax.f32 %v2614, %v2537
      %v2619 = vmax.f32 %v2615, %v2541
      %v2620 = vmax.f32 %v2616, %v2543
      %v2621 = vmax.f32 %v2617, %v2547
      %v2622 = vmax.f32 %v2618, %v2549
      %v2623 = vmax.f32 %v2619, %v2553
      %v2624 = vmax.f32 %v2620, %v2555
      %v2625 = vmax.f32 %v2621, %v2559
      %v2626 = vmax.f32 %v2622, %v2561
      %v2627 = vmax.f32 %v2623, %v2565
      %v2628 = vmax.f32 %v2624, %v2567
      %v2629 = vmax.f32 %v2625, %v2626
      %v2630 = vmax.f32 %v2627, %v2628
      %v2631 = vmax.f32 %v2629, %v2630
      %2632 = vmax.xlane.f32.xlu0 %v2631
      %v2633 = vpop.xlane.xlu0 %2632
      %v2634 = vrot.slane %v2633, 4
      %v2635 = vmax.f32 %v2633, %v2634
      %v2636 = vrot.slane %v2635, 2
      %v2637 = vmax.f32 %v2635, %v2636
      %v2638 = vrot.slane %v2637, 1
      %v2639 = vmax.f32 %v2637, %v2638
      %s2640 = vtos %v2639
      %v2641 = vstv %s2640
      %v2642 = vsub.f32 %v2379, %v2641
      %v2643 = vsub.f32 %v2381, %v2641
      %v2644 = vsub.f32 %v2385, %v2641
      %v2645 = vsub.f32 %v2387, %v2641
      %v2646 = vsub.f32 %v2391, %v2641
      %v2647 = vsub.f32 %v2393, %v2641
      %v2648 = vsub.f32 %v2397, %v2641
      %v2649 = vsub.f32 %v2399, %v2641
      %v2650 = vsub.f32 %v2403, %v2641
      %v2651 = vsub.f32 %v2405, %v2641
      %v2652 = vsub.f32 %v2409, %v2641
      %v2653 = vsub.f32 %v2411, %v2641
      %v2654 = vsub.f32 %v2415, %v2641
      %v2655 = vsub.f32 %v2417, %v2641
      %v2656 = vsub.f32 %v2421, %v2641
      %v2657 = vsub.f32 %v2423, %v2641
      %v2658 = vsub.f32 %v2427, %v2641
      %v2659 = vsub.f32 %v2429, %v2641
      %v2660 = vsub.f32 %v2433, %v2641
      %v2661 = vsub.f32 %v2435, %v2641
      %v2662 = vsub.f32 %v2439, %v2641
      %v2663 = vsub.f32 %v2441, %v2641
      %v2664 = vsub.f32 %v2445, %v2641
      %v2665 = vsub.f32 %v2447, %v2641
      %v2666 = vsub.f32 %v2451, %v2641
      %v2667 = vsub.f32 %v2453, %v2641
      %v2668 = vsub.f32 %v2457, %v2641
      %v2669 = vsub.f32 %v2459, %v2641
      %v2670 = vsub.f32 %v2463, %v2641
      %v2671 = vsub.f32 %v2465, %v2641
      %v2672 = vsub.f32 %v2469, %v2641
      %v2673 = vsub.f32 %v2471, %v2641
      %v2674 = vsub.f32 %v2475, %v2641
      %v2675 = vsub.f32 %v2477, %v2641
      %v2676 = vsub.f32 %v2481, %v2641
      %v2677 = vsub.f32 %v2483, %v2641
      %v2678 = vsub.f32 %v2487, %v2641
      %v2679 = vsub.f32 %v2489, %v2641
      %v2680 = vsub.f32 %v2493, %v2641
      %v2681 = vsub.f32 %v2495, %v2641
      %v2682 = vsub.f32 %v2499, %v2641
      %v2683 = vsub.f32 %v2501, %v2641
      %v2684 = vsub.f32 %v2505, %v2641
      %v2685 = vsub.f32 %v2507, %v2641
      %v2686 = vsub.f32 %v2511, %v2641
      %v2687 = vsub.f32 %v2513, %v2641
      %v2688 = vsub.f32 %v2517, %v2641
      %v2689 = vsub.f32 %v2519, %v2641
      %v2690 = vsub.f32 %v2523, %v2641
      %v2691 = vsub.f32 %v2525, %v2641
      %v2692 = vsub.f32 %v2529, %v2641
      %v2693 = vsub.f32 %v2531, %v2641
      %v2694 = vsub.f32 %v2535, %v2641
      %v2695 = vsub.f32 %v2537, %v2641
      %v2696 = vsub.f32 %v2541, %v2641
      %v2697 = vsub.f32 %v2543, %v2641
      %v2698 = vsub.f32 %v2547, %v2641
      %v2699 = vsub.f32 %v2549, %v2641
      %v2700 = vsub.f32 %v2553, %v2641
      %v2701 = vsub.f32 %v2555, %v2641
      %v2702 = vsub.f32 %v2559, %v2641
      %v2703 = vsub.f32 %v2561, %v2641
      %v2704 = vsub.f32 %v2565, %v2641
      %v2705 = vsub.f32 %v2567, %v2641
      %v2706 = vmul.f32 %v2642, 1.442695
      %v2707 = vpow.pop %v2706
      %v2708 = vmul.f32 %v2643, 1.442695
      %v2709 = vpow.pop %v2708
      %v2710 = vmul.f32 %v2644, 1.442695
      %v2711 = vpow.pop %v2710
      %v2712 = vmul.f32 %v2645, 1.442695
      %v2713 = vpow.pop %v2712
      %v2714 = vmul.f32 %v2646, 1.442695
      %v2715 = vpow.pop %v2714
      %v2716 = vmul.f32 %v2647, 1.442695
      %v2717 = vpow.pop %v2716
      %v2718 = vmul.f32 %v2648, 1.442695
      %v2719 = vpow.pop %v2718
      %v2720 = vmul.f32 %v2649, 1.442695
      %v2721 = vpow.pop %v2720
      %v2722 = vmul.f32 %v2650, 1.442695
      %v2723 = vpow.pop %v2722
      %v2724 = vmul.f32 %v2651, 1.442695
      %v2725 = vpow.pop %v2724
      %v2726 = vmul.f32 %v2652, 1.442695
      %v2727 = vpow.pop %v2726
      %v2728 = vmul.f32 %v2653, 1.442695
      %v2729 = vpow.pop %v2728
      %v2730 = vmul.f32 %v2654, 1.442695
      %v2731 = vpow.pop %v2730
      %v2732 = vmul.f32 %v2655, 1.442695
      %v2733 = vpow.pop %v2732
      %v2734 = vmul.f32 %v2656, 1.442695
      %v2735 = vpow.pop %v2734
      %v2736 = vmul.f32 %v2657, 1.442695
      %v2737 = vpow.pop %v2736
      %v2738 = vmul.f32 %v2658, 1.442695
      %v2739 = vpow.pop %v2738
      %v2740 = vmul.f32 %v2659, 1.442695
      %v2741 = vpow.pop %v2740
      %v2742 = vmul.f32 %v2660, 1.442695
      %v2743 = vpow.pop %v2742
      %v2744 = vmul.f32 %v2661, 1.442695
      %v2745 = vpow.pop %v2744
      %v2746 = vmul.f32 %v2662, 1.442695
      %v2747 = vpow.pop %v2746
      %v2748 = vmul.f32 %v2663, 1.442695
      %v2749 = vpow.pop %v2748
      %v2750 = vmul.f32 %v2664, 1.442695
      %v2751 = vpow.pop %v2750
      %v2752 = vmul.f32 %v2665, 1.442695
      %v2753 = vpow.pop %v2752
      %v2754 = vmul.f32 %v2666, 1.442695
      %v2755 = vpow.pop %v2754
      %v2756 = vmul.f32 %v2667, 1.442695
      %v2757 = vpow.pop %v2756
      %v2758 = vmul.f32 %v2668, 1.442695
      %v2759 = vpow.pop %v2758
      %v2760 = vmul.f32 %v2669, 1.442695
      %v2761 = vpow.pop %v2760
      %v2762 = vmul.f32 %v2670, 1.442695
      %v2763 = vpow.pop %v2762
      %v2764 = vmul.f32 %v2671, 1.442695
      %v2765 = vpow.pop %v2764
      %v2766 = vmul.f32 %v2672, 1.442695
      %v2767 = vpow.pop %v2766
      %v2768 = vmul.f32 %v2673, 1.442695
      %v2769 = vpow.pop %v2768
      %v2770 = vmul.f32 %v2674, 1.442695
      %v2771 = vpow.pop %v2770
      %v2772 = vmul.f32 %v2675, 1.442695
      %v2773 = vpow.pop %v2772
      %v2774 = vmul.f32 %v2676, 1.442695
      %v2775 = vpow.pop %v2774
      %v2776 = vmul.f32 %v2677, 1.442695
      %v2777 = vpow.pop %v2776
      %v2778 = vmul.f32 %v2678, 1.442695
      %v2779 = vpow.pop %v2778
      %v2780 = vmul.f32 %v2679, 1.442695
      %v2781 = vpow.pop %v2780
      %v2782 = vmul.f32 %v2680, 1.442695
      %v2783 = vpow.pop %v2782
      %v2784 = vmul.f32 %v2681, 1.442695
      %v2785 = vpow.pop %v2784
      %v2786 = vmul.f32 %v2682, 1.442695
      %v2787 = vpow.pop %v2786
      %v2788 = vmul.f32 %v2683, 1.442695
      %v2789 = vpow.pop %v2788
      %v2790 = vmul.f32 %v2684, 1.442695
      %v2791 = vpow.pop %v2790
      %v2792 = vmul.f32 %v2685, 1.442695
      %v2793 = vpow.pop %v2792
      %v2794 = vmul.f32 %v2686, 1.442695
      %v2795 = vpow.pop %v2794
      %v2796 = vmul.f32 %v2687, 1.442695
      %v2797 = vpow.pop %v2796
      %v2798 = vmul.f32 %v2688, 1.442695
      %v2799 = vpow.pop %v2798
      %v2800 = vmul.f32 %v2689, 1.442695
      %v2801 = vpow.pop %v2800
      %v2802 = vmul.f32 %v2690, 1.442695
      %v2803 = vpow.pop %v2802
      %v2804 = vmul.f32 %v2691, 1.442695
      %v2805 = vpow.pop %v2804
      %v2806 = vmul.f32 %v2692, 1.442695
      %v2807 = vpow.pop %v2806
      %v2808 = vmul.f32 %v2693, 1.442695
      %v2809 = vpow.pop %v2808
      %v2810 = vmul.f32 %v2694, 1.442695
      %v2811 = vpow.pop %v2810
      %v2812 = vmul.f32 %v2695, 1.442695
      %v2813 = vpow.pop %v2812
      %v2814 = vmul.f32 %v2696, 1.442695
      %v2815 = vpow.pop %v2814
      %v2816 = vmul.f32 %v2697, 1.442695
      %v2817 = vpow.pop %v2816
      %v2818 = vmul.f32 %v2698, 1.442695
      %v2819 = vpow.pop %v2818
      %v2820 = vmul.f32 %v2699, 1.442695
      %v2821 = vpow.pop %v2820
      %v2822 = vmul.f32 %v2700, 1.442695
      %v2823 = vpow.pop %v2822
      %v2824 = vmul.f32 %v2701, 1.442695
      %v2825 = vpow.pop %v2824
      %v2826 = vmul.f32 %v2702, 1.442695
      %v2827 = vpow.pop %v2826
      %v2828 = vmul.f32 %v2703, 1.442695
      %v2829 = vpow.pop %v2828
      %v2830 = vmul.f32 %v2704, 1.442695
      %v2831 = vpow.pop %v2830
      %v2832 = vmul.f32 %v2705, 1.442695
      %v2833 = vpow.pop %v2832
      %v2834 = vadd.f32 %v2707, %v2709
      %v2835 = vadd.f32 %v2834, %v2711
      %v2836 = vadd.f32 %v2835, %v2713
      %v2837 = vadd.f32 %v2836, %v2715
      %v2838 = vadd.f32 %v2837, %v2717
      %v2839 = vadd.f32 %v2838, %v2719
      %v2840 = vadd.f32 %v2839, %v2721
      %v2841 = vadd.f32 %v2840, %v2723
      %v2842 = vadd.f32 %v2841, %v2725
      %v2843 = vadd.f32 %v2842, %v2727
      %v2844 = vadd.f32 %v2843, %v2729
      %v2845 = vadd.f32 %v2844, %v2731
      %v2846 = vadd.f32 %v2845, %v2733
      %v2847 = vadd.f32 %v2846, %v2735
      %v2848 = vadd.f32 %v2847, %v2737
      %v2849 = vadd.f32 %v2848, %v2739
      %v2850 = vadd.f32 %v2849, %v2741
      %v2851 = vadd.f32 %v2850, %v2743
      %v2852 = vadd.f32 %v2851, %v2745
      %v2853 = vadd.f32 %v2852, %v2747
      %v2854 = vadd.f32 %v2853, %v2749
      %v2855 = vadd.f32 %v2854, %v2751
      %v2856 = vadd.f32 %v2855, %v2753
      %v2857 = vadd.f32 %v2856, %v2755
      %v2858 = vadd.f32 %v2857, %v2757
      %v2859 = vadd.f32 %v2858, %v2759
      %v2860 = vadd.f32 %v2859, %v2761
      %v2861 = vadd.f32 %v2860, %v2763
      %v2862 = vadd.f32 %v2861, %v2765
      %v2863 = vadd.f32 %v2862, %v2767
      %v2864 = vadd.f32 %v2863, %v2769
      %v2865 = vadd.f32 %v2864, %v2771
      %v2866 = vadd.f32 %v2865, %v2773
      %v2867 = vadd.f32 %v2866, %v2775
      %v2868 = vadd.f32 %v2867, %v2777
      %v2869 = vadd.f32 %v2868, %v2779
      %v2870 = vadd.f32 %v2869, %v2781
      %v2871 = vadd.f32 %v2870, %v2783
      %v2872 = vadd.f32 %v2871, %v2785
      %v2873 = vadd.f32 %v2872, %v2787
      %v2874 = vadd.f32 %v2873, %v2789
      %v2875 = vadd.f32 %v2874, %v2791
      %v2876 = vadd.f32 %v2875, %v2793
      %v2877 = vadd.f32 %v2876, %v2795
      %v2878 = vadd.f32 %v2877, %v2797
      %v2879 = vadd.f32 %v2878, %v2799
      %v2880 = vadd.f32 %v2879, %v2801
      %v2881 = vadd.f32 %v2880, %v2803
      %v2882 = vadd.f32 %v2881, %v2805
      %v2883 = vadd.f32 %v2882, %v2807
      %v2884 = vadd.f32 %v2883, %v2809
      %v2885 = vadd.f32 %v2884, %v2811
      %v2886 = vadd.f32 %v2885, %v2813
      %v2887 = vadd.f32 %v2886, %v2815
      %v2888 = vadd.f32 %v2887, %v2817
      %v2889 = vadd.f32 %v2888, %v2819
      %v2890 = vadd.f32 %v2889, %v2821
      %v2891 = vadd.f32 %v2890, %v2823
      %v2892 = vadd.f32 %v2891, %v2825
      %v2893 = vadd.f32 %v2892, %v2827
      %v2894 = vadd.f32 %v2893, %v2829
      %v2895 = vadd.f32 %v2894, %v2831
      %v2896 = vadd.f32 %v2895, %v2833
      %2897 = vadd.xlane.f32.xlu0 %v2896
      %v2898 = vpop.xlane.xlu0 %2897
      %v2899 = vrot.slane %v2898, 4
      %v2900 = vadd.f32 %v2898, %v2899
      %v2901 = vrot.slane %v2900, 2
      %v2902 = vadd.f32 %v2900, %v2901
      %v2903 = vrot.slane %v2902, 1
      %v2904 = vadd.f32 %v2902, %v2903
      %s2905 = vtos %v2904
      %2938 = vrot.lane.b32.xlu0 %v976, 126
      %v2939 = vpop.permute.xlu0 %2938
      %2940 = vrot.lane.b32.xlu0 %v981, 126
      %v2941 = vpop.permute.xlu0 %2940
      %2942 = vrot.lane.b32.xlu0 %v986, 126
      %v2943 = vpop.permute.xlu0 %2942
      %2944 = vrot.lane.b32.xlu0 %v991, 126
      %v2945 = vpop.permute.xlu0 %2944
      %2946 = vrot.lane.b32.xlu0 %v996, 126
      %v2947 = vpop.permute.xlu0 %2946
      %2948 = vrot.lane.b32.xlu0 %v1001, 126
      %v2949 = vpop.permute.xlu0 %2948
      %2950 = vrot.lane.b32.xlu0 %v1006, 126
      %v2951 = vpop.permute.xlu0 %2950
      %2952 = vrot.lane.b32.xlu0 %v1011, 126
      %v2953 = vpop.permute.xlu0 %2952
      %2954 = vrot.lane.b32.xlu0 %v1016, 126
      %v2955 = vpop.permute.xlu0 %2954
      %2956 = vrot.lane.b32.xlu0 %v1021, 126
      %v2957 = vpop.permute.xlu0 %2956
      %2958 = vrot.lane.b32.xlu0 %v1026, 126
      %v2959 = vpop.permute.xlu0 %2958
      %2960 = vrot.lane.b32.xlu0 %v1031, 126
      %v2961 = vpop.permute.xlu0 %2960
      %2962 = vrot.lane.b32.xlu0 %v1036, 126
      %v2963 = vpop.permute.xlu0 %2962
      %2964 = vrot.lane.b32.xlu0 %v1041, 126
      %v2965 = vpop.permute.xlu0 %2964
      %2966 = vrot.lane.b32.xlu0 %v1046, 126
      %v2967 = vpop.permute.xlu0 %2966
      %2968 = vrot.lane.b32.xlu0 %v1051, 126
      %v2969 = vpop.permute.xlu0 %2968
      %2970 = vrot.lane.b32.xlu0 %v1056, 126
      %v2971 = vpop.permute.xlu0 %2970
      %2972 = vrot.lane.b32.xlu0 %v1061, 126
      %v2973 = vpop.permute.xlu0 %2972
      %2974 = vrot.lane.b32.xlu0 %v1066, 126
      %v2975 = vpop.permute.xlu0 %2974
      %2976 = vrot.lane.b32.xlu0 %v1071, 126
      %v2977 = vpop.permute.xlu0 %2976
      %2978 = vrot.lane.b32.xlu0 %v1076, 126
      %v2979 = vpop.permute.xlu0 %2978
      %2980 = vrot.lane.b32.xlu0 %v1081, 126
      %v2981 = vpop.permute.xlu0 %2980
      %2982 = vrot.lane.b32.xlu0 %v1086, 126
      %v2983 = vpop.permute.xlu0 %2982
      %2984 = vrot.lane.b32.xlu0 %v1091, 126
      %v2985 = vpop.permute.xlu0 %2984
      %2986 = vrot.lane.b32.xlu0 %v1096, 126
      %v2987 = vpop.permute.xlu0 %2986
      %2988 = vrot.lane.b32.xlu0 %v1101, 126
      %v2989 = vpop.permute.xlu0 %2988
      %2990 = vrot.lane.b32.xlu0 %v1106, 126
      %v2991 = vpop.permute.xlu0 %2990
      %2992 = vrot.lane.b32.xlu0 %v1111, 126
      %v2993 = vpop.permute.xlu0 %2992
      %2994 = vrot.lane.b32.xlu0 %v1116, 126
      %v2995 = vpop.permute.xlu0 %2994
      %2996 = vrot.lane.b32.xlu0 %v1121, 126
      %v2997 = vpop.permute.xlu0 %2996
      %2998 = vrot.lane.b32.xlu0 %v1126, 126
      %v2999 = vpop.permute.xlu0 %2998
      %3000 = vrot.lane.b32.xlu0 %v1131, 126
      %v3001 = vpop.permute.xlu0 %3000
      %3034 = vmatprep.subr.mxu0 0.0
      %3035 = vmatpush1.msra.mxu0 %v2939
      %3036 = vmatprep.subr.mxu0 0.0
      %3037 = vmatpush1.msra.mxu0 %v2941
      %3038 = vmatprep.subr.mxu0 0.0
      %3039 = vmatpush1.msra.mxu0 %v2943
      %3040 = vmatprep.subr.mxu0 0.0
      %3041 = vmatpush1.msra.mxu0 %v2945
      %3042 = vmatprep.subr.mxu0 0.0
      %3043 = vmatpush1.msra.mxu0 %v2947
      %3044 = vmatprep.subr.mxu0 0.0
      %3045 = vmatpush1.msra.mxu0 %v2949
      %3046 = vmatprep.subr.mxu0 0.0
      %3047 = vmatpush1.msra.mxu0 %v2951
      %3048 = vmatprep.subr.mxu0 0.0
      %3049 = vmatpush1.msra.mxu0 %v2953
      %3050 = vmatprep.subr.mxu0 0.0
      %3051 = vmatpush1.msra.mxu0 %v2955
      %3052 = vmatprep.subr.mxu0 0.0
      %3053 = vmatpush1.msra.mxu0 %v2957
      %3054 = vmatprep.subr.mxu0 0.0
      %3055 = vmatpush1.msra.mxu0 %v2959
      %3056 = vmatprep.subr.mxu0 0.0
      %3057 = vmatpush1.msra.mxu0 %v2961
      %3058 = vmatprep.subr.mxu0 0.0
      %3059 = vmatpush1.msra.mxu0 %v2963
      %3060 = vmatprep.subr.mxu0 0.0
      %3061 = vmatpush1.msra.mxu0 %v2965
      %3062 = vmatprep.subr.mxu0 0.0
      %3063 = vmatpush1.msra.mxu0 %v2967
      %3064 = vmatprep.subr.mxu0 0.0
      %3065 = vmatpush1.msra.mxu0 %v2969
      %3066 = vmatprep.subr.mxu0 0.0
      %3067 = vmatpush1.msra.mxu0 %v2971
      %3068 = vmatprep.subr.mxu0 0.0
      %3069 = vmatpush1.msra.mxu0 %v2973
      %3070 = vmatprep.subr.mxu0 0.0
      %3071 = vmatpush1.msra.mxu0 %v2975
      %3072 = vmatprep.subr.mxu0 0.0
      %3073 = vmatpush1.msra.mxu0 %v2977
      %3074 = vmatprep.subr.mxu0 0.0
      %3075 = vmatpush1.msra.mxu0 %v2979
      %3076 = vmatprep.subr.mxu0 0.0
      %3077 = vmatpush1.msra.mxu0 %v2981
      %3078 = vmatprep.subr.mxu0 0.0
      %3079 = vmatpush1.msra.mxu0 %v2983
      %3080 = vmatprep.subr.mxu0 0.0
      %3081 = vmatpush1.msra.mxu0 %v2985
      %3082 = vmatprep.subr.mxu0 0.0
      %3083 = vmatpush1.msra.mxu0 %v2987
      %3084 = vmatprep.subr.mxu0 0.0
      %3085 = vmatpush1.msra.mxu0 %v2989
      %3086 = vmatprep.subr.mxu0 0.0
      %3087 = vmatpush1.msra.mxu0 %v2991
      %3088 = vmatprep.subr.mxu0 0.0
      %3089 = vmatpush1.msra.mxu0 %v2993
      %3090 = vmatprep.subr.mxu0 0.0
      %3091 = vmatpush1.msra.mxu0 %v2995
      %3092 = vmatprep.subr.mxu0 0.0
      %3093 = vmatpush1.msra.mxu0 %v2997
      %3094 = vmatprep.subr.mxu0 0.0
      %3095 = vmatpush1.msra.mxu0 %v2999
      %3096 = vmatprep.subr.mxu0 0.0
      %3097 = vmatpush1.msra.mxu0 %v3001
      %3098 = vmatprep.mubr.f32.mxu0 %v2709
      %3099 = vmatmul.mubr.f32.gmra.mrb[0].mxu0 %v2707
      %v3100 = vpop.f32.mrb[0].mxu0
      %v3101 = vadd.f32 0.0, %v3100
      %v3102 = vpop.f32.mrb[0].mxu0
      %3103 = vmatprep.mubr.f32.mxu0 %v2713
      %3104 = vmatmul.mubr.f32.gmra.mrb[0].mxu0 %v2711
      %v3105 = vpop.f32.mrb[0].mxu0
      %v3106 = vadd.f32 0.0, %v3105
      %v3107 = vpop.f32.mrb[0].mxu0
      %3108 = vmatprep.mubr.f32.mxu0 %v2717
      %3109 = vmatmul.mubr.f32.gmra.mrb[0].mxu0 %v2715
      %v3110 = vpop.f32.mrb[0].mxu0
      %v3111 = vadd.f32 0.0, %v3110
      %v3112 = vpop.f32.mrb[0].mxu0
      %3113 = vmatprep.mubr.f32.mxu0 %v2721
      %3114 = vmatmul.mubr.f32.gmra.mrb[0].mxu0 %v2719
      %v3115 = vpop.f32.mrb[0].mxu0
      %v3116 = vadd.f32 0.0, %v3115
      %v3117 = vpop.f32.mrb[0].mxu0
      %3118 = vmatprep.mubr.f32.mxu0 %v2725
      %3119 = vmatmul.mubr.f32.gmra.mrb[0].mxu0 %v2723
      %v3120 = vpop.f32.mrb[0].mxu0
      %v3121 = vadd.f32 0.0, %v3120
      %v3122 = vpop.f32.mrb[0].mxu0
      %3123 = vmatprep.mubr.f32.mxu0 %v2729
      %3124 = vmatmul.mubr.f32.gmra.mrb[0].mxu0 %v2727
      %v3125 = vpop.f32.mrb[0].mxu0
      %v3126 = vadd.f32 0.0, %v3125
      %v3127 = vpop.f32.mrb[0].mxu0
      %3128 = vmatprep.mubr.f32.mxu0 %v2733
      %3129 = vmatmul.mubr.f32.gmra.mrb[0].mxu0 %v2731
      %v3130 = vpop.f32.mrb[0].mxu0
      %v3131 = vadd.f32 0.0, %v3130
      %v3132 = vpop.f32.mrb[0].mxu0
      %3133 = vmatprep.mubr.f32.mxu0 %v2737
      %3134 = vmatmul.mubr.f32.gmra.mrb[0].mxu0 %v2735
      %v3135 = vpop.f32.mrb[0].mxu0
      %v3136 = vadd.f32 0.0, %v3135
      %v3137 = vpop.f32.mrb[0].mxu0
      %3138 = vmatprep.mubr.f32.mxu0 %v2741
      %3139 = vmatmul.mubr.f32.gmra.mrb[0].mxu0 %v2739
      %v3140 = vpop.f32.mrb[0].mxu0
      %v3141 = vadd.f32 0.0, %v3140
      %v3142 = vpop.f32.mrb[0].mxu0
      %3143 = vmatprep.mubr.f32.mxu0 %v2745
      %3144 = vmatmul.mubr.f32.gmra.mrb[0].mxu0 %v2743
      %v3145 = vpop.f32.mrb[0].mxu0
      %v3146 = vadd.f32 0.0, %v3145
      %v3147 = vpop.f32.mrb[0].mxu0
      %3148 = vmatprep.mubr.f32.mxu0 %v2749
      %3149 = vmatmul.mubr.f32.gmra.mrb[0].mxu0 %v2747
      %v3150 = vpop.f32.mrb[0].mxu0
      %v3151 = vadd.f32 0.0, %v3150
      %v3152 = vpop.f32.mrb[0].mxu0
      %3153 = vmatprep.mubr.f32.mxu0 %v2753
      %3154 = vmatmul.mubr.f32.gmra.mrb[0].mxu0 %v2751
      %v3155 = vpop.f32.mrb[0].mxu0
      %v3156 = vadd.f32 0.0, %v3155
      %v3157 = vpop.f32.mrb[0].mxu0
      %3158 = vmatprep.mubr.f32.mxu0 %v2757
      %3159 = vmatmul.mubr.f32.gmra.mrb[0].mxu0 %v2755
      %v3160 = vpop.f32.mrb[0].mxu0
      %v3161 = vadd.f32 0.0, %v3160
      %v3162 = vpop.f32.mrb[0].mxu0
      %3163 = vmatprep.mubr.f32.mxu0 %v2761
      %3164 = vmatmul.mubr.f32.gmra.mrb[0].mxu0 %v2759
      %v3165 = vpop.f32.mrb[0].mxu0
      %v3166 = vadd.f32 0.0, %v3165
      %v3167 = vpop.f32.mrb[0].mxu0
      %3168 = vmatprep.mubr.f32.mxu0 %v2765
      %3169 = vmatmul.mubr.f32.gmra.mrb[0].mxu0 %v2763
      %v3170 = vpop.f32.mrb[0].mxu0
      %v3171 = vadd.f32 0.0, %v3170
      %v3172 = vpop.f32.mrb[0].mxu0
      %3173 = vmatprep.mubr.f32.mxu0 %v2769
      %3174 = vmatmul.mubr.f32.gmra.mrb[0].mxu0 %v2767
      %v3175 = vpop.f32.mrb[0].mxu0
      %v3176 = vadd.f32 0.0, %v3175
      %v3177 = vpop.f32.mrb[0].mxu0
      %3178 = vmatprep.mubr.f32.mxu0 %v2773
      %3179 = vmatmul.mubr.f32.gmra.mrb[0].mxu0 %v2771
      %v3180 = vpop.f32.mrb[0].mxu0
      %v3181 = vadd.f32 0.0, %v3180
      %v3182 = vpop.f32.mrb[0].mxu0
      %3183 = vmatprep.mubr.f32.mxu0 %v2777
      %3184 = vmatmul.mubr.f32.gmra.mrb[0].mxu0 %v2775
      %v3185 = vpop.f32.mrb[0].mxu0
      %v3186 = vadd.f32 0.0, %v3185
      %v3187 = vpop.f32.mrb[0].mxu0
      %3188 = vmatprep.mubr.f32.mxu0 %v2781
      %3189 = vmatmul.mubr.f32.gmra.mrb[0].mxu0 %v2779
      %v3190 = vpop.f32.mrb[0].mxu0
      %v3191 = vadd.f32 0.0, %v3190
      %v3192 = vpop.f32.mrb[0].mxu0
      %3193 = vmatprep.mubr.f32.mxu0 %v2785
      %3194 = vmatmul.mubr.f32.gmra.mrb[0].mxu0 %v2783
      %v3195 = vpop.f32.mrb[0].mxu0
      %v3196 = vadd.f32 0.0, %v3195
      %v3197 = vpop.f32.mrb[0].mxu0
      %3198 = vmatprep.mubr.f32.mxu0 %v2789
      %3199 = vmatmul.mubr.f32.gmra.mrb[0].mxu0 %v2787
      %v3200 = vpop.f32.mrb[0].mxu0
      %v3201 = vadd.f32 0.0, %v3200
      %v3202 = vpop.f32.mrb[0].mxu0
      %3203 = vmatprep.mubr.f32.mxu0 %v2793
      %3204 = vmatmul.mubr.f32.gmra.mrb[0].mxu0 %v2791
      %v3205 = vpop.f32.mrb[0].mxu0
      %v3206 = vadd.f32 0.0, %v3205
      %v3207 = vpop.f32.mrb[0].mxu0
      %3208 = vmatprep.mubr.f32.mxu0 %v2797
      %3209 = vmatmul.mubr.f32.gmra.mrb[0].mxu0 %v2795
      %v3210 = vpop.f32.mrb[0].mxu0
      %v3211 = vadd.f32 0.0, %v3210
      %v3212 = vpop.f32.mrb[0].mxu0
      %3213 = vmatprep.mubr.f32.mxu0 %v2801
      %3214 = vmatmul.mubr.f32.gmra.mrb[0].mxu0 %v2799
      %v3215 = vpop.f32.mrb[0].mxu0
      %v3216 = vadd.f32 0.0, %v3215
      %v3217 = vpop.f32.mrb[0].mxu0
      %3218 = vmatprep.mubr.f32.mxu0 %v2805
      %3219 = vmatmul.mubr.f32.gmra.mrb[0].mxu0 %v2803
      %v3220 = vpop.f32.mrb[0].mxu0
      %v3221 = vadd.f32 0.0, %v3220
      %v3222 = vpop.f32.mrb[0].mxu0
      %3223 = vmatprep.mubr.f32.mxu0 %v2809
      %3224 = vmatmul.mubr.f32.gmra.mrb[0].mxu0 %v2807
      %v3225 = vpop.f32.mrb[0].mxu0
      %v3226 = vadd.f32 0.0, %v3225
      %v3227 = vpop.f32.mrb[0].mxu0
      %3228 = vmatprep.mubr.f32.mxu0 %v2813
      %3229 = vmatmul.mubr.f32.gmra.mrb[0].mxu0 %v2811
      %v3230 = vpop.f32.mrb[0].mxu0
      %v3231 = vadd.f32 0.0, %v3230
      %v3232 = vpop.f32.mrb[0].mxu0
      %3233 = vmatprep.mubr.f32.mxu0 %v2817
      %3234 = vmatmul.mubr.f32.gmra.mrb[0].mxu0 %v2815
      %v3235 = vpop.f32.mrb[0].mxu0
      %v3236 = vadd.f32 0.0, %v3235
      %v3237 = vpop.f32.mrb[0].mxu0
      %3238 = vmatprep.mubr.f32.mxu0 %v2821
      %3239 = vmatmul.mubr.f32.gmra.mrb[0].mxu0 %v2819
      %v3240 = vpop.f32.mrb[0].mxu0
      %v3241 = vadd.f32 0.0, %v3240
      %v3242 = vpop.f32.mrb[0].mxu0
      %3243 = vmatprep.mubr.f32.mxu0 %v2825
      %3244 = vmatmul.mubr.f32.gmra.mrb[0].mxu0 %v2823
      %v3245 = vpop.f32.mrb[0].mxu0
      %v3246 = vadd.f32 0.0, %v3245
      %v3247 = vpop.f32.mrb[0].mxu0
      %3248 = vmatprep.mubr.f32.mxu0 %v2829
      %3249 = vmatmul.mubr.f32.gmra.mrb[0].mxu0 %v2827
      %v3250 = vpop.f32.mrb[0].mxu0
      %v3251 = vadd.f32 0.0, %v3250
      %v3252 = vpop.f32.mrb[0].mxu0
      %3253 = vmatprep.mubr.f32.mxu0 %v2833
      %3254 = vmatmul.mubr.f32.gmra.mrb[0].mxu0 %v2831
      %v3255 = vpop.f32.mrb[0].mxu0
      %v3256 = vadd.f32 0.0, %v3255
      %v3257 = vpop.f32.mrb[0].mxu0
      %3258 = vdwg.mxu0
      %3259 = vmatprep.subr.mxu0 0.0
      %3260 = vmatpush1.msra.mxu0 %v3101
      %3261 = vmatprep.subr.mxu0 0.0
      %3262 = vmatpush1.msra.mxu0 %v3106
      %3263 = vmatprep.subr.mxu0 0.0
      %3264 = vmatpush1.msra.mxu0 %v3111
      %3265 = vmatprep.subr.mxu0 0.0
      %3266 = vmatpush1.msra.mxu0 %v3116
      %3267 = vmatprep.subr.mxu0 0.0
      %3268 = vmatpush1.msra.mxu0 %v3121
      %3269 = vmatprep.subr.mxu0 0.0
      %3270 = vmatpush1.msra.mxu0 %v3126
      %3271 = vmatprep.subr.mxu0 0.0
      %3272 = vmatpush1.msra.mxu0 %v3131
      %3273 = vmatprep.subr.mxu0 0.0
      %3274 = vmatpush1.msra.mxu0 %v3136
      %3275 = vmatprep.subr.mxu0 0.0
      %3276 = vmatpush1.msra.mxu0 %v3141
      %3277 = vmatprep.subr.mxu0 0.0
      %3278 = vmatpush1.msra.mxu0 %v3146
      %3279 = vmatprep.subr.mxu0 0.0
      %3280 = vmatpush1.msra.mxu0 %v3151
      %3281 = vmatprep.subr.mxu0 0.0
      %3282 = vmatpush1.msra.mxu0 %v3156
      %3283 = vmatprep.subr.mxu0 0.0
      %3284 = vmatpush1.msra.mxu0 %v3161
      %3285 = vmatprep.subr.mxu0 0.0
      %3286 = vmatpush1.msra.mxu0 %v3166
      %3287 = vmatprep.subr.mxu0 0.0
      %3288 = vmatpush1.msra.mxu0 %v3171
      %3289 = vmatprep.subr.mxu0 0.0
      %3290 = vmatpush1.msra.mxu0 %v3176
      %3291 = vmatprep.subr.mxu0 0.0
      %3292 = vmatpush1.msra.mxu0 %v3181
      %3293 = vmatprep.subr.mxu0 0.0
      %3294 = vmatpush1.msra.mxu0 %v3186
      %3295 = vmatprep.subr.mxu0 0.0
      %3296 = vmatpush1.msra.mxu0 %v3191
      %3297 = vmatprep.subr.mxu0 0.0
      %3298 = vmatpush1.msra.mxu0 %v3196
      %3299 = vmatprep.subr.mxu0 0.0
      %3300 = vmatpush1.msra.mxu0 %v3201
      %3301 = vmatprep.subr.mxu0 0.0
      %3302 = vmatpush1.msra.mxu0 %v3206
      %3303 = vmatprep.subr.mxu0 0.0
      %3304 = vmatpush1.msra.mxu0 %v3211
      %3305 = vmatprep.subr.mxu0 0.0
      %3306 = vmatpush1.msra.mxu0 %v3216
      %3307 = vmatprep.subr.mxu0 0.0
      %3308 = vmatpush1.msra.mxu0 %v3221
      %3309 = vmatprep.subr.mxu0 0.0
      %3310 = vmatpush1.msra.mxu0 %v3226
      %3311 = vmatprep.subr.mxu0 0.0
      %3312 = vmatpush1.msra.mxu0 %v3231
      %3313 = vmatprep.subr.mxu0 0.0
      %3314 = vmatpush1.msra.mxu0 %v3236
      %3315 = vmatprep.subr.mxu0 0.0
      %3316 = vmatpush1.msra.mxu0 %v3241
      %3317 = vmatprep.subr.mxu0 0.0
      %3318 = vmatpush1.msra.mxu0 %v3246
      %3319 = vmatprep.subr.mxu0 0.0
      %3320 = vmatpush1.msra.mxu0 %v3251
      %3321 = vmatprep.subr.mxu0 0.0
      %3322 = vmatpush1.msra.mxu0 %v3256
      %3323 = vmatprep.mubr.f32.mxu0 %v1135
      %3324 = vmatmul.mubr.f32.gmra.mrb[0].mxu0 %v1134
      %v3325 = vpop.f32.mrb[0].mxu0
      %v3326 = vadd.f32 0.0, %v3325
      %v3327 = vpop.f32.mrb[0].mxu0
      %3328 = vmatprep.mubr.f32.mxu0 %v1137
      %3329 = vmatmul.mubr.f32.gmra.mrb[0].mxu0 %v1136
      %v3330 = vpop.f32.mrb[0].mxu0
      %v3331 = vadd.f32 0.0, %v3330
      %v3332 = vpop.f32.mrb[0].mxu0
      %3333 = vmatprep.mubr.f32.mxu0 %v1139
      %3334 = vmatmul.mubr.f32.gmra.mrb[0].mxu0 %v1138
      %v3335 = vpop.f32.mrb[0].mxu0
      %v3336 = vadd.f32 0.0, %v3335
      %v3337 = vpop.f32.mrb[0].mxu0
      %3338 = vmatprep.mubr.f32.mxu0 %v1141
      %3339 = vmatmul.mubr.f32.gmra.mrb[0].mxu0 %v1140
      %v3340 = vpop.f32.mrb[0].mxu0
      %v3341 = vadd.f32 0.0, %v3340
      %v3342 = vpop.f32.mrb[0].mxu0
      %3343 = vmatprep.mubr.f32.mxu0 %v1143
      %3344 = vmatmul.mubr.f32.gmra.mrb[0].mxu0 %v1142
      %v3345 = vpop.f32.mrb[0].mxu0
      %v3346 = vadd.f32 0.0, %v3345
      %v3347 = vpop.f32.mrb[0].mxu0
      %3348 = vmatprep.mubr.f32.mxu0 %v1145
      %3349 = vmatmul.mubr.f32.gmra.mrb[0].mxu0 %v1144
      %v3350 = vpop.f32.mrb[0].mxu0
      %v3351 = vadd.f32 0.0, %v3350
      %v3352 = vpop.f32.mrb[0].mxu0
      %3353 = vmatprep.mubr.f32.mxu0 %v1147
      %3354 = vmatmul.mubr.f32.gmra.mrb[0].mxu0 %v1146
      %v3355 = vpop.f32.mrb[0].mxu0
      %v3356 = vadd.f32 0.0, %v3355
      %v3357 = vpop.f32.mrb[0].mxu0
      %3358 = vmatprep.mubr.f32.mxu0 %v1149
      %3359 = vmatmul.mubr.f32.gmra.mrb[0].mxu0 %v1148
      %v3360 = vpop.f32.mrb[0].mxu0
      %v3361 = vadd.f32 0.0, %v3360
      %v3362 = vpop.f32.mrb[0].mxu0
      %3363 = vdwg.mxu0
      %s3364 = smax.f32 %s1582, %s2640
      %s3365 = ssub.f32 %s1582, %s3364
      %v3366 = vstv %s3365
      %v3367 = vmul.f32 %v3366, 1.442695
      %v3368 = vpow.pop %v3367
      %s3369 = vtos %v3368
      %s3370 = ssub.f32 %s2640, %s3364
      %v3371 = vstv %s3370
      %v3372 = vmul.f32 %v3371, 1.442695
      %v3373 = vpow.pop %v3372
      %s3374 = vtos %v3373
      %s3375 = smul.f32 %s3369, %s1847
      %s3376 = smul.f32 %s3374, %s2905
      %s3377 = sadd.f32 %s3375, %s3376
      %v3378 = vstv %s3377
      %v3379 = vrcp.pop %v3378
      %s3380 = vtos %v3379
      %s3381 = smul.f32 %s3369, %s3380
      %v3382 = vstv %s3381
      %v3383 = vmul.f32 %v2140, %v3382
      %v3384 = vmul.f32 %v2145, %v3382
      %v3385 = vmul.f32 %v2150, %v3382
      %v3386 = vmul.f32 %v2155, %v3382
      %v3387 = vmul.f32 %v2160, %v3382
      %v3388 = vmul.f32 %v2165, %v3382
      %v3389 = vmul.f32 %v2170, %v3382
      %v3390 = vmul.f32 %v2175, %v3382
      %3391 = vst.msk [vmem:[%s379] sm:$0xff] %vm1150, %v3383
      %3392 = vst.msk [vmem:[%s379 + $0x8] sm:$0xff] %vm1150, %v3384
      %3393 = vst.msk [vmem:[%s379 + $0x10] sm:$0xff] %vm1150, %v3385
      %3394 = vst.msk [vmem:[%s379 + $0x18] sm:$0xff] %vm1150, %v3386
      %3395 = vst.msk [vmem:[%s379 + $0x20] sm:$0xff] %vm1150, %v3387
      %3396 = vst.msk [vmem:[%s379 + $0x28] sm:$0xff] %vm1150, %v3388
      %3397 = vst.msk [vmem:[%s379 + $0x30] sm:$0xff] %vm1150, %v3389
      %3398 = vst.msk [vmem:[%s379 + $0x38] sm:$0xff] %vm1150, %v3390
      %s3399 = smul.f32 %s3374, %s3380
      %v3400 = vstv %s3399
      %v3401 = vmul.f32 %v3326, %v3400
      %v3402 = vmul.f32 %v3331, %v3400
      %v3403 = vmul.f32 %v3336, %v3400
      %v3404 = vmul.f32 %v3341, %v3400
      %v3405 = vmul.f32 %v3346, %v3400
      %v3406 = vmul.f32 %v3351, %v3400
      %v3407 = vmul.f32 %v3356, %v3400
      %v3408 = vmul.f32 %v3361, %v3400
      %s3409 = scalar_lea.vmem %s379, 64
      %3410 = vst.msk [vmem:[%s3409] sm:$0xff] %vm1150, %v3401
      %3411 = vst.msk [vmem:[%s3409 + $0x8] sm:$0xff] %vm1150, %v3402
      %3412 = vst.msk [vmem:[%s3409 + $0x10] sm:$0xff] %vm1150, %v3403
      %3413 = vst.msk [vmem:[%s3409 + $0x18] sm:$0xff] %vm1150, %v3404
      %3414 = vst.msk [vmem:[%s3409 + $0x20] sm:$0xff] %vm1150, %v3405
      %3415 = vst.msk [vmem:[%s3409 + $0x28] sm:$0xff] %vm1150, %v3406
      %3416 = vst.msk [vmem:[%s3409 + $0x30] sm:$0xff] %vm1150, %v3407
      %3417 = vst.msk [vmem:[%s3409 + $0x38] sm:$0xff] %vm1150, %v3408
      %p3418 = scmp.lt.s32.totalorder %s21, 1
      %s3419 = scalar_select %p3418, %s21, 1
      %s3420 = smul.addr %s3419, 16
      %s3421 = smul.addr %s3420, 8
      %s3422 = scalar_lea.vmem %s10, %s3421
      // Predicated region
      $region61: #{tpu_custom_call.1} parent=59 // pred_check
        %p3423 = pneg %p259
      $region62: #{tpu_custom_call.1} parent=59 // pred_check_branch
        %3425 = sbr.rel (%p3423) target = $region64
      $region63: #{tpu_custom_call.1} parent=59 // pred_region
        _
      $region64: #{tpu_custom_call.1} parent=59 // pred_fallthru
        _
    $region60: #{tpu_custom_call.1} parent=5 // pred_fallthru
      _
    %p3426 = scmp.le.s32.totalorder 2, %s16
    // Predicated region
    $region65: #{tpu_custom_call.1} parent=5 // pred_check
      %p3427 = pneg %p3426
    $region66: #{tpu_custom_call.1} parent=5 // pred_check_branch
      %3429 = sbr.rel (%p3427) target = $region68
    $region67: #{tpu_custom_call.1} parent=5 // pred_region
      %s3430 = ssub.s32 %s16, 2
      // Predicated region
      $region69: #{tpu_custom_call.1} parent=67 // pred_check
        %p3431 = pneg %p265
      $region70: #{tpu_custom_call.1} parent=67 // pred_check_branch
        %3433 = sbr.rel (%p3431) target = $region72
      $region71: #{tpu_custom_call.1} parent=67 // pred_region
        %p3434 = scmp.lt.s32.totalorder %s22, 1
        %s3435 = scalar_select %p3434, %s22, 1
        %s3436 = smul.addr %s3435, 16
        %s3437 = smul.addr %s3436, 8
        %s3438 = scalar_lea.vmem %s10, %s3437
      $region72: #{tpu_custom_call.1} parent=67 // pred_fallthru
        _
    $region68: #{tpu_custom_call.1} parent=5 // pred_fallthru
      _
  $region6: #{tpu_custom_call.1} parent=0 // loop_footer
    %s20 = sadd.s32 1, %s16
  $region7: #{tpu_custom_call.1} parent=0 // loop_footer_branch
    %15 = sbr.rel target = $region3
  $region8: #{tpu_custom_call.1} parent=0 // loop_exit
    _

</llo_original>
